<compile_context>
chip_gen: v5e
topology: v5e:2x2
jax: 0.10.0
libtpu: 0.0.40
codegen_flags: <defaults>
</compile_context>

<pallas_src>
import numpy as np
import jax
import jax.numpy as jnp
from jax import lax
from jax.experimental import pallas as pl
from jax.experimental.pallas import tpu as pltpu


# ---------------------------------------------------------------------------
# Bilinear (align_corners=True) interpolation matrices, matches UpsamplingBilinear2d
# ---------------------------------------------------------------------------
def _interp_taps(out_size, in_size):
    """Per output index: (i0, i1, frac) with out = (1-frac)*x[i0] + frac*x[i1]."""
    if in_size == 1:
        return [(0, 0, 0.0)] * out_size
    scale = (in_size - 1) / (out_size - 1) if out_size > 1 else 0.0
    taps = []
    for o in range(out_size):
        src = o * scale
        i0 = int(min(np.floor(src), in_size - 2))
        i1 = min(i0 + 1, in_size - 1)
        taps.append((i0, i1, float(src - i0)))
    return taps


def _interp_matrix(out_size, in_size):
    A = np.zeros((out_size, in_size), dtype=np.float32)
    for o, (i0, i1, f) in enumerate(_interp_taps(out_size, in_size)):
        A[o, i0] += 1.0 - f
        A[o, i1] += f
    return A


# ---------------------------------------------------------------------------
# Fused kernel: upsample2x + concat + pad + conv3x3+ReLU + conv3x3+ReLU
# ---------------------------------------------------------------------------
def _unet_up_kernel(x0_ref, skip_ref, up_mat_ref, w1_ref, b1_ref, w2_ref, b2_ref,
                    o_ref, pad1, im2row1, pad_h1, im2row2):
    H, W, C0 = x0_ref.shape[1], x0_ref.shape[2], x0_ref.shape[3]
    OH, OW, Cs = skip_ref.shape[1], skip_ref.shape[2], skip_ref.shape[3]
    Cin = C0 + Cs
    Cout = o_ref.shape[2]
    cdt = pad1.dtype

    # ---- zero ONLY the 1-px halo strips (interior is fully overwritten each step) ----
    # Safe under megacore sharding: done unconditionally every grid step, no pid==0 guard.
    pad1[0:1, :, :] = jnp.zeros((1, OW + 2, Cin), cdt)
    pad1[OH + 1:OH + 2, :, :] = jnp.zeros((1, OW + 2, Cin), cdt)
    pad1[:, 0:1, :] = jnp.zeros((OH + 2, 1, Cin), cdt)
    pad1[:, OW + 1:OW + 2, :] = jnp.zeros((OH + 2, 1, Cin), cdt)
    pad_h1[0:1, :, :] = jnp.zeros((1, OW + 2, Cout), cdt)
    pad_h1[OH + 1:OH + 2, :, :] = jnp.zeros((1, OW + 2, Cout), cdt)
    pad_h1[:, 0:1, :] = jnp.zeros((OH + 2, 1, Cout), cdt)
    pad_h1[:, OW + 1:OW + 2, :] = jnp.zeros((OH + 2, 1, Cout), cdt)

    # ---- bilinear 2x upsample (align_corners=True) as ONE MXU matmul + ONE store ----
    x0_2d = x0_ref[0].reshape(H * W, C0)                                   # (H*W, C0)
    up = jnp.dot(up_mat_ref[...], x0_2d,
                 preferred_element_type=jnp.float32)                       # (OH*OW, C0) f32
    pad1[1:OH + 1, 1:OW + 1, 0:C0] = up.reshape(OH, OW, C0).astype(cdt)
    # channel concat fused: skip lands in channels [C0:Cin] of the same padded buffer
    pad1[1:OH + 1, 1:OW + 1, C0:Cin] = skip_ref[0]

    # ---- conv1 (3x3, pad 1): im2row (9 shifted slot copies) + ONE matmul, K = 9*Cin ----
    for ky in range(3):
        for kx in range(3):
            s = (ky * 3 + kx) * Cin
            im2row1[:, s:s + Cin] = pad1[ky:ky + OH, kx:kx + OW, :].reshape(OH * OW, Cin)
    h1 = jnp.dot(im2row1[...], w1_ref[...], preferred_element_type=jnp.float32)
    h1 = jnp.maximum(h1 + b1_ref[...], 0.0)                                # (OH*OW, Cout) f32
    # conv1 activation never leaves VMEM: re-padded in scratch for conv2.
    pad_h1[1:OH + 1, 1:OW + 1, :] = h1.reshape(OH, OW, Cout).astype(cdt)

    # ---- conv2 (3x3, pad 1): im2row + ONE matmul, K = 9*Cout ----
    for ky in range(3):
        for kx in range(3):
            s = (ky * 3 + kx) * Cout
            im2row2[:, s:s + Cout] = pad_h1[ky:ky + OH, kx:kx + OW, :].reshape(OH * OW, Cout)
    h2 = jnp.dot(im2row2[...], w2_ref[...], preferred_element_type=jnp.float32)
    # store flat (OH*OW, Cout); the wrapper reshapes to NHWC.
    o_ref[0] = jnp.maximum(h2 + b2_ref[...], 0.0).astype(o_ref.dtype)


def unet_up_forward(x0_nhwc, skip_nhwc, up_mat, w1flat, b1, w2flat, b2, out_dtype):
    """x0: (N,H,W,C0) low-res, skip: (N,2H,2W,Cs). Returns (N,2H,2W,Cout) NHWC."""
    N, H, W, C0 = x0_nhwc.shape
    _, OH, OW, Cs = skip_nhwc.shape
    Cin = C0 + Cs
    Cout = w2flat.shape[-1]
    cdt = x0_nhwc.dtype

    out = pl.pallas_call(
        _unet_up_kernel,
        out_shape=jax.ShapeDtypeStruct((N, OH * OW, Cout), out_dtype),
        grid_spec=pltpu.PrefetchScalarGridSpec(
            num_scalar_prefetch=0,
            grid=(N,),
            in_specs=[
                pl.BlockSpec((1, H, W, C0), lambda n: (n, 0, 0, 0)),
                pl.BlockSpec((1, OH, OW, Cs), lambda n: (n, 0, 0, 0)),
                pl.BlockSpec((OH * OW, H * W), lambda n: (0, 0)),       # interp matrix
                pl.BlockSpec((9 * Cin, Cout), lambda n: (0, 0)),        # conv1 weight (flat)
                pl.BlockSpec((1, Cout), lambda n: (0, 0)),
                pl.BlockSpec((9 * Cout, Cout), lambda n: (0, 0)),       # conv2 weight (flat)
                pl.BlockSpec((1, Cout), lambda n: (0, 0)),
            ],
            out_specs=pl.BlockSpec((1, OH * OW, Cout), lambda n: (n, 0, 0)),
            scratch_shapes=[
                pltpu.VMEM((OH + 2, OW + 2, Cin), cdt),      # padded concat(up, skip)
                pltpu.VMEM((OH * OW, 9 * Cin), cdt),         # conv1 im2row
                pltpu.VMEM((OH + 2, OW + 2, Cout), cdt),     # padded conv1 activation
                pltpu.VMEM((OH * OW, 9 * Cout), cdt),        # conv2 im2row
            ],
        ),
        compiler_params=pltpu.CompilerParams(
            dimension_semantics=("parallel",)),
    )(x0_nhwc, skip_nhwc, up_mat, w1flat, b1, w2flat, b2)
    return out.reshape(N, OH, OW, Cout)


# ---------------------------------------------------------------------------
# Module wrapper (parameters initialized deterministically in-script)
# ---------------------------------------------------------------------------
class UnetUpOriginPallas:
    """unetUp_origin(in_size, out_size, is_deconv=False, n_concat=2)."""

    def __init__(self, in_size, out_size, n_concat=2, seed=42,
                 compute_dtype=jnp.float32):
        self.out_size = out_size
        self.compute_dtype = compute_dtype            # jnp.bfloat16 -> bf16 MXU operands
        self.conv_in = in_size + (n_concat - 2) * out_size
        k1, k2, k3, k4 = jax.random.split(jax.random.PRNGKey(seed), 4)

        def kaiming(key, cout, cin, ks=3):             # kaiming_normal_, fan_in, a=0
            std = float(np.sqrt(2.0 / (cin * ks * ks)))
            return jax.random.normal(key, (cout, cin, ks, ks), jnp.float32) * std

        self.w1 = kaiming(k1, out_size, self.conv_in)   # OIHW (PyTorch layout)
        self.b1 = jax.random.uniform(k2, (out_size,), jnp.float32, -0.1, 0.1)
        self.w2 = kaiming(k3, out_size, out_size)
        self.b2 = jax.random.uniform(k4, (out_size,), jnp.float32, -0.1, 0.1)

    def __call__(self, inputs0_nchw, *skips_nchw):
        assert len(skips_nchw) >= 1, "n_concat=2 forward expects at least one skip"
        cdt = self.compute_dtype
        x0 = jnp.transpose(inputs0_nchw, (0, 2, 3, 1)).astype(cdt)       # NCHW -> NHWC
        skips = [jnp.transpose(s, (0, 2, 3, 1)) for s in skips_nchw]
        skip = (skips[0] if len(skips) == 1
                else jnp.concatenate(skips, axis=-1)).astype(cdt)
        C0, Cs = x0.shape[-1], skip.shape[-1]
        assert C0 + Cs == self.conv_in

        N, H, W, _ = x0.shape
        OH, OW = skip.shape[1], skip.shape[2]
        assert OH == 2 * H and OW == 2 * W, "skip spatial dims must be 2x inputs0"

        # Bilinear-interp matrix (align_corners=True), Kronecker of the separable H/W forms,
        # built host-side once per shape.
        up_mat = jnp.asarray(
            np.kron(_interp_matrix(OH, H), _interp_matrix(OW, W))).astype(cdt)

        # conv weights: OIHW -> (ky,kx,Cin,Cout) -> (9*Cin, Cout), matching im2row slot order
        # (cat([up, skip]) channel order == PyTorch Cin order, so no weight split needed).
        w1flat = jnp.transpose(self.w1, (2, 3, 1, 0)).reshape(
            9 * self.conv_in, self.out_size).astype(cdt)
        w2flat = jnp.transpose(self.w2, (2, 3, 1, 0)).reshape(
            9 * self.out_size, self.out_size).astype(cdt)
        b1 = self.b1.reshape(1, -1).astype(jnp.float32)   # bias/ReLU stay f32 (v5e-friendly)
        b2 = self.b2.reshape(1, -1).astype(jnp.float32)

        out_nhwc = unet_up_forward(x0, skip, up_mat, w1flat, b1, w2flat, b2,
                                   out_dtype=inputs0_nchw.dtype)
        return jnp.transpose(out_nhwc, (0, 3, 1, 2))                      # NHWC -> NCHW


# ---------------------------------------------------------------------------
# Pure-JAX reference (for correctness check only)
# ---------------------------------------------------------------------------
def ref_forward(mod, inputs0, *skips):
    N, C, H, W = inputs0.shape
    ah = jnp.asarray(_interp_matrix(2 * H, H))
    aw = jnp.asarray(_interp_matrix(2 * W, W))
    up = jnp.einsum('ph,nchw->ncpw', ah, inputs0, precision=lax.Precision.HIGHEST)
    up = jnp.einsum('qw,ncpw->ncpq', aw, up, precision=lax.Precision.HIGHEST)
    x = jnp.concatenate([up] + list(skips), axis=1)

    def conv(x, w, b):
        y = lax.conv_general_dilated(x, w, (1, 1), ((1, 1), (1, 1)),
                                     dimension_numbers=('NCHW', 'OIHW', 'NCHW'),
                                     precision=lax.Precision.HIGHEST)
        return jnp.maximum(y + b[None, :, None, None], 0.0)

    return conv(conv(x, mod.w1, mod.b1), mod.w2, mod.b2)


if __name__ == "__main__":
    key = jax.random.PRNGKey(0)
    k0, k1 = jax.random.split(key)
    # in_size=128, out_size=64: inputs0 (low-res, 64ch) + skip (high-res, 64ch)
    # -> 128 channels into conv1 (full 128-lane conv1 operand).
    inputs0 = jax.random.normal(k0, (2, 64, 8, 8), jnp.float32)     # NCHW
    skip = jax.random.normal(k1, (2, 64, 16, 16), jnp.float32)      # NCHW

    mod = UnetUpOriginPallas(in_size=128, out_size=64, n_concat=2)
    out = jax.block_until_ready(mod(inputs0, skip))
    assert out.shape == (2, 64, 16, 16), out.shape

    ref = jax.block_until_ready(ref_forward(mod, inputs0, skip))
    np.testing.assert_allclose(np.asarray(out), np.asarray(ref), rtol=2e-3, atol=2e-3)
    print("KERNEL_OK")
</pallas_src>

<mosaic_0001>
module attributes {stable_mosaic.version = 11 : i64} {
  func.func @_unet_up_kernel(%arg0: i32, %arg1: memref<1x8x8x64xf32, #tpu.memory_space<vmem>>, %arg2: memref<1x16x16x64xf32, #tpu.memory_space<vmem>>, %arg3: memref<256x64xf32, #tpu.memory_space<vmem>>, %arg4: memref<1152x64xf32, #tpu.memory_space<vmem>>, %arg5: memref<1x64xf32, #tpu.memory_space<vmem>>, %arg6: memref<576x64xf32, #tpu.memory_space<vmem>>, %arg7: memref<1x64xf32, #tpu.memory_space<vmem>>, %arg8: memref<1x256x64xf32, #tpu.memory_space<vmem>>, %arg9: memref<18x18x128xf32, #tpu.memory_space<vmem>>, %arg10: memref<256x1152xf32, #tpu.memory_space<vmem>>, %arg11: memref<18x18x64xf32, #tpu.memory_space<vmem>>, %arg12: memref<256x576xf32, #tpu.memory_space<vmem>>) attributes {dimension_semantics = [#tpu.dimension_semantics<parallel>], iteration_bounds = array<i64: 2>, scalar_prefetch = 0 : i64, scratch_operands = 4 : i64, tpu.core_type = #tpu.core_type<tc>, window_params = [{transform_indices = @transform_0, window_bounds = array<i64: 1, 8, 8, 64>}, {transform_indices = @transform_1, window_bounds = array<i64: 1, 16, 16, 64>}, {pipeline_mode = #tpu.pipeline_mode<synchronous>, transform_indices = @transform_2, window_bounds = array<i64: 256, 64>}, {pipeline_mode = #tpu.pipeline_mode<synchronous>, transform_indices = @transform_3, window_bounds = array<i64: 1152, 64>}, {pipeline_mode = #tpu.pipeline_mode<synchronous>, transform_indices = @transform_4, window_bounds = array<i64: 1, 64>}, {pipeline_mode = #tpu.pipeline_mode<synchronous>, transform_indices = @transform_5, window_bounds = array<i64: 576, 64>}, {pipeline_mode = #tpu.pipeline_mode<synchronous>, transform_indices = @transform_6, window_bounds = array<i64: 1, 64>}, {transform_indices = @transform_7, window_bounds = array<i64: 1, 256, 64>}]} {
    %cst = arith.constant 0.000000e+00 : f32
    %0 = vector.broadcast %cst : f32 to vector<1x18x128xf32>
    %c0 = arith.constant 0 : index
    %c0_0 = arith.constant 0 : index
    %c0_1 = arith.constant 0 : index
    %1 = vector.load %arg9[%c0, %c0_0, %c0_1] : memref<18x18x128xf32, #tpu.memory_space<vmem>>, vector<1x18x128xf32>
    tpu.vector_store %arg9[%c0, %c0_0, %c0_1], %0 {strides = array<i32>} : memref<18x18x128xf32, #tpu.memory_space<vmem>>, vector<1x18x128xf32>,
    %cst_2 = arith.constant 0.000000e+00 : f32
    %2 = vector.broadcast %cst_2 : f32 to vector<1x18x128xf32>
    %c17 = arith.constant 17 : index
    %c0_3 = arith.constant 0 : index
    %c0_4 = arith.constant 0 : index
    %3 = vector.load %arg9[%c17, %c0_3, %c0_4] : memref<18x18x128xf32, #tpu.memory_space<vmem>>, vector<1x18x128xf32>
    tpu.vector_store %arg9[%c17, %c0_3, %c0_4], %2 {strides = array<i32>} : memref<18x18x128xf32, #tpu.memory_space<vmem>>, vector<1x18x128xf32>,
    %cst_5 = arith.constant 0.000000e+00 : f32
    %4 = vector.broadcast %cst_5 : f32 to vector<18x1x128xf32>
    %c0_6 = arith.constant 0 : index
    %c0_7 = arith.constant 0 : index
    %c0_8 = arith.constant 0 : index
    %5 = vector.load %arg9[%c0_6, %c0_7, %c0_8] : memref<18x18x128xf32, #tpu.memory_space<vmem>>, vector<18x1x128xf32>
    tpu.vector_store %arg9[%c0_6, %c0_7, %c0_8], %4 {strides = array<i32>} : memref<18x18x128xf32, #tpu.memory_space<vmem>>, vector<18x1x128xf32>,
    %cst_9 = arith.constant 0.000000e+00 : f32
    %6 = vector.broadcast %cst_9 : f32 to vector<18x1x128xf32>
    %c0_10 = arith.constant 0 : index
    %c17_11 = arith.constant 17 : index
    %c0_12 = arith.constant 0 : index
    %7 = vector.load %arg9[%c0_10, %c17_11, %c0_12] : memref<18x18x128xf32, #tpu.memory_space<vmem>>, vector<18x1x128xf32>
    tpu.vector_store %arg9[%c0_10, %c17_11, %c0_12], %6 {strides = array<i32>} : memref<18x18x128xf32, #tpu.memory_space<vmem>>, vector<18x1x128xf32>,
    %cst_13 = arith.constant 0.000000e+00 : f32
    %8 = vector.broadcast %cst_13 : f32 to vector<1x18x64xf32>
    %c0_14 = arith.constant 0 : index
    %c0_15 = arith.constant 0 : index
    %c0_16 = arith.constant 0 : index
    %9 = vector.load %arg11[%c0_14, %c0_15, %c0_16] : memref<18x18x64xf32, #tpu.memory_space<vmem>>, vector<1x18x64xf32>
    tpu.vector_store %arg11[%c0_14, %c0_15, %c0_16], %8 {strides = array<i32>} : memref<18x18x64xf32, #tpu.memory_space<vmem>>, vector<1x18x64xf32>,
    %cst_17 = arith.constant 0.000000e+00 : f32
    %10 = vector.broadcast %cst_17 : f32 to vector<1x18x64xf32>
    %c17_18 = arith.constant 17 : index
    %c0_19 = arith.constant 0 : index
    %c0_20 = arith.constant 0 : index
    %11 = vector.load %arg11[%c17_18, %c0_19, %c0_20] : memref<18x18x64xf32, #tpu.memory_space<vmem>>, vector<1x18x64xf32>
    tpu.vector_store %arg11[%c17_18, %c0_19, %c0_20], %10 {strides = array<i32>} : memref<18x18x64xf32, #tpu.memory_space<vmem>>, vector<1x18x64xf32>,
    %cst_21 = arith.constant 0.000000e+00 : f32
    %12 = vector.broadcast %cst_21 : f32 to vector<18x1x64xf32>
    %c0_22 = arith.constant 0 : index
    %c0_23 = arith.constant 0 : index
    %c0_24 = arith.constant 0 : index
    %13 = vector.load %arg11[%c0_22, %c0_23, %c0_24] : memref<18x18x64xf32, #tpu.memory_space<vmem>>, vector<18x1x64xf32>
    tpu.vector_store %arg11[%c0_22, %c0_23, %c0_24], %12 {strides = array<i32>} : memref<18x18x64xf32, #tpu.memory_space<vmem>>, vector<18x1x64xf32>,
    %cst_25 = arith.constant 0.000000e+00 : f32
    %14 = vector.broadcast %cst_25 : f32 to vector<18x1x64xf32>
    %c0_26 = arith.constant 0 : index
    %c17_27 = arith.constant 17 : index
    %c0_28 = arith.constant 0 : index
    %15 = vector.load %arg11[%c0_26, %c17_27, %c0_28] : memref<18x18x64xf32, #tpu.memory_space<vmem>>, vector<18x1x64xf32>
    tpu.vector_store %arg11[%c0_26, %c17_27, %c0_28], %14 {strides = array<i32>} : memref<18x18x64xf32, #tpu.memory_space<vmem>>, vector<18x1x64xf32>,
    %c0_29 = arith.constant 0 : index
    %c0_30 = arith.constant 0 : index
    %c0_31 = arith.constant 0 : index
    %c0_32 = arith.constant 0 : index
    %16 = vector.load %arg1[%c0_29, %c0_30, %c0_31, %c0_32] : memref<1x8x8x64xf32, #tpu.memory_space<vmem>>, vector<1x8x8x64xf32>
    %17 = vector.shape_cast %16 : vector<1x8x8x64xf32> to vector<8x8x64xf32>
    %18 = vector.shape_cast %17 : vector<8x8x64xf32> to vector<64x64xf32>
    %c0_33 = arith.constant 0 : index
    %c0_34 = arith.constant 0 : index
    %19 = vector.load %arg3[%c0_33, %c0_34] : memref<256x64xf32, #tpu.memory_space<vmem>>, vector<256x64xf32>
    %cst_35 = arith.constant dense<0.000000e+00> : vector<256x64xf32>
    %20 = tpu.matmul %19, %18, %cst_35 {dimension_numbers = #tpu.dot_dimension_numbers<[1], [0], [0], [1], [0, 0, 1, 1], [], []>} : vector<256x64xf32>, vector<64x64xf32>, vector<256x64xf32> -> vector<256x64xf32>
    %21 = vector.shape_cast %20 : vector<256x64xf32> to vector<16x16x64xf32>
    %c1 = arith.constant 1 : index
    %c1_36 = arith.constant 1 : index
    %c0_37 = arith.constant 0 : index
    %22 = vector.load %arg9[%c1, %c1_36, %c0_37] : memref<18x18x128xf32, #tpu.memory_space<vmem>>, vector<16x16x64xf32>
    tpu.vector_store %arg9[%c1, %c1_36, %c0_37], %21 {strides = array<i32>} : memref<18x18x128xf32, #tpu.memory_space<vmem>>, vector<16x16x64xf32>,
    %c0_38 = arith.constant 0 : index
    %c0_39 = arith.constant 0 : index
    %c0_40 = arith.constant 0 : index
    %c0_41 = arith.constant 0 : index
    %23 = vector.load %arg2[%c0_38, %c0_39, %c0_40, %c0_41] : memref<1x16x16x64xf32, #tpu.memory_space<vmem>>, vector<1x16x16x64xf32>
    %24 = vector.shape_cast %23 : vector<1x16x16x64xf32> to vector<16x16x64xf32>
    %c1_42 = arith.constant 1 : index
    %c1_43 = arith.constant 1 : index
    %c64 = arith.constant 64 : index
    %25 = vector.load %arg9[%c1_42, %c1_43, %c64] : memref<18x18x128xf32, #tpu.memory_space<vmem>>, vector<16x16x64xf32>
    tpu.vector_store %arg9[%c1_42, %c1_43, %c64], %24 {strides = array<i32>} : memref<18x18x128xf32, #tpu.memory_space<vmem>>, vector<16x16x64xf32>,
    %c0_44 = arith.constant 0 : index
    %c0_45 = arith.constant 0 : index
    %c0_46 = arith.constant 0 : index
    %26 = vector.load %arg9[%c0_44, %c0_45, %c0_46] : memref<18x18x128xf32, #tpu.memory_space<vmem>>, vector<16x16x128xf32>
    %27 = vector.shape_cast %26 : vector<16x16x128xf32> to vector<256x128xf32>
    %c0_47 = arith.constant 0 : index
    %c0_48 = arith.constant 0 : index
    %28 = vector.load %arg10[%c0_47, %c0_48] : memref<256x1152xf32, #tpu.memory_space<vmem>>, vector<256x128xf32>
    tpu.vector_store %arg10[%c0_47, %c0_48], %27 {strides = array<i32>} : memref<256x1152xf32, #tpu.memory_space<vmem>>, vector<256x128xf32>,
    %c0_49 = arith.constant 0 : index
    %c1_50 = arith.constant 1 : index
    %c0_51 = arith.constant 0 : index
    %29 = vector.load %arg9[%c0_49, %c1_50, %c0_51] : memref<18x18x128xf32, #tpu.memory_space<vmem>>, vector<16x16x128xf32>
    %30 = vector.shape_cast %29 : vector<16x16x128xf32> to vector<256x128xf32>
    %c0_52 = arith.constant 0 : index
    %c128 = arith.constant 128 : index
    %31 = vector.load %arg10[%c0_52, %c128] : memref<256x1152xf32, #tpu.memory_space<vmem>>, vector<256x128xf32>
    tpu.vector_store %arg10[%c0_52, %c128], %30 {strides = array<i32>} : memref<256x1152xf32, #tpu.memory_space<vmem>>, vector<256x128xf32>,
    %c0_53 = arith.constant 0 : index
    %c2 = arith.constant 2 : index
    %c0_54 = arith.constant 0 : index
    %32 = vector.load %arg9[%c0_53, %c2, %c0_54] : memref<18x18x128xf32, #tpu.memory_space<vmem>>, vector<16x16x128xf32>
    %33 = vector.shape_cast %32 : vector<16x16x128xf32> to vector<256x128xf32>
    %c0_55 = arith.constant 0 : index
    %c256 = arith.constant 256 : index
    %34 = vector.load %arg10[%c0_55, %c256] : memref<256x1152xf32, #tpu.memory_space<vmem>>, vector<256x128xf32>
    tpu.vector_store %arg10[%c0_55, %c256], %33 {strides = array<i32>} : memref<256x1152xf32, #tpu.memory_space<vmem>>, vector<256x128xf32>,
    %c1_56 = arith.constant 1 : index
    %c0_57 = arith.constant 0 : index
    %c0_58 = arith.constant 0 : index
    %35 = vector.load %arg9[%c1_56, %c0_57, %c0_58] : memref<18x18x128xf32, #tpu.memory_space<vmem>>, vector<16x16x128xf32>
    %36 = vector.shape_cast %35 : vector<16x16x128xf32> to vector<256x128xf32>
    %c0_59 = arith.constant 0 : index
    %c384 = arith.constant 384 : index
    %37 = vector.load %arg10[%c0_59, %c384] : memref<256x1152xf32, #tpu.memory_space<vmem>>, vector<256x128xf32>
    tpu.vector_store %arg10[%c0_59, %c384], %36 {strides = array<i32>} : memref<256x1152xf32, #tpu.memory_space<vmem>>, vector<256x128xf32>,
    %c1_60 = arith.constant 1 : index
    %c1_61 = arith.constant 1 : index
    %c0_62 = arith.constant 0 : index
    %38 = vector.load %arg9[%c1_60, %c1_61, %c0_62] : memref<18x18x128xf32, #tpu.memory_space<vmem>>, vector<16x16x128xf32>
    %39 = vector.shape_cast %38 : vector<16x16x128xf32> to vector<256x128xf32>
    %c0_63 = arith.constant 0 : index
    %c512 = arith.constant 512 : index
    %40 = vector.load %arg10[%c0_63, %c512] : memref<256x1152xf32, #tpu.memory_space<vmem>>, vector<256x128xf32>
    tpu.vector_store %arg10[%c0_63, %c512], %39 {strides = array<i32>} : memref<256x1152xf32, #tpu.memory_space<vmem>>, vector<256x128xf32>,
    %c1_64 = arith.constant 1 : index
    %c2_65 = arith.constant 2 : index
    %c0_66 = arith.constant 0 : index
    %41 = vector.load %arg9[%c1_64, %c2_65, %c0_66] : memref<18x18x128xf32, #tpu.memory_space<vmem>>, vector<16x16x128xf32>
    %42 = vector.shape_cast %41 : vector<16x16x128xf32> to vector<256x128xf32>
    %c0_67 = arith.constant 0 : index
    %c640 = arith.constant 640 : index
    %43 = vector.load %arg10[%c0_67, %c640] : memref<256x1152xf32, #tpu.memory_space<vmem>>, vector<256x128xf32>
    tpu.vector_store %arg10[%c0_67, %c640], %42 {strides = array<i32>} : memref<256x1152xf32, #tpu.memory_space<vmem>>, vector<256x128xf32>,
    %c2_68 = arith.constant 2 : index
    %c0_69 = arith.constant 0 : index
    %c0_70 = arith.constant 0 : index
    %44 = vector.load %arg9[%c2_68, %c0_69, %c0_70] : memref<18x18x128xf32, #tpu.memory_space<vmem>>, vector<16x16x128xf32>
    %45 = vector.shape_cast %44 : vector<16x16x128xf32> to vector<256x128xf32>
    %c0_71 = arith.constant 0 : index
    %c768 = arith.constant 768 : index
    %46 = vector.load %arg10[%c0_71, %c768] : memref<256x1152xf32, #tpu.memory_space<vmem>>, vector<256x128xf32>
    tpu.vector_store %arg10[%c0_71, %c768], %45 {strides = array<i32>} : memref<256x1152xf32, #tpu.memory_space<vmem>>, vector<256x128xf32>,
    %c2_72 = arith.constant 2 : index
    %c1_73 = arith.constant 1 : index
    %c0_74 = arith.constant 0 : index
    %47 = vector.load %arg9[%c2_72, %c1_73, %c0_74] : memref<18x18x128xf32, #tpu.memory_space<vmem>>, vector<16x16x128xf32>
    %48 = vector.shape_cast %47 : vector<16x16x128xf32> to vector<256x128xf32>
    %c0_75 = arith.constant 0 : index
    %c896 = arith.constant 896 : index
    %49 = vector.load %arg10[%c0_75, %c896] : memref<256x1152xf32, #tpu.memory_space<vmem>>, vector<256x128xf32>
    tpu.vector_store %arg10[%c0_75, %c896], %48 {strides = array<i32>} : memref<256x1152xf32, #tpu.memory_space<vmem>>, vector<256x128xf32>,
    %c2_76 = arith.constant 2 : index
    %c2_77 = arith.constant 2 : index
    %c0_78 = arith.constant 0 : index
    %50 = vector.load %arg9[%c2_76, %c2_77, %c0_78] : memref<18x18x128xf32, #tpu.memory_space<vmem>>, vector<16x16x128xf32>
    %51 = vector.shape_cast %50 : vector<16x16x128xf32> to vector<256x128xf32>
    %c0_79 = arith.constant 0 : index
    %c1024 = arith.constant 1024 : index
    %52 = vector.load %arg10[%c0_79, %c1024] : memref<256x1152xf32, #tpu.memory_space<vmem>>, vector<256x128xf32>
    tpu.vector_store %arg10[%c0_79, %c1024], %51 {strides = array<i32>} : memref<256x1152xf32, #tpu.memory_space<vmem>>, vector<256x128xf32>,
    %c0_80 = arith.constant 0 : index
    %c0_81 = arith.constant 0 : index
    %53 = vector.load %arg10[%c0_80, %c0_81] : memref<256x1152xf32, #tpu.memory_space<vmem>>, vector<256x1152xf32>
    %c0_82 = arith.constant 0 : index
    %c0_83 = arith.constant 0 : index
    %54 = vector.load %arg4[%c0_82, %c0_83] : memref<1152x64xf32, #tpu.memory_space<vmem>>, vector<1152x64xf32>
    %cst_84 = arith.constant dense<0.000000e+00> : vector<256x64xf32>
    %55 = tpu.matmul %53, %54, %cst_84 {dimension_numbers = #tpu.dot_dimension_numbers<[1], [0], [0], [1], [0, 0, 1, 1], [], []>} : vector<256x1152xf32>, vector<1152x64xf32>, vector<256x64xf32> -> vector<256x64xf32>
    %c0_85 = arith.constant 0 : index
    %c0_86 = arith.constant 0 : index
    %56 = vector.load %arg5[%c0_85, %c0_86] : memref<1x64xf32, #tpu.memory_space<vmem>>, vector<1x64xf32>
    %57 = vector.broadcast %56 : vector<1x64xf32> to vector<256x64xf32>
    %58 = arith.addf %55, %57 : vector<256x64xf32>
    %cst_87 = arith.constant 0.000000e+00 : f32
    %59 = vector.broadcast %cst_87 : f32 to vector<256x64xf32>
    %60 = arith.maximumf %58, %59 : vector<256x64xf32>
    %61 = vector.shape_cast %60 : vector<256x64xf32> to vector<16x16x64xf32>
    %c1_88 = arith.constant 1 : index
    %c1_89 = arith.constant 1 : index
    %c0_90 = arith.constant 0 : index
    %62 = vector.load %arg11[%c1_88, %c1_89, %c0_90] : memref<18x18x64xf32, #tpu.memory_space<vmem>>, vector<16x16x64xf32>
    tpu.vector_store %arg11[%c1_88, %c1_89, %c0_90], %61 {strides = array<i32>} : memref<18x18x64xf32, #tpu.memory_space<vmem>>, vector<16x16x64xf32>,
    %c0_91 = arith.constant 0 : index
    %c0_92 = arith.constant 0 : index
    %c0_93 = arith.constant 0 : index
    %63 = vector.load %arg11[%c0_91, %c0_92, %c0_93] : memref<18x18x64xf32, #tpu.memory_space<vmem>>, vector<16x16x64xf32>
    %64 = vector.shape_cast %63 : vector<16x16x64xf32> to vector<256x64xf32>
    %c0_94 = arith.constant 0 : index
    %c0_95 = arith.constant 0 : index
    %65 = vector.load %arg12[%c0_94, %c0_95] : memref<256x576xf32, #tpu.memory_space<vmem>>, vector<256x64xf32>
    tpu.vector_store %arg12[%c0_94, %c0_95], %64 {strides = array<i32>} : memref<256x576xf32, #tpu.memory_space<vmem>>, vector<256x64xf32>,
    %c0_96 = arith.constant 0 : index
    %c1_97 = arith.constant 1 : index
    %c0_98 = arith.constant 0 : index
    %66 = vector.load %arg11[%c0_96, %c1_97, %c0_98] : memref<18x18x64xf32, #tpu.memory_space<vmem>>, vector<16x16x64xf32>
    %67 = vector.shape_cast %66 : vector<16x16x64xf32> to vector<256x64xf32>
    %c0_99 = arith.constant 0 : index
    %c64_100 = arith.constant 64 : index
    %68 = vector.load %arg12[%c0_99, %c64_100] : memref<256x576xf32, #tpu.memory_space<vmem>>, vector<256x64xf32>
    tpu.vector_store %arg12[%c0_99, %c64_100], %67 {strides = array<i32>} : memref<256x576xf32, #tpu.memory_space<vmem>>, vector<256x64xf32>,
    %c0_101 = arith.constant 0 : index
    %c2_102 = arith.constant 2 : index
    %c0_103 = arith.constant 0 : index
    %69 = vector.load %arg11[%c0_101, %c2_102, %c0_103] : memref<18x18x64xf32, #tpu.memory_space<vmem>>, vector<16x16x64xf32>
    %70 = vector.shape_cast %69 : vector<16x16x64xf32> to vector<256x64xf32>
    %c0_104 = arith.constant 0 : index
    %c128_105 = arith.constant 128 : index
    %71 = vector.load %arg12[%c0_104, %c128_105] : memref<256x576xf32, #tpu.memory_space<vmem>>, vector<256x64xf32>
    tpu.vector_store %arg12[%c0_104, %c128_105], %70 {strides = array<i32>} : memref<256x576xf32, #tpu.memory_space<vmem>>, vector<256x64xf32>,
    %c1_106 = arith.constant 1 : index
    %c0_107 = arith.constant 0 : index
    %c0_108 = arith.constant 0 : index
    %72 = vector.load %arg11[%c1_106, %c0_107, %c0_108] : memref<18x18x64xf32, #tpu.memory_space<vmem>>, vector<16x16x64xf32>
    %73 = vector.shape_cast %72 : vector<16x16x64xf32> to vector<256x64xf32>
    %c0_109 = arith.constant 0 : index
    %c192 = arith.constant 192 : index
    %74 = vector.load %arg12[%c0_109, %c192] : memref<256x576xf32, #tpu.memory_space<vmem>>, vector<256x64xf32>
    tpu.vector_store %arg12[%c0_109, %c192], %73 {strides = array<i32>} : memref<256x576xf32, #tpu.memory_space<vmem>>, vector<256x64xf32>,
    %c1_110 = arith.constant 1 : index
    %c1_111 = arith.constant 1 : index
    %c0_112 = arith.constant 0 : index
    %75 = vector.load %arg11[%c1_110, %c1_111, %c0_112] : memref<18x18x64xf32, #tpu.memory_space<vmem>>, vector<16x16x64xf32>
    %76 = vector.shape_cast %75 : vector<16x16x64xf32> to vector<256x64xf32>
    %c0_113 = arith.constant 0 : index
    %c256_114 = arith.constant 256 : index
    %77 = vector.load %arg12[%c0_113, %c256_114] : memref<256x576xf32, #tpu.memory_space<vmem>>, vector<256x64xf32>
    tpu.vector_store %arg12[%c0_113, %c256_114], %76 {strides = array<i32>} : memref<256x576xf32, #tpu.memory_space<vmem>>, vector<256x64xf32>,
    %c1_115 = arith.constant 1 : index
    %c2_116 = arith.constant 2 : index
    %c0_117 = arith.constant 0 : index
    %78 = vector.load %arg11[%c1_115, %c2_116, %c0_117] : memref<18x18x64xf32, #tpu.memory_space<vmem>>, vector<16x16x64xf32>
    %79 = vector.shape_cast %78 : vector<16x16x64xf32> to vector<256x64xf32>
    %c0_118 = arith.constant 0 : index
    %c320 = arith.constant 320 : index
    %80 = vector.load %arg12[%c0_118, %c320] : memref<256x576xf32, #tpu.memory_space<vmem>>, vector<256x64xf32>
    tpu.vector_store %arg12[%c0_118, %c320], %79 {strides = array<i32>} : memref<256x576xf32, #tpu.memory_space<vmem>>, vector<256x64xf32>,
    %c2_119 = arith.constant 2 : index
    %c0_120 = arith.constant 0 : index
    %c0_121 = arith.constant 0 : index
    %81 = vector.load %arg11[%c2_119, %c0_120, %c0_121] : memref<18x18x64xf32, #tpu.memory_space<vmem>>, vector<16x16x64xf32>
    %82 = vector.shape_cast %81 : vector<16x16x64xf32> to vector<256x64xf32>
    %c0_122 = arith.constant 0 : index
    %c384_123 = arith.constant 384 : index
    %83 = vector.load %arg12[%c0_122, %c384_123] : memref<256x576xf32, #tpu.memory_space<vmem>>, vector<256x64xf32>
    tpu.vector_store %arg12[%c0_122, %c384_123], %82 {strides = array<i32>} : memref<256x576xf32, #tpu.memory_space<vmem>>, vector<256x64xf32>,
    %c2_124 = arith.constant 2 : index
    %c1_125 = arith.constant 1 : index
    %c0_126 = arith.constant 0 : index
    %84 = vector.load %arg11[%c2_124, %c1_125, %c0_126] : memref<18x18x64xf32, #tpu.memory_space<vmem>>, vector<16x16x64xf32>
    %85 = vector.shape_cast %84 : vector<16x16x64xf32> to vector<256x64xf32>
    %c0_127 = arith.constant 0 : index
    %c448 = arith.constant 448 : index
    %86 = vector.load %arg12[%c0_127, %c448] : memref<256x576xf32, #tpu.memory_space<vmem>>, vector<256x64xf32>
    tpu.vector_store %arg12[%c0_127, %c448], %85 {strides = array<i32>} : memref<256x576xf32, #tpu.memory_space<vmem>>, vector<256x64xf32>,
    %c2_128 = arith.constant 2 : index
    %c2_129 = arith.constant 2 : index
    %c0_130 = arith.constant 0 : index
    %87 = vector.load %arg11[%c2_128, %c2_129, %c0_130] : memref<18x18x64xf32, #tpu.memory_space<vmem>>, vector<16x16x64xf32>
    %88 = vector.shape_cast %87 : vector<16x16x64xf32> to vector<256x64xf32>
    %c0_131 = arith.constant 0 : index
    %c512_132 = arith.constant 512 : index
    %89 = vector.load %arg12[%c0_131, %c512_132] : memref<256x576xf32, #tpu.memory_space<vmem>>, vector<256x64xf32>
    tpu.vector_store %arg12[%c0_131, %c512_132], %88 {strides = array<i32>} : memref<256x576xf32, #tpu.memory_space<vmem>>, vector<256x64xf32>,
    %c0_133 = arith.constant 0 : index
    %c0_134 = arith.constant 0 : index
    %90 = vector.load %arg12[%c0_133, %c0_134] : memref<256x576xf32, #tpu.memory_space<vmem>>, vector<256x576xf32>
    %c0_135 = arith.constant 0 : index
    %c0_136 = arith.constant 0 : index
    %91 = vector.load %arg6[%c0_135, %c0_136] : memref<576x64xf32, #tpu.memory_space<vmem>>, vector<576x64xf32>
    %cst_137 = arith.constant dense<0.000000e+00> : vector<256x64xf32>
    %92 = tpu.matmul %90, %91, %cst_137 {dimension_numbers = #tpu.dot_dimension_numbers<[1], [0], [0], [1], [0, 0, 1, 1], [], []>} : vector<256x576xf32>, vector<576x64xf32>, vector<256x64xf32> -> vector<256x64xf32>
    %c0_138 = arith.constant 0 : index
    %c0_139 = arith.constant 0 : index
    %93 = vector.load %arg7[%c0_138, %c0_139] : memref<1x64xf32, #tpu.memory_space<vmem>>, vector<1x64xf32>
    %94 = vector.broadcast %93 : vector<1x64xf32> to vector<256x64xf32>
    %95 = arith.addf %92, %94 : vector<256x64xf32>
    %cst_140 = arith.constant 0.000000e+00 : f32
    %96 = vector.broadcast %cst_140 : f32 to vector<256x64xf32>
    %97 = arith.maximumf %95, %96 : vector<256x64xf32>
    %c0_141 = arith.constant 0 : index
    %c0_142 = arith.constant 0 : index
    %c0_143 = arith.constant 0 : index
    %98 = vector.load %arg8[%c0_141, %c0_142, %c0_143] : memref<1x256x64xf32, #tpu.memory_space<vmem>>, vector<1x256x64xf32>
    %99 = vector.shape_cast %98 : vector<1x256x64xf32> to vector<256x64xf32>
    %100 = vector.shape_cast %97 : vector<256x64xf32> to vector<1x256x64xf32>
    tpu.vector_store %arg8[%c0_141, %c0_142, %c0_143], %100 {strides = array<i32>} : memref<1x256x64xf32, #tpu.memory_space<vmem>>, vector<1x256x64xf32>,
    return
  }
  func.func @transform_0(%arg0: i32) -> (i32, i32, i32, i32) {
    %c0_i32 = arith.constant 0 : i32
    %c0_i32_0 = arith.constant 0 : i32
    %c0_i32_1 = arith.constant 0 : i32
    %c0_i32_2 = arith.constant 0 : i32
    return %arg0, %c0_i32, %c0_i32_0, %c0_i32_1 : i32, i32, i32, i32
  }
  func.func @transform_1(%arg0: i32) -> (i32, i32, i32, i32) {
    %c0_i32 = arith.constant 0 : i32
    %c0_i32_0 = arith.constant 0 : i32
    %c0_i32_1 = arith.constant 0 : i32
    %c0_i32_2 = arith.constant 0 : i32
    return %arg0, %c0_i32, %c0_i32_0, %c0_i32_1 : i32, i32, i32, i32
  }
  func.func @transform_2(%arg0: i32) -> (i32, i32) {
    %c0_i32 = arith.constant 0 : i32
    %c0_i32_0 = arith.constant 0 : i32
    %c0_i32_1 = arith.constant 0 : i32
    return %c0_i32, %c0_i32_0 : i32, i32
  }
  func.func @transform_3(%arg0: i32) -> (i32, i32) {
    %c0_i32 = arith.constant 0 : i32
    %c0_i32_0 = arith.constant 0 : i32
    %c0_i32_1 = arith.constant 0 : i32
    return %c0_i32, %c0_i32_0 : i32, i32
  }
  func.func @transform_4(%arg0: i32) -> (i32, i32) {
    %c0_i32 = arith.constant 0 : i32
    %c0_i32_0 = arith.constant 0 : i32
    %c0_i32_1 = arith.constant 0 : i32
    return %c0_i32, %c0_i32_0 : i32, i32
  }
  func.func @transform_5(%arg0: i32) -> (i32, i32) {
    %c0_i32 = arith.constant 0 : i32
    %c0_i32_0 = arith.constant 0 : i32
    %c0_i32_1 = arith.constant 0 : i32
    return %c0_i32, %c0_i32_0 : i32, i32
  }
  func.func @transform_6(%arg0: i32) -> (i32, i32) {
    %c0_i32 = arith.constant 0 : i32
    %c0_i32_0 = arith.constant 0 : i32
    %c0_i32_1 = arith.constant 0 : i32
    return %c0_i32, %c0_i32_0 : i32, i32
  }
  func.func @transform_7(%arg0: i32) -> (i32, i32, i32) {
    %c0_i32 = arith.constant 0 : i32
    %c0_i32_0 = arith.constant 0 : i32
    %c0_i32_1 = arith.constant 0 : i32
    return %arg0, %c0_i32, %c0_i32_0 : i32, i32, i32
  }
}

</mosaic_0001>

<llo_original>
// kernel: tpu_custom_call.1
$region0: #{tpu_custom_call.1}
  #allocation0 [shape = 'u32[]', space=smem, size = 0x4, offset = 0x4, fixed_abs, tag = 'smem constant byte address 0x4 - core index']
  #allocation1 [shape = 'u32[72,128]{1,0:T(1,128)}', space=vmem, size = 0x9000, scoped, tag = 'internal scratch']
  #allocation2 [shape = 'f32[18,18,128]{2,1,0:T(8,128)}', space=vmem, size = 0x36000, scoped, tag = 'scratch operand']
  #allocation3 [shape = 'f32[256,1152]{1,0:T(8,128)}', space=vmem, size = 0x120000, scoped, tag = 'scratch operand']
  #allocation4 [shape = 'f32[18,18,64]{2,1,0:T(8,128)}', space=vmem, size = 0x36000, scoped, tag = 'scratch operand']
  #allocation5 [shape = 'f32[256,576]{1,0:T(8,128)}', space=vmem, size = 0xa0000, scoped, tag = 'scratch operand']
  %s0 = inlined_call_operand.vmem [shape: f32[2,8,8,64], index: 0, kind: input, shape index: {}]
  %s1 = inlined_call_operand.vmem [shape: f32[2,16,16,64], index: 1, kind: input, shape index: {}]
  %s2 = inlined_call_operand.vmem [shape: f32[256,64], index: 2, kind: input, shape index: {}]
  %s3 = inlined_call_operand.vmem [shape: f32[1152,64], index: 3, kind: input, shape index: {}]
  %s4 = inlined_call_operand.vmem [shape: f32[1,64], index: 4, kind: input, shape index: {}]
  %s5 = inlined_call_operand.vmem [shape: f32[576,64], index: 5, kind: input, shape index: {}]
  %s6 = inlined_call_operand.vmem [shape: f32[1,64], index: 6, kind: input, shape index: {}]
  %s7 = inlined_call_operand.vmem [shape: f32[2,256,64], index: 7, kind: output, shape index: {}]
  %s8 = sld [smem:[#allocation0]]
  $region61: #{tpu_custom_call.1} parent=0
    _
  %s10 = ssub.s32 1, %s8
  %s11 = scalar_select 0, %s10, %s8
  loop: start=0, step=1, limit=4
  $region2: #{tpu_custom_call.1} parent=0 // loop_pre_header
    _
  $region3: #{tpu_custom_call.1} parent=0 // loop_header
    %s13 = sphi 0, %s17
    %p14 = scmp.ge.s32.totalorder %s13, 4
    %s23 = sphi 0, %s25
    %s26 = sphi 0, %s23
    %s27 = sphi 0, %s26
    %s43 = sphi 0, %s27
    %s49 = sphi 0, %s51
    %s52 = sphi 0, %s49
    %s53 = sphi 0, %s52
    %s69 = sphi 0, %s53
    %s73 = sphi 0, %s73
    %s75 = sphi 0, %s73
    %s76 = sphi 0, %s75
    %s90 = sphi 0, %s76
    %s94 = sphi 0, %s94
    %s96 = sphi 0, %s94
    %s97 = sphi 0, %s96
    %s111 = sphi 0, %s97
    %s115 = sphi 0, %s115
    %s117 = sphi 0, %s115
    %s118 = sphi 0, %s117
    %s132 = sphi 0, %s118
    %s136 = sphi 0, %s136
    %s138 = sphi 0, %s136
    %s139 = sphi 0, %s138
    %s153 = sphi 0, %s139
    %s157 = sphi 0, %s157
    %s159 = sphi 0, %s157
    %s160 = sphi 0, %s159
    %s174 = sphi 0, %s160
    %s180 = sphi 0, %s182
    %s183 = sphi 0, %s180
    %s184 = sphi 0, %s183
    %s200 = sphi 0, %s184
  $region4: #{tpu_custom_call.1} parent=0 // loop_header_branch
    %16 = sbr.rel (%p14) target = $region8
  $region5: #{tpu_custom_call.1} parent=0 // loop_body
    %s18 = ssub.s32 %s13, 1
    %s19 = ssub.s32 %s13, 2
    %s20 = sadd.s32 %s13, 1
    %s21 = ssub.s32 %s13, %s20
    %p22 = scmp.eq.s32.totalorder %s21, 0
    %s24 = sadd.s32 %s23, 1
    %s25 = scalar_select %p22, %s23, %s24
    %p28 = pneg %p22
    %p29 = scmp.eq.s32.totalorder %s13, 1
    %p30 = por %p28, %p29
    %p31 = scmp.ne.s32.totalorder %s23, %s26
    %p32 = scmp.eq.s32.totalorder %s13, 0
    %p33 = por %p31, %p32
    %p34 = scmp.ne.s32.totalorder %s23, %s26
    %p35 = scmp.eq.s32.totalorder %s18, 1
    %p36 = por %p34, %p35
    %p37 = scmp.ne.s32.totalorder %s26, %s27
    %p38 = scmp.eq.s32.totalorder %s18, 0
    %p39 = por %p37, %p38
    %p40 = scmp.ne.s32.totalorder %s26, %s27
    %p41 = scmp.eq.s32.totalorder %s19, 1
    %p42 = por %p40, %p41
    %p44 = scmp.ne.s32.totalorder %s27, %s43
    %p45 = scmp.eq.s32.totalorder %s19, 0
    %p46 = por %p44, %p45
    %s47 = ssub.s32 %s13, %s20
    %p48 = scmp.eq.s32.totalorder %s47, 0
    %s50 = sadd.s32 %s49, 1
    %s51 = scalar_select %p48, %s49, %s50
    %p54 = pneg %p48
    %p55 = scmp.eq.s32.totalorder %s13, 1
    %p56 = por %p54, %p55
    %p57 = scmp.ne.s32.totalorder %s49, %s52
    %p58 = scmp.eq.s32.totalorder %s13, 0
    %p59 = por %p57, %p58
    %p60 = scmp.ne.s32.totalorder %s49, %s52
    %p61 = scmp.eq.s32.totalorder %s18, 1
    %p62 = por %p60, %p61
    %p63 = scmp.ne.s32.totalorder %s52, %s53
    %p64 = scmp.eq.s32.totalorder %s18, 0
    %p65 = por %p63, %p64
    %p66 = scmp.ne.s32.totalorder %s52, %s53
    %p67 = scmp.eq.s32.totalorder %s19, 1
    %p68 = por %p66, %p67
    %p70 = scmp.ne.s32.totalorder %s53, %s69
    %p71 = scmp.eq.s32.totalorder %s19, 0
    %p72 = por %p70, %p71
    %s74 = sadd.s32 %s73, 1
    %p77 = scmp.eq.s32.totalorder %s13, 1
    %p78 = scmp.ne.s32.totalorder %s73, %s75
    %p79 = scmp.eq.s32.totalorder %s13, 0
    %p80 = por %p78, %p79
    %p81 = scmp.ne.s32.totalorder %s73, %s75
    %p82 = scmp.eq.s32.totalorder %s18, 1
    %p83 = por %p81, %p82
    %p84 = scmp.ne.s32.totalorder %s75, %s76
    %p85 = scmp.eq.s32.totalorder %s18, 0
    %p86 = por %p84, %p85
    %p87 = scmp.ne.s32.totalorder %s75, %s76
    %p88 = scmp.eq.s32.totalorder %s19, 1
    %p89 = por %p87, %p88
    %p91 = scmp.ne.s32.totalorder %s76, %s90
    %p92 = scmp.eq.s32.totalorder %s19, 0
    %p93 = por %p91, %p92
    %s95 = sadd.s32 %s94, 1
    %p98 = scmp.eq.s32.totalorder %s13, 1
    %p99 = scmp.ne.s32.totalorder %s94, %s96
    %p100 = scmp.eq.s32.totalorder %s13, 0
    %p101 = por %p99, %p100
    %p102 = scmp.ne.s32.totalorder %s94, %s96
    %p103 = scmp.eq.s32.totalorder %s18, 1
    %p104 = por %p102, %p103
    %p105 = scmp.ne.s32.totalorder %s96, %s97
    %p106 = scmp.eq.s32.totalorder %s18, 0
    %p107 = por %p105, %p106
    %p108 = scmp.ne.s32.totalorder %s96, %s97
    %p109 = scmp.eq.s32.totalorder %s19, 1
    %p110 = por %p108, %p109
    %p112 = scmp.ne.s32.totalorder %s97, %s111
    %p113 = scmp.eq.s32.totalorder %s19, 0
    %p114 = por %p112, %p113
    %s116 = sadd.s32 %s115, 1
    %p119 = scmp.eq.s32.totalorder %s13, 1
    %p120 = scmp.ne.s32.totalorder %s115, %s117
    %p121 = scmp.eq.s32.totalorder %s13, 0
    %p122 = por %p120, %p121
    %p123 = scmp.ne.s32.totalorder %s115, %s117
    %p124 = scmp.eq.s32.totalorder %s18, 1
    %p125 = por %p123, %p124
    %p126 = scmp.ne.s32.totalorder %s117, %s118
    %p127 = scmp.eq.s32.totalorder %s18, 0
    %p128 = por %p126, %p127
    %p129 = scmp.ne.s32.totalorder %s117, %s118
    %p130 = scmp.eq.s32.totalorder %s19, 1
    %p131 = por %p129, %p130
    %p133 = scmp.ne.s32.totalorder %s118, %s132
    %p134 = scmp.eq.s32.totalorder %s19, 0
    %p135 = por %p133, %p134
    %s137 = sadd.s32 %s136, 1
    %p140 = scmp.eq.s32.totalorder %s13, 1
    %p141 = scmp.ne.s32.totalorder %s136, %s138
    %p142 = scmp.eq.s32.totalorder %s13, 0
    %p143 = por %p141, %p142
    %p144 = scmp.ne.s32.totalorder %s136, %s138
    %p145 = scmp.eq.s32.totalorder %s18, 1
    %p146 = por %p144, %p145
    %p147 = scmp.ne.s32.totalorder %s138, %s139
    %p148 = scmp.eq.s32.totalorder %s18, 0
    %p149 = por %p147, %p148
    %p150 = scmp.ne.s32.totalorder %s138, %s139
    %p151 = scmp.eq.s32.totalorder %s19, 1
    %p152 = por %p150, %p151
    %p154 = scmp.ne.s32.totalorder %s139, %s153
    %p155 = scmp.eq.s32.totalorder %s19, 0
    %p156 = por %p154, %p155
    %s158 = sadd.s32 %s157, 1
    %p161 = scmp.eq.s32.totalorder %s13, 1
    %p162 = scmp.ne.s32.totalorder %s157, %s159
    %p163 = scmp.eq.s32.totalorder %s13, 0
    %p164 = por %p162, %p163
    %p165 = scmp.ne.s32.totalorder %s157, %s159
    %p166 = scmp.eq.s32.totalorder %s18, 1
    %p167 = por %p165, %p166
    %p168 = scmp.ne.s32.totalorder %s159, %s160
    %p169 = scmp.eq.s32.totalorder %s18, 0
    %p170 = por %p168, %p169
    %p171 = scmp.ne.s32.totalorder %s159, %s160
    %p172 = scmp.eq.s32.totalorder %s19, 1
    %p173 = por %p171, %p172
    %p175 = scmp.ne.s32.totalorder %s160, %s174
    %p176 = scmp.eq.s32.totalorder %s19, 0
    %p177 = por %p175, %p176
    %s178 = ssub.s32 %s13, %s20
    %p179 = scmp.eq.s32.totalorder %s178, 0
    %s181 = sadd.s32 %s180, 1
    %s182 = scalar_select %p179, %s180, %s181
    %p185 = pneg %p179
    %p186 = scmp.eq.s32.totalorder %s13, 1
    %p187 = por %p185, %p186
    %p188 = scmp.ne.s32.totalorder %s180, %s183
    %p189 = scmp.eq.s32.totalorder %s13, 0
    %p190 = por %p188, %p189
    %p191 = scmp.ne.s32.totalorder %s180, %s183
    %p192 = scmp.eq.s32.totalorder %s18, 1
    %p193 = por %p191, %p192
    %p194 = scmp.ne.s32.totalorder %s183, %s184
    %p195 = scmp.eq.s32.totalorder %s18, 0
    %p196 = por %p194, %p195
    %p197 = scmp.ne.s32.totalorder %s183, %s184
    %p198 = scmp.eq.s32.totalorder %s19, 1
    %p199 = por %p197, %p198
    %p201 = scmp.ne.s32.totalorder %s184, %s200
    %p202 = scmp.eq.s32.totalorder %s19, 0
    %p203 = por %p201, %p202
    %p204 = scmp.le.s32.totalorder 1, %s13
    %p205 = scmp.lt.s32.totalorder %s13, 3
    %p206 = pnand %p204, %p205
    %p207 = pneg %p206
    // Predicated region
    $region9: #{tpu_custom_call.1} parent=5 // pred_check
      _
    $region10: #{tpu_custom_call.1} parent=5 // pred_check_branch
      %209 = sbr.rel (%p206) target = $region12
    $region11: #{tpu_custom_call.1} parent=5 // pred_region
      %s210 = ssub.s32 %s13, 1
      // Predicated region
      $region13: #{tpu_custom_call.1} parent=11 // pred_check
        %p211 = pneg %p86
      $region14: #{tpu_custom_call.1} parent=11 // pred_check_branch
        %213 = sbr.rel (%p211) target = $region16
      $region15: #{tpu_custom_call.1} parent=11 // pred_region
        _
      $region16: #{tpu_custom_call.1} parent=11 // pred_fallthru
        _
      // Predicated region
      $region17: #{tpu_custom_call.1} parent=11 // pred_check
        %p214 = pneg %p107
      $region18: #{tpu_custom_call.1} parent=11 // pred_check_branch
        %216 = sbr.rel (%p214) target = $region20
      $region19: #{tpu_custom_call.1} parent=11 // pred_region
        _
      $region20: #{tpu_custom_call.1} parent=11 // pred_fallthru
        _
      // Predicated region
      $region21: #{tpu_custom_call.1} parent=11 // pred_check
        %p217 = pneg %p128
      $region22: #{tpu_custom_call.1} parent=11 // pred_check_branch
        %219 = sbr.rel (%p217) target = $region24
      $region23: #{tpu_custom_call.1} parent=11 // pred_region
        _
      $region24: #{tpu_custom_call.1} parent=11 // pred_fallthru
        _
      // Predicated region
      $region25: #{tpu_custom_call.1} parent=11 // pred_check
        %p220 = pneg %p149
      $region26: #{tpu_custom_call.1} parent=11 // pred_check_branch
        %222 = sbr.rel (%p220) target = $region28
      $region27: #{tpu_custom_call.1} parent=11 // pred_region
        _
      $region28: #{tpu_custom_call.1} parent=11 // pred_fallthru
        _
      // Predicated region
      $region29: #{tpu_custom_call.1} parent=11 // pred_check
        %p223 = pneg %p170
      $region30: #{tpu_custom_call.1} parent=11 // pred_check_branch
        %225 = sbr.rel (%p223) target = $region32
      $region31: #{tpu_custom_call.1} parent=11 // pred_region
        _
      $region32: #{tpu_custom_call.1} parent=11 // pred_fallthru
        _
    $region12: #{tpu_custom_call.1} parent=5 // pred_fallthru
      _
    %p226 = scmp.lt.s32.totalorder %s13, 2
    // Predicated region
    $region33: #{tpu_custom_call.1} parent=5 // pred_check
      %p227 = pneg %p226
    $region34: #{tpu_custom_call.1} parent=5 // pred_check_branch
      %229 = sbr.rel (%p227) target = $region36
    $region35: #{tpu_custom_call.1} parent=5 // pred_region
      // Predicated region
      $region37: #{tpu_custom_call.1} parent=35 // pred_check
        %p230 = pneg %p33
      $region38: #{tpu_custom_call.1} parent=35 // pred_check_branch
        %232 = sbr.rel (%p230) target = $region40
      $region39: #{tpu_custom_call.1} parent=35 // pred_region
        %p233 = scmp.lt.s32.totalorder %s13, 1
        %s234 = scalar_select %p233, %s13, 1
        %s235 = smul.addr %s234, 8
        %s236 = smul.addr %s235, 8
        %s237 = scalar_lea.vmem %s0, %s236
      $region40: #{tpu_custom_call.1} parent=35 // pred_fallthru
        _
      // Predicated region
      $region41: #{tpu_custom_call.1} parent=35 // pred_check
        %p238 = pneg %p59
      $region42: #{tpu_custom_call.1} parent=35 // pred_check_branch
        %240 = sbr.rel (%p238) target = $region44
      $region43: #{tpu_custom_call.1} parent=35 // pred_region
        %p241 = scmp.lt.s32.totalorder %s13, 1
        %s242 = scalar_select %p241, %s13, 1
        %s243 = smul.addr %s242, 32
        %s244 = smul.addr %s243, 8
        %s245 = scalar_lea.vmem %s1, %s244
      $region44: #{tpu_custom_call.1} parent=35 // pred_fallthru
        _
    $region36: #{tpu_custom_call.1} parent=5 // pred_fallthru
      _
    %p246 = scmp.le.s32.totalorder 1, %s13
    %p247 = scmp.lt.s32.totalorder %s13, 3
    %p248 = pnand %p246, %p247
    %p249 = pneg %p248
    // Predicated region
    $region45: #{tpu_custom_call.1} parent=5 // pred_check
      _
    $region46: #{tpu_custom_call.1} parent=5 // pred_check_branch
      %251 = sbr.rel (%p248) target = $region48
    $region47: #{tpu_custom_call.1} parent=5 // pred_region
      %s252 = ssub.s32 %s13, 1
      %p253 = scmp.lt.s32.totalorder %s18, 1
      %s254 = scalar_select %p253, %s18, 1
      %s255 = smul.addr %s254, 8
      %s256 = smul.addr %s255, 8
      %s257 = scalar_lea.vmem %s0, %s256
      %p258 = pneg %p39
      %p259 = pneg %p36
      %p260 = scmp.lt.s32.totalorder %s18, 1
      %s261 = scalar_select %p260, %s18, 1
      %s262 = smul.addr %s261, 32
      %s263 = smul.addr %s262, 8
      %s264 = scalar_lea.vmem %s1, %s263
      %p265 = pneg %p65
      %p266 = pneg %p62
      %p267 = pneg %p86
      %p268 = pneg %p83
      %p269 = pneg %p107
      %p270 = pneg %p104
      %p271 = pneg %p128
      %p272 = pneg %p125
      %p273 = pneg %p149
      %p274 = pneg %p146
      %p275 = pneg %p170
      %p276 = pneg %p167
      %p277 = pneg %p196
      %p278 = pneg %p193
      %p279 = scmp.lt.s32.totalorder %s18, 1
      %s280 = scalar_select %p279, %s18, 1
      %s281 = smul.addr %s280, 32
      %s282 = smul.addr %s281, 8
      %s283 = scalar_lea.vmem %s7, %s282
      %p284 = scmp.lt.s32.totalorder %s18, 1
      %s285 = scalar_select %p284, %s18, 1
      %s286 = smul.addr %s285, 8
      %s287 = smul.addr %s286, 8
      %s288 = scalar_lea.vmem %s0, %s287
      %p289 = scmp.lt.s32.totalorder %s18, 1
      %s290 = scalar_select %p289, %s18, 1
      %s291 = smul.addr %s290, 32
      %s292 = smul.addr %s291, 8
      %s293 = scalar_lea.vmem %s1, %s292
      %p294 = scmp.lt.s32.totalorder %s18, 1
      %s295 = scalar_select %p294, %s18, 1
      %s296 = smul.addr %s295, 32
      %s297 = smul.addr %s296, 8
      %s298 = scalar_lea.vmem %s7, %s297
      %299 = vst [vmem:[#allocation2] sm:$0xff] 0.0
      %300 = vst [vmem:[#allocation2 + $0x8] sm:$0xff] 0.0
      %301 = vst [vmem:[#allocation2 + $0x10] sm:$0x3] 0.0
      %s302 = scalar_lea.vmem [#allocation2], 408
      %303 = vst [vmem:[%s302] sm:$0xff] 0.0
      %304 = vst [vmem:[%s302 + $0x8] sm:$0xff] 0.0
      %305 = vst [vmem:[%s302 + $0x10] sm:$0x3] 0.0
      %306 = vst [vmem:[#allocation2] sm:$0x1] 0.0
      %307 = vst [vmem:[#allocation2 + $0x18] sm:$0x1] 0.0
      %308 = vst [vmem:[#allocation2 + $0x30] sm:$0x1] 0.0
      %309 = vst [vmem:[#allocation2 + $0x48] sm:$0x1] 0.0
      %310 = vst [vmem:[#allocation2 + $0x60] sm:$0x1] 0.0
      %311 = vst [vmem:[#allocation2 + $0x78] sm:$0x1] 0.0
      %312 = vst [vmem:[#allocation2 + $0x90] sm:$0x1] 0.0
      %313 = vst [vmem:[#allocation2 + $0xa8] sm:$0x1] 0.0
      %314 = vst [vmem:[#allocation2 + $0xc0] sm:$0x1] 0.0
      %315 = vst [vmem:[#allocation2 + $0xd8] sm:$0x1] 0.0
      %316 = vst [vmem:[#allocation2 + $0xf0] sm:$0x1] 0.0
      %317 = vst [vmem:[#allocation2 + $0x108] sm:$0x1] 0.0
      %318 = vst [vmem:[#allocation2 + $0x120] sm:$0x1] 0.0
      %319 = vst [vmem:[#allocation2 + $0x138] sm:$0x1] 0.0
      %320 = vst [vmem:[#allocation2 + $0x150] sm:$0x1] 0.0
      %321 = vst [vmem:[#allocation2 + $0x168] sm:$0x1] 0.0
      %322 = vst [vmem:[#allocation2 + $0x180] sm:$0x1] 0.0
      %323 = vst [vmem:[#allocation2 + $0x198] sm:$0x1] 0.0
      %324 = vst [vmem:[#allocation2 + $0x11] sm:$0x1] 0.0
      %325 = vst [vmem:[#allocation2 + $0x29] sm:$0x1] 0.0
      %326 = vst [vmem:[#allocation2 + $0x41] sm:$0x1] 0.0
      %327 = vst [vmem:[#allocation2 + $0x59] sm:$0x1] 0.0
      %328 = vst [vmem:[#allocation2 + $0x71] sm:$0x1] 0.0
      %329 = vst [vmem:[#allocation2 + $0x89] sm:$0x1] 0.0
      %330 = vst [vmem:[#allocation2 + $0xa1] sm:$0x1] 0.0
      %331 = vst [vmem:[#allocation2 + $0xb9] sm:$0x1] 0.0
      %332 = vst [vmem:[#allocation2 + $0xd1] sm:$0x1] 0.0
      %333 = vst [vmem:[#allocation2 + $0xe9] sm:$0x1] 0.0
      %334 = vst [vmem:[#allocation2 + $0x101] sm:$0x1] 0.0
      %335 = vst [vmem:[#allocation2 + $0x119] sm:$0x1] 0.0
      %336 = vst [vmem:[#allocation2 + $0x131] sm:$0x1] 0.0
      %337 = vst [vmem:[#allocation2 + $0x149] sm:$0x1] 0.0
      %338 = vst [vmem:[#allocation2 + $0x161] sm:$0x1] 0.0
      %339 = vst [vmem:[#allocation2 + $0x179] sm:$0x1] 0.0
      %340 = vst [vmem:[#allocation2 + $0x191] sm:$0x1] 0.0
      %341 = vst [vmem:[#allocation2 + $0x1a9] sm:$0x1] 0.0
      %vm342 = vcmask 523264
      %343 = vst.msk [vmem:[#allocation4] sm:$0xff] %vm342, 0.0
      %344 = vst.msk [vmem:[#allocation4 + $0x8] sm:$0xff] %vm342, 0.0
      %vm345 = vcmask 517120
      %346 = vst.msk [vmem:[#allocation4 + $0x10] sm:$0x3] %vm345, 0.0
      %s347 = scalar_lea.vmem [#allocation4], 408
      %348 = vst.msk [vmem:[%s347] sm:$0xff] %vm342, 0.0
      %349 = vst.msk [vmem:[%s347 + $0x8] sm:$0xff] %vm342, 0.0
      %350 = vst.msk [vmem:[%s347 + $0x10] sm:$0x3] %vm345, 0.0
      %vm351 = vcmask 516096
      %352 = vst.msk [vmem:[#allocation4] sm:$0x1] %vm351, 0.0
      %353 = vst.msk [vmem:[#allocation4 + $0x18] sm:$0x1] %vm351, 0.0
      %354 = vst.msk [vmem:[#allocation4 + $0x30] sm:$0x1] %vm351, 0.0
      %355 = vst.msk [vmem:[#allocation4 + $0x48] sm:$0x1] %vm351, 0.0
      %356 = vst.msk [vmem:[#allocation4 + $0x60] sm:$0x1] %vm351, 0.0
      %357 = vst.msk [vmem:[#allocation4 + $0x78] sm:$0x1] %vm351, 0.0
      %358 = vst.msk [vmem:[#allocation4 + $0x90] sm:$0x1] %vm351, 0.0
      %359 = vst.msk [vmem:[#allocation4 + $0xa8] sm:$0x1] %vm351, 0.0
      %360 = vst.msk [vmem:[#allocation4 + $0xc0] sm:$0x1] %vm351, 0.0
      %361 = vst.msk [vmem:[#allocation4 + $0xd8] sm:$0x1] %vm351, 0.0
      %362 = vst.msk [vmem:[#allocation4 + $0xf0] sm:$0x1] %vm351, 0.0
      %363 = vst.msk [vmem:[#allocation4 + $0x108] sm:$0x1] %vm351, 0.0
      %364 = vst.msk [vmem:[#allocation4 + $0x120] sm:$0x1] %vm351, 0.0
      %365 = vst.msk [vmem:[#allocation4 + $0x138] sm:$0x1] %vm351, 0.0
      %366 = vst.msk [vmem:[#allocation4 + $0x150] sm:$0x1] %vm351, 0.0
      %367 = vst.msk [vmem:[#allocation4 + $0x168] sm:$0x1] %vm351, 0.0
      %368 = vst.msk [vmem:[#allocation4 + $0x180] sm:$0x1] %vm351, 0.0
      %369 = vst.msk [vmem:[#allocation4 + $0x198] sm:$0x1] %vm351, 0.0
      %370 = vst.msk [vmem:[#allocation4 + $0x11] sm:$0x1] %vm351, 0.0
      %371 = vst.msk [vmem:[#allocation4 + $0x29] sm:$0x1] %vm351, 0.0
      %372 = vst.msk [vmem:[#allocation4 + $0x41] sm:$0x1] %vm351, 0.0
      %373 = vst.msk [vmem:[#allocation4 + $0x59] sm:$0x1] %vm351, 0.0
      %374 = vst.msk [vmem:[#allocation4 + $0x71] sm:$0x1] %vm351, 0.0
      %375 = vst.msk [vmem:[#allocation4 + $0x89] sm:$0x1] %vm351, 0.0
      %376 = vst.msk [vmem:[#allocation4 + $0xa1] sm:$0x1] %vm351, 0.0
      %377 = vst.msk [vmem:[#allocation4 + $0xb9] sm:$0x1] %vm351, 0.0
      %378 = vst.msk [vmem:[#allocation4 + $0xd1] sm:$0x1] %vm351, 0.0
      %379 = vst.msk [vmem:[#allocation4 + $0xe9] sm:$0x1] %vm351, 0.0
      %380 = vst.msk [vmem:[#allocation4 + $0x101] sm:$0x1] %vm351, 0.0
      %381 = vst.msk [vmem:[#allocation4 + $0x119] sm:$0x1] %vm351, 0.0
      %382 = vst.msk [vmem:[#allocation4 + $0x131] sm:$0x1] %vm351, 0.0
      %383 = vst.msk [vmem:[#allocation4 + $0x149] sm:$0x1] %vm351, 0.0
      %384 = vst.msk [vmem:[#allocation4 + $0x161] sm:$0x1] %vm351, 0.0
      %385 = vst.msk [vmem:[#allocation4 + $0x179] sm:$0x1] %vm351, 0.0
      %386 = vst.msk [vmem:[#allocation4 + $0x191] sm:$0x1] %vm351, 0.0
      %387 = vst.msk [vmem:[#allocation4 + $0x1a9] sm:$0x1] %vm351, 0.0
      %v388 = vld [vmem:[%s288] sm:$0xff]
      %v389 = vld [vmem:[%s288 + $0x8] sm:$0xff]
      %v390 = vld [vmem:[%s288 + $0x10] sm:$0xff]
      %v391 = vld [vmem:[%s288 + $0x18] sm:$0xff]
      %v392 = vld [vmem:[%s288 + $0x20] sm:$0xff]
      %v393 = vld [vmem:[%s288 + $0x28] sm:$0xff]
      %v394 = vld [vmem:[%s288 + $0x30] sm:$0xff]
      %v395 = vld [vmem:[%s288 + $0x38] sm:$0xff]
      %v396 = vld [vmem:[%s2] sm:$0xff]
      %v397 = vld [vmem:[%s2 + $0x8] sm:$0xff]
      %v398 = vld [vmem:[%s2 + $0x10] sm:$0xff]
      %v399 = vld [vmem:[%s2 + $0x18] sm:$0xff]
      %v400 = vld [vmem:[%s2 + $0x20] sm:$0xff]
      %v401 = vld [vmem:[%s2 + $0x28] sm:$0xff]
      %v402 = vld [vmem:[%s2 + $0x30] sm:$0xff]
      %v403 = vld [vmem:[%s2 + $0x38] sm:$0xff]
      %v404 = vld [vmem:[%s2 + $0x40] sm:$0xff]
      %v405 = vld [vmem:[%s2 + $0x48] sm:$0xff]
      %v406 = vld [vmem:[%s2 + $0x50] sm:$0xff]
      %v407 = vld [vmem:[%s2 + $0x58] sm:$0xff]
      %v408 = vld [vmem:[%s2 + $0x60] sm:$0xff]
      %v409 = vld [vmem:[%s2 + $0x68] sm:$0xff]
      %v410 = vld [vmem:[%s2 + $0x70] sm:$0xff]
      %v411 = vld [vmem:[%s2 + $0x78] sm:$0xff]
      %v412 = vld [vmem:[%s2 + $0x80] sm:$0xff]
      %v413 = vld [vmem:[%s2 + $0x88] sm:$0xff]
      %v414 = vld [vmem:[%s2 + $0x90] sm:$0xff]
      %v415 = vld [vmem:[%s2 + $0x98] sm:$0xff]
      %v416 = vld [vmem:[%s2 + $0xa0] sm:$0xff]
      %v417 = vld [vmem:[%s2 + $0xa8] sm:$0xff]
      %v418 = vld [vmem:[%s2 + $0xb0] sm:$0xff]
      %v419 = vld [vmem:[%s2 + $0xb8] sm:$0xff]
      %v420 = vld [vmem:[%s2 + $0xc0] sm:$0xff]
      %v421 = vld [vmem:[%s2 + $0xc8] sm:$0xff]
      %v422 = vld [vmem:[%s2 + $0xd0] sm:$0xff]
      %v423 = vld [vmem:[%s2 + $0xd8] sm:$0xff]
      %v424 = vld [vmem:[%s2 + $0xe0] sm:$0xff]
      %v425 = vld [vmem:[%s2 + $0xe8] sm:$0xff]
      %v426 = vld [vmem:[%s2 + $0xf0] sm:$0xff]
      %v427 = vld [vmem:[%s2 + $0xf8] sm:$0xff]
      %v429 = vsel %vm342, %v396, 0
      %v432 = vsel %vm342, %v397, 0
      %v435 = vsel %vm342, %v398, 0
      %v438 = vsel %vm342, %v399, 0
      %v441 = vsel %vm342, %v400, 0
      %v444 = vsel %vm342, %v401, 0
      %v447 = vsel %vm342, %v402, 0
      %v450 = vsel %vm342, %v403, 0
      %v453 = vsel %vm342, %v404, 0
      %v456 = vsel %vm342, %v405, 0
      %v459 = vsel %vm342, %v406, 0
      %v462 = vsel %vm342, %v407, 0
      %v465 = vsel %vm342, %v408, 0
      %v468 = vsel %vm342, %v409, 0
      %v471 = vsel %vm342, %v410, 0
      %v474 = vsel %vm342, %v411, 0
      %v477 = vsel %vm342, %v412, 0
      %v480 = vsel %vm342, %v413, 0
      %v483 = vsel %vm342, %v414, 0
      %v486 = vsel %vm342, %v415, 0
      %v489 = vsel %vm342, %v416, 0
      %v492 = vsel %vm342, %v417, 0
      %v495 = vsel %vm342, %v418, 0
      %v498 = vsel %vm342, %v419, 0
      %v501 = vsel %vm342, %v420, 0
      %v504 = vsel %vm342, %v421, 0
      %v507 = vsel %vm342, %v422, 0
      %v510 = vsel %vm342, %v423, 0
      %v513 = vsel %vm342, %v424, 0
      %v516 = vsel %vm342, %v425, 0
      %v519 = vsel %vm342, %v426, 0
      %v522 = vsel %vm342, %v427, 0
      %524 = vmatpush.msra.mxu0 0.0
      %525 = vmatpush.msra.mxu0 0.0
      %526 = vmatpush.msra.mxu0 0.0
      %527 = vmatpush.msra.mxu0 0.0
      %528 = vmatpush.msra.mxu0 0.0
      %529 = vmatpush.msra.mxu0 0.0
      %530 = vmatpush.msra.mxu0 0.0
      %531 = vmatpush.msra.mxu0 0.0
      %532 = vmatpush.msra.mxu0 %v395
      %533 = vmatpush.msra.mxu0 %v394
      %534 = vmatpush.msra.mxu0 %v393
      %535 = vmatpush.msra.mxu0 %v392
      %536 = vmatpush.msra.mxu0 %v391
      %537 = vmatpush.msra.mxu0 %v390
      %538 = vmatpush.msra.mxu0 %v389
      %539 = vmatpush.msra.mxu0 %v388
      %540 = vmatmul.f32.gmra.mxu0 %v429
      %v541 = vpop.f32.mrf.mxu0
      %v542 = vadd.f32 0.0, %v541
      %543 = vmatmul.f32.gmra.mxu0 %v432
      %v544 = vpop.f32.mrf.mxu0
      %v545 = vadd.f32 0.0, %v544
      %546 = vmatmul.f32.gmra.mxu0 %v435
      %v547 = vpop.f32.mrf.mxu0
      %v548 = vadd.f32 0.0, %v547
      %549 = vmatmul.f32.gmra.mxu0 %v438
      %v550 = vpop.f32.mrf.mxu0
      %v551 = vadd.f32 0.0, %v550
      %552 = vmatmul.f32.gmra.mxu0 %v441
      %v553 = vpop.f32.mrf.mxu0
      %v554 = vadd.f32 0.0, %v553
      %555 = vmatmul.f32.gmra.mxu0 %v444
      %v556 = vpop.f32.mrf.mxu0
      %v557 = vadd.f32 0.0, %v556
      %558 = vmatmul.f32.gmra.mxu0 %v447
      %v559 = vpop.f32.mrf.mxu0
      %v560 = vadd.f32 0.0, %v559
      %561 = vmatmul.f32.gmra.mxu0 %v450
      %v562 = vpop.f32.mrf.mxu0
      %v563 = vadd.f32 0.0, %v562
      %564 = vmatmul.f32.gmra.mxu0 %v453
      %v565 = vpop.f32.mrf.mxu0
      %v566 = vadd.f32 0.0, %v565
      %567 = vmatmul.f32.gmra.mxu0 %v456
      %v568 = vpop.f32.mrf.mxu0
      %v569 = vadd.f32 0.0, %v568
      %570 = vmatmul.f32.gmra.mxu0 %v459
      %v571 = vpop.f32.mrf.mxu0
      %v572 = vadd.f32 0.0, %v571
      %573 = vmatmul.f32.gmra.mxu0 %v462
      %v574 = vpop.f32.mrf.mxu0
      %v575 = vadd.f32 0.0, %v574
      %576 = vmatmul.f32.gmra.mxu0 %v465
      %v577 = vpop.f32.mrf.mxu0
      %v578 = vadd.f32 0.0, %v577
      %579 = vmatmul.f32.gmra.mxu0 %v468
      %v580 = vpop.f32.mrf.mxu0
      %v581 = vadd.f32 0.0, %v580
      %582 = vmatmul.f32.gmra.mxu0 %v471
      %v583 = vpop.f32.mrf.mxu0
      %v584 = vadd.f32 0.0, %v583
      %585 = vmatmul.f32.gmra.mxu0 %v474
      %v586 = vpop.f32.mrf.mxu0
      %v587 = vadd.f32 0.0, %v586
      %588 = vmatmul.f32.gmra.mxu0 %v477
      %v589 = vpop.f32.mrf.mxu0
      %v590 = vadd.f32 0.0, %v589
      %591 = vmatmul.f32.gmra.mxu0 %v480
      %v592 = vpop.f32.mrf.mxu0
      %v593 = vadd.f32 0.0, %v592
      %594 = vmatmul.f32.gmra.mxu0 %v483
      %v595 = vpop.f32.mrf.mxu0
      %v596 = vadd.f32 0.0, %v595
      %597 = vmatmul.f32.gmra.mxu0 %v486
      %v598 = vpop.f32.mrf.mxu0
      %v599 = vadd.f32 0.0, %v598
      %600 = vmatmul.f32.gmra.mxu0 %v489
      %v601 = vpop.f32.mrf.mxu0
      %v602 = vadd.f32 0.0, %v601
      %603 = vmatmul.f32.gmra.mxu0 %v492
      %v604 = vpop.f32.mrf.mxu0
      %v605 = vadd.f32 0.0, %v604
      %606 = vmatmul.f32.gmra.mxu0 %v495
      %v607 = vpop.f32.mrf.mxu0
      %v608 = vadd.f32 0.0, %v607
      %609 = vmatmul.f32.gmra.mxu0 %v498
      %v610 = vpop.f32.mrf.mxu0
      %v611 = vadd.f32 0.0, %v610
      %612 = vmatmul.f32.gmra.mxu0 %v501
      %v613 = vpop.f32.mrf.mxu0
      %v614 = vadd.f32 0.0, %v613
      %615 = vmatmul.f32.gmra.mxu0 %v504
      %v616 = vpop.f32.mrf.mxu0
      %v617 = vadd.f32 0.0, %v616
      %618 = vmatmul.f32.gmra.mxu0 %v507
      %v619 = vpop.f32.mrf.mxu0
      %v620 = vadd.f32 0.0, %v619
      %621 = vmatmul.f32.gmra.mxu0 %v510
      %v622 = vpop.f32.mrf.mxu0
      %v623 = vadd.f32 0.0, %v622
      %624 = vmatmul.f32.gmra.mxu0 %v513
      %v625 = vpop.f32.mrf.mxu0
      %v626 = vadd.f32 0.0, %v625
      %627 = vmatmul.f32.gmra.mxu0 %v516
      %v628 = vpop.f32.mrf.mxu0
      %v629 = vadd.f32 0.0, %v628
      %630 = vmatmul.f32.gmra.mxu0 %v519
      %v631 = vpop.f32.mrf.mxu0
      %v632 = vadd.f32 0.0, %v631
      %633 = vmatmul.f32.gmra.mxu0 %v522
      %v634 = vpop.f32.mrf.mxu0
      %v635 = vadd.f32 0.0, %v634
      %636 = vdwg.mxu0
      %s637 = scalar_lea.vmem [#allocation2], 24
      %638 = vst.msk [vmem:[%s637 + $0x1] sm:$0xff] %vm342, %v542
      %639 = vst.msk [vmem:[%s637 + $0x9] sm:$0xff] %vm342, %v545
      %640 = vst.msk [vmem:[%s637 + $0x19] sm:$0xff] %vm342, %v548
      %641 = vst.msk [vmem:[%s637 + $0x21] sm:$0xff] %vm342, %v551
      %642 = vst.msk [vmem:[%s637 + $0x31] sm:$0xff] %vm342, %v554
      %643 = vst.msk [vmem:[%s637 + $0x39] sm:$0xff] %vm342, %v557
      %644 = vst.msk [vmem:[%s637 + $0x49] sm:$0xff] %vm342, %v560
      %645 = vst.msk [vmem:[%s637 + $0x51] sm:$0xff] %vm342, %v563
      %646 = vst.msk [vmem:[%s637 + $0x61] sm:$0xff] %vm342, %v566
      %647 = vst.msk [vmem:[%s637 + $0x69] sm:$0xff] %vm342, %v569
      %648 = vst.msk [vmem:[%s637 + $0x79] sm:$0xff] %vm342, %v572
      %649 = vst.msk [vmem:[%s637 + $0x81] sm:$0xff] %vm342, %v575
      %650 = vst.msk [vmem:[%s637 + $0x91] sm:$0xff] %vm342, %v578
      %651 = vst.msk [vmem:[%s637 + $0x99] sm:$0xff] %vm342, %v581
      %652 = vst.msk [vmem:[%s637 + $0xa9] sm:$0xff] %vm342, %v584
      %653 = vst.msk [vmem:[%s637 + $0xb1] sm:$0xff] %vm342, %v587
      %654 = vst.msk [vmem:[%s637 + $0xc1] sm:$0xff] %vm342, %v590
      %655 = vst.msk [vmem:[%s637 + $0xc9] sm:$0xff] %vm342, %v593
      %656 = vst.msk [vmem:[%s637 + $0xd9] sm:$0xff] %vm342, %v596
      %657 = vst.msk [vmem:[%s637 + $0xe1] sm:$0xff] %vm342, %v599
      %658 = vst.msk [vmem:[%s637 + $0xf1] sm:$0xff] %vm342, %v602
      %659 = vst.msk [vmem:[%s637 + $0xf9] sm:$0xff] %vm342, %v605
      %660 = vst.msk [vmem:[%s637 + $0x109] sm:$0xff] %vm342, %v608
      %661 = vst.msk [vmem:[%s637 + $0x111] sm:$0xff] %vm342, %v611
      %662 = vst.msk [vmem:[%s637 + $0x121] sm:$0xff] %vm342, %v614
      %663 = vst.msk [vmem:[%s637 + $0x129] sm:$0xff] %vm342, %v617
      %664 = vst.msk [vmem:[%s637 + $0x139] sm:$0xff] %vm342, %v620
      %665 = vst.msk [vmem:[%s637 + $0x141] sm:$0xff] %vm342, %v623
      %666 = vst.msk [vmem:[%s637 + $0x151] sm:$0xff] %vm342, %v626
      %667 = vst.msk [vmem:[%s637 + $0x159] sm:$0xff] %vm342, %v629
      %668 = vst.msk [vmem:[%s637 + $0x169] sm:$0xff] %vm342, %v632
      %669 = vst.msk [vmem:[%s637 + $0x171] sm:$0xff] %vm342, %v635
      %v670 = vld [vmem:[%s293] sm:$0xff]
      %v671 = vld [vmem:[%s293 + $0x8] sm:$0xff]
      %v672 = vld [vmem:[%s293 + $0x10] sm:$0xff]
      %v673 = vld [vmem:[%s293 + $0x18] sm:$0xff]
      %v674 = vld [vmem:[%s293 + $0x20] sm:$0xff]
      %v675 = vld [vmem:[%s293 + $0x28] sm:$0xff]
      %v676 = vld [vmem:[%s293 + $0x30] sm:$0xff]
      %v677 = vld [vmem:[%s293 + $0x38] sm:$0xff]
      %v678 = vld [vmem:[%s293 + $0x40] sm:$0xff]
      %v679 = vld [vmem:[%s293 + $0x48] sm:$0xff]
      %v680 = vld [vmem:[%s293 + $0x50] sm:$0xff]
      %v681 = vld [vmem:[%s293 + $0x58] sm:$0xff]
      %v682 = vld [vmem:[%s293 + $0x60] sm:$0xff]
      %v683 = vld [vmem:[%s293 + $0x68] sm:$0xff]
      %v684 = vld [vmem:[%s293 + $0x70] sm:$0xff]
      %v685 = vld [vmem:[%s293 + $0x78] sm:$0xff]
      %v686 = vld [vmem:[%s293 + $0x80] sm:$0xff]
      %v687 = vld [vmem:[%s293 + $0x88] sm:$0xff]
      %v688 = vld [vmem:[%s293 + $0x90] sm:$0xff]
      %v689 = vld [vmem:[%s293 + $0x98] sm:$0xff]
      %v690 = vld [vmem:[%s293 + $0xa0] sm:$0xff]
      %v691 = vld [vmem:[%s293 + $0xa8] sm:$0xff]
      %v692 = vld [vmem:[%s293 + $0xb0] sm:$0xff]
      %v693 = vld [vmem:[%s293 + $0xb8] sm:$0xff]
      %v694 = vld [vmem:[%s293 + $0xc0] sm:$0xff]
      %v695 = vld [vmem:[%s293 + $0xc8] sm:$0xff]
      %v696 = vld [vmem:[%s293 + $0xd0] sm:$0xff]
      %v697 = vld [vmem:[%s293 + $0xd8] sm:$0xff]
      %v698 = vld [vmem:[%s293 + $0xe0] sm:$0xff]
      %v699 = vld [vmem:[%s293 + $0xe8] sm:$0xff]
      %v700 = vld [vmem:[%s293 + $0xf0] sm:$0xff]
      %v701 = vld [vmem:[%s293 + $0xf8] sm:$0xff]
      %734 = vrot.lane.b32.xlu0 %v670, 64
      %v735 = vpop.permute.xlu0 %734
      %736 = vrot.lane.b32.xlu0 %v671, 64
      %v737 = vpop.permute.xlu0 %736
      %738 = vrot.lane.b32.xlu0 %v672, 64
      %v739 = vpop.permute.xlu0 %738
      %740 = vrot.lane.b32.xlu0 %v673, 64
      %v741 = vpop.permute.xlu0 %740
      %742 = vrot.lane.b32.xlu0 %v674, 64
      %v743 = vpop.permute.xlu0 %742
      %744 = vrot.lane.b32.xlu0 %v675, 64
      %v745 = vpop.permute.xlu0 %744
      %746 = vrot.lane.b32.xlu0 %v676, 64
      %v747 = vpop.permute.xlu0 %746
      %748 = vrot.lane.b32.xlu0 %v677, 64
      %v749 = vpop.permute.xlu0 %748
      %750 = vrot.lane.b32.xlu0 %v678, 64
      %v751 = vpop.permute.xlu0 %750
      %752 = vrot.lane.b32.xlu0 %v679, 64
      %v753 = vpop.permute.xlu0 %752
      %754 = vrot.lane.b32.xlu0 %v680, 64
      %v755 = vpop.permute.xlu0 %754
      %756 = vrot.lane.b32.xlu0 %v681, 64
      %v757 = vpop.permute.xlu0 %756
      %758 = vrot.lane.b32.xlu0 %v682, 64
      %v759 = vpop.permute.xlu0 %758
      %760 = vrot.lane.b32.xlu0 %v683, 64
      %v761 = vpop.permute.xlu0 %760
      %762 = vrot.lane.b32.xlu0 %v684, 64
      %v763 = vpop.permute.xlu0 %762
      %764 = vrot.lane.b32.xlu0 %v685, 64
      %v765 = vpop.permute.xlu0 %764
      %766 = vrot.lane.b32.xlu0 %v686, 64
      %v767 = vpop.permute.xlu0 %766
      %768 = vrot.lane.b32.xlu0 %v687, 64
      %v769 = vpop.permute.xlu0 %768
      %770 = vrot.lane.b32.xlu0 %v688, 64
      %v771 = vpop.permute.xlu0 %770
      %772 = vrot.lane.b32.xlu0 %v689, 64
      %v773 = vpop.permute.xlu0 %772
      %774 = vrot.lane.b32.xlu0 %v690, 64
      %v775 = vpop.permute.xlu0 %774
      %776 = vrot.lane.b32.xlu0 %v691, 64
      %v777 = vpop.permute.xlu0 %776
      %778 = vrot.lane.b32.xlu0 %v692, 64
      %v779 = vpop.permute.xlu0 %778
      %780 = vrot.lane.b32.xlu0 %v693, 64
      %v781 = vpop.permute.xlu0 %780
      %782 = vrot.lane.b32.xlu0 %v694, 64
      %v783 = vpop.permute.xlu0 %782
      %784 = vrot.lane.b32.xlu0 %v695, 64
      %v785 = vpop.permute.xlu0 %784
      %786 = vrot.lane.b32.xlu0 %v696, 64
      %v787 = vpop.permute.xlu0 %786
      %788 = vrot.lane.b32.xlu0 %v697, 64
      %v789 = vpop.permute.xlu0 %788
      %790 = vrot.lane.b32.xlu0 %v698, 64
      %v791 = vpop.permute.xlu0 %790
      %792 = vrot.lane.b32.xlu0 %v699, 64
      %v793 = vpop.permute.xlu0 %792
      %794 = vrot.lane.b32.xlu0 %v700, 64
      %v795 = vpop.permute.xlu0 %794
      %796 = vrot.lane.b32.xlu0 %v701, 64
      %v797 = vpop.permute.xlu0 %796
      %vm830 = vcmask 1048064
      %831 = vst.msk [vmem:[%s637 + $0x1] sm:$0xff] %vm830, %v735
      %832 = vst.msk [vmem:[%s637 + $0x9] sm:$0xff] %vm830, %v737
      %833 = vst.msk [vmem:[%s637 + $0x19] sm:$0xff] %vm830, %v739
      %834 = vst.msk [vmem:[%s637 + $0x21] sm:$0xff] %vm830, %v741
      %835 = vst.msk [vmem:[%s637 + $0x31] sm:$0xff] %vm830, %v743
      %836 = vst.msk [vmem:[%s637 + $0x39] sm:$0xff] %vm830, %v745
      %837 = vst.msk [vmem:[%s637 + $0x49] sm:$0xff] %vm830, %v747
      %838 = vst.msk [vmem:[%s637 + $0x51] sm:$0xff] %vm830, %v749
      %839 = vst.msk [vmem:[%s637 + $0x61] sm:$0xff] %vm830, %v751
      %840 = vst.msk [vmem:[%s637 + $0x69] sm:$0xff] %vm830, %v753
      %841 = vst.msk [vmem:[%s637 + $0x79] sm:$0xff] %vm830, %v755
      %842 = vst.msk [vmem:[%s637 + $0x81] sm:$0xff] %vm830, %v757
      %843 = vst.msk [vmem:[%s637 + $0x91] sm:$0xff] %vm830, %v759
      %844 = vst.msk [vmem:[%s637 + $0x99] sm:$0xff] %vm830, %v761
      %845 = vst.msk [vmem:[%s637 + $0xa9] sm:$0xff] %vm830, %v763
      %846 = vst.msk [vmem:[%s637 + $0xb1] sm:$0xff] %vm830, %v765
      %847 = vst.msk [vmem:[%s637 + $0xc1] sm:$0xff] %vm830, %v767
      %848 = vst.msk [vmem:[%s637 + $0xc9] sm:$0xff] %vm830, %v769
      %849 = vst.msk [vmem:[%s637 + $0xd9] sm:$0xff] %vm830, %v771
      %850 = vst.msk [vmem:[%s637 + $0xe1] sm:$0xff] %vm830, %v773
      %851 = vst.msk [vmem:[%s637 + $0xf1] sm:$0xff] %vm830, %v775
      %852 = vst.msk [vmem:[%s637 + $0xf9] sm:$0xff] %vm830, %v777
      %853 = vst.msk [vmem:[%s637 + $0x109] sm:$0xff] %vm830, %v779
      %854 = vst.msk [vmem:[%s637 + $0x111] sm:$0xff] %vm830, %v781
      %855 = vst.msk [vmem:[%s637 + $0x121] sm:$0xff] %vm830, %v783
      %856 = vst.msk [vmem:[%s637 + $0x129] sm:$0xff] %vm830, %v785
      %857 = vst.msk [vmem:[%s637 + $0x139] sm:$0xff] %vm830, %v787
      %858 = vst.msk [vmem:[%s637 + $0x141] sm:$0xff] %vm830, %v789
      %859 = vst.msk [vmem:[%s637 + $0x151] sm:$0xff] %vm830, %v791
      %860 = vst.msk [vmem:[%s637 + $0x159] sm:$0xff] %vm830, %v793
      %861 = vst.msk [vmem:[%s637 + $0x169] sm:$0xff] %vm830, %v795
      %862 = vst.msk [vmem:[%s637 + $0x171] sm:$0xff] %vm830, %v797
      %v863 = vld [vmem:[#allocation2] sm:$0xff]
      %v864 = vld [vmem:[#allocation2 + $0x8] sm:$0xff]
      %v865 = vld [vmem:[#allocation2 + $0x18] sm:$0xff]
      %v866 = vld [vmem:[#allocation2 + $0x20] sm:$0xff]
      %v867 = vld [vmem:[#allocation2 + $0x30] sm:$0xff]
      %v868 = vld [vmem:[#allocation2 + $0x38] sm:$0xff]
      %v869 = vld [vmem:[#allocation2 + $0x48] sm:$0xff]
      %v870 = vld [vmem:[#allocation2 + $0x50] sm:$0xff]
      %v871 = vld [vmem:[#allocation2 + $0x60] sm:$0xff]
      %v872 = vld [vmem:[#allocation2 + $0x68] sm:$0xff]
      %v873 = vld [vmem:[#allocation2 + $0x78] sm:$0xff]
      %v874 = vld [vmem:[#allocation2 + $0x80] sm:$0xff]
      %v875 = vld [vmem:[#allocation2 + $0x90] sm:$0xff]
      %v876 = vld [vmem:[#allocation2 + $0x98] sm:$0xff]
      %v877 = vld [vmem:[#allocation2 + $0xa8] sm:$0xff]
      %v878 = vld [vmem:[#allocation2 + $0xb0] sm:$0xff]
      %v879 = vld [vmem:[#allocation2 + $0xc0] sm:$0xff]
      %v880 = vld [vmem:[#allocation2 + $0xc8] sm:$0xff]
      %v881 = vld [vmem:[#allocation2 + $0xd8] sm:$0xff]
      %v882 = vld [vmem:[#allocation2 + $0xe0] sm:$0xff]
      %v883 = vld [vmem:[#allocation2 + $0xf0] sm:$0xff]
      %v884 = vld [vmem:[#allocation2 + $0xf8] sm:$0xff]
      %v885 = vld [vmem:[#allocation2 + $0x108] sm:$0xff]
      %v886 = vld [vmem:[#allocation2 + $0x110] sm:$0xff]
      %v887 = vld [vmem:[#allocation2 + $0x120] sm:$0xff]
      %v888 = vld [vmem:[#allocation2 + $0x128] sm:$0xff]
      %v889 = vld [vmem:[#allocation2 + $0x138] sm:$0xff]
      %v890 = vld [vmem:[#allocation2 + $0x140] sm:$0xff]
      %v891 = vld [vmem:[#allocation2 + $0x150] sm:$0xff]
      %v892 = vld [vmem:[#allocation2 + $0x158] sm:$0xff]
      %v893 = vld [vmem:[#allocation2 + $0x168] sm:$0xff]
      %v894 = vld [vmem:[#allocation2 + $0x170] sm:$0xff]
      %895 = vst [vmem:[#allocation3] sm:$0xff] %v863
      %896 = vst [vmem:[#allocation3 + $0x48] sm:$0xff] %v864
      %897 = vst [vmem:[#allocation3 + $0x90] sm:$0xff] %v865
      %898 = vst [vmem:[#allocation3 + $0xd8] sm:$0xff] %v866
      %899 = vst [vmem:[#allocation3 + $0x120] sm:$0xff] %v867
      %900 = vst [vmem:[#allocation3 + $0x168] sm:$0xff] %v868
      %901 = vst [vmem:[#allocation3 + $0x1b0] sm:$0xff] %v869
      %902 = vst [vmem:[#allocation3 + $0x1f8] sm:$0xff] %v870
      %903 = vst [vmem:[#allocation3 + $0x240] sm:$0xff] %v871
      %904 = vst [vmem:[#allocation3 + $0x288] sm:$0xff] %v872
      %905 = vst [vmem:[#allocation3 + $0x2d0] sm:$0xff] %v873
      %906 = vst [vmem:[#allocation3 + $0x318] sm:$0xff] %v874
      %907 = vst [vmem:[#allocation3 + $0x360] sm:$0xff] %v875
      %908 = vst [vmem:[#allocation3 + $0x3a8] sm:$0xff] %v876
      %909 = vst [vmem:[#allocation3 + $0x3f0] sm:$0xff] %v877
      %910 = vst [vmem:[#allocation3 + $0x438] sm:$0xff] %v878
      %911 = vst [vmem:[#allocation3 + $0x480] sm:$0xff] %v879
      %912 = vst [vmem:[#allocation3 + $0x4c8] sm:$0xff] %v880
      %913 = vst [vmem:[#allocation3 + $0x510] sm:$0xff] %v881
      %914 = vst [vmem:[#allocation3 + $0x558] sm:$0xff] %v882
      %915 = vst [vmem:[#allocation3 + $0x5a0] sm:$0xff] %v883
      %916 = vst [vmem:[#allocation3 + $0x5e8] sm:$0xff] %v884
      %917 = vst [vmem:[#allocation3 + $0x630] sm:$0xff] %v885
      %918 = vst [vmem:[#allocation3 + $0x678] sm:$0xff] %v886
      %919 = vst [vmem:[#allocation3 + $0x6c0] sm:$0xff] %v887
      %920 = vst [vmem:[#allocation3 + $0x708] sm:$0xff] %v888
      %921 = vst [vmem:[#allocation3 + $0x750] sm:$0xff] %v889
      %922 = vst [vmem:[#allocation3 + $0x798] sm:$0xff] %v890
      %923 = vst [vmem:[#allocation3 + $0x7e0] sm:$0xff] %v891
      %924 = vst [vmem:[#allocation3 + $0x828] sm:$0xff] %v892
      %925 = vst [vmem:[#allocation3 + $0x870] sm:$0xff] %v893
      %926 = vst [vmem:[#allocation3 + $0x8b8] sm:$0xff] %v894
      %v927 = vld [vmem:[#allocation2 + $0x1] sm:$0xff]
      %v928 = vld [vmem:[#allocation2 + $0x9] sm:$0xff]
      %v929 = vld [vmem:[#allocation2 + $0x19] sm:$0xff]
      %v930 = vld [vmem:[#allocation2 + $0x21] sm:$0xff]
      %v931 = vld [vmem:[#allocation2 + $0x31] sm:$0xff]
      %v932 = vld [vmem:[#allocation2 + $0x39] sm:$0xff]
      %v933 = vld [vmem:[#allocation2 + $0x49] sm:$0xff]
      %v934 = vld [vmem:[#allocation2 + $0x51] sm:$0xff]
      %v935 = vld [vmem:[#allocation2 + $0x61] sm:$0xff]
      %v936 = vld [vmem:[#allocation2 + $0x69] sm:$0xff]
      %v937 = vld [vmem:[#allocation2 + $0x79] sm:$0xff]
      %v938 = vld [vmem:[#allocation2 + $0x81] sm:$0xff]
      %v939 = vld [vmem:[#allocation2 + $0x91] sm:$0xff]
      %v940 = vld [vmem:[#allocation2 + $0x99] sm:$0xff]
      %v941 = vld [vmem:[#allocation2 + $0xa9] sm:$0xff]
      %v942 = vld [vmem:[#allocation2 + $0xb1] sm:$0xff]
      %v943 = vld [vmem:[#allocation2 + $0xc1] sm:$0xff]
      %v944 = vld [vmem:[#allocation2 + $0xc9] sm:$0xff]
      %v945 = vld [vmem:[#allocation2 + $0xd9] sm:$0xff]
      %v946 = vld [vmem:[#allocation2 + $0xe1] sm:$0xff]
      %v947 = vld [vmem:[#allocation2 + $0xf1] sm:$0xff]
      %v948 = vld [vmem:[#allocation2 + $0xf9] sm:$0xff]
      %v949 = vld [vmem:[#allocation2 + $0x109] sm:$0xff]
      %v950 = vld [vmem:[#allocation2 + $0x111] sm:$0xff]
      %v951 = vld [vmem:[#allocation2 + $0x121] sm:$0xff]
      %v952 = vld [vmem:[#allocation2 + $0x129] sm:$0xff]
      %v953 = vld [vmem:[#allocation2 + $0x139] sm:$0xff]
      %v954 = vld [vmem:[#allocation2 + $0x141] sm:$0xff]
      %v955 = vld [vmem:[#allocation2 + $0x151] sm:$0xff]
      %v956 = vld [vmem:[#allocation2 + $0x159] sm:$0xff]
      %v957 = vld [vmem:[#allocation2 + $0x169] sm:$0xff]
      %v958 = vld [vmem:[#allocation2 + $0x171] sm:$0xff]
      %959 = vst [vmem:[#allocation3 + $0x8] sm:$0xff] %v927
      %960 = vst [vmem:[#allocation3 + $0x50] sm:$0xff] %v928
      %961 = vst [vmem:[#allocation3 + $0x98] sm:$0xff] %v929
      %962 = vst [vmem:[#allocation3 + $0xe0] sm:$0xff] %v930
      %963 = vst [vmem:[#allocation3 + $0x128] sm:$0xff] %v931
      %964 = vst [vmem:[#allocation3 + $0x170] sm:$0xff] %v932
      %965 = vst [vmem:[#allocation3 + $0x1b8] sm:$0xff] %v933
      %966 = vst [vmem:[#allocation3 + $0x200] sm:$0xff] %v934
      %967 = vst [vmem:[#allocation3 + $0x248] sm:$0xff] %v935
      %968 = vst [vmem:[#allocation3 + $0x290] sm:$0xff] %v936
      %969 = vst [vmem:[#allocation3 + $0x2d8] sm:$0xff] %v937
      %970 = vst [vmem:[#allocation3 + $0x320] sm:$0xff] %v938
      %971 = vst [vmem:[#allocation3 + $0x368] sm:$0xff] %v939
      %972 = vst [vmem:[#allocation3 + $0x3b0] sm:$0xff] %v940
      %973 = vst [vmem:[#allocation3 + $0x3f8] sm:$0xff] %v941
      %974 = vst [vmem:[#allocation3 + $0x440] sm:$0xff] %v942
      %975 = vst [vmem:[#allocation3 + $0x488] sm:$0xff] %v943
      %976 = vst [vmem:[#allocation3 + $0x4d0] sm:$0xff] %v944
      %977 = vst [vmem:[#allocation3 + $0x518] sm:$0xff] %v945
      %978 = vst [vmem:[#allocation3 + $0x560] sm:$0xff] %v946
      %979 = vst [vmem:[#allocation3 + $0x5a8] sm:$0xff] %v947
      %980 = vst [vmem:[#allocation3 + $0x5f0] sm:$0xff] %v948
      %981 = vst [vmem:[#allocation3 + $0x638] sm:$0xff] %v949
      %982 = vst [vmem:[#allocation3 + $0x680] sm:$0xff] %v950
      %983 = vst [vmem:[#allocation3 + $0x6c8] sm:$0xff] %v951
      %984 = vst [vmem:[#allocation3 + $0x710] sm:$0xff] %v952
      %985 = vst [vmem:[#allocation3 + $0x758] sm:$0xff] %v953
      %986 = vst [vmem:[#allocation3 + $0x7a0] sm:$0xff] %v954
      %987 = vst [vmem:[#allocation3 + $0x7e8] sm:$0xff] %v955
      %988 = vst [vmem:[#allocation3 + $0x830] sm:$0xff] %v956
      %989 = vst [vmem:[#allocation3 + $0x878] sm:$0xff] %v957
      %990 = vst [vmem:[#allocation3 + $0x8c0] sm:$0xff] %v958
      %v991 = vld [vmem:[#allocation2 + $0x2] sm:$0xff]
      %v992 = vld [vmem:[#allocation2 + $0xa] sm:$0xff]
      %v993 = vld [vmem:[#allocation2 + $0x1a] sm:$0xff]
      %v994 = vld [vmem:[#allocation2 + $0x22] sm:$0xff]
      %v995 = vld [vmem:[#allocation2 + $0x32] sm:$0xff]
      %v996 = vld [vmem:[#allocation2 + $0x3a] sm:$0xff]
      %v997 = vld [vmem:[#allocation2 + $0x4a] sm:$0xff]
      %v998 = vld [vmem:[#allocation2 + $0x52] sm:$0xff]
      %v999 = vld [vmem:[#allocation2 + $0x62] sm:$0xff]
      %v1000 = vld [vmem:[#allocation2 + $0x6a] sm:$0xff]
      %v1001 = vld [vmem:[#allocation2 + $0x7a] sm:$0xff]
      %v1002 = vld [vmem:[#allocation2 + $0x82] sm:$0xff]
      %v1003 = vld [vmem:[#allocation2 + $0x92] sm:$0xff]
      %v1004 = vld [vmem:[#allocation2 + $0x9a] sm:$0xff]
      %v1005 = vld [vmem:[#allocation2 + $0xaa] sm:$0xff]
      %v1006 = vld [vmem:[#allocation2 + $0xb2] sm:$0xff]
      %v1007 = vld [vmem:[#allocation2 + $0xc2] sm:$0xff]
      %v1008 = vld [vmem:[#allocation2 + $0xca] sm:$0xff]
      %v1009 = vld [vmem:[#allocation2 + $0xda] sm:$0xff]
      %v1010 = vld [vmem:[#allocation2 + $0xe2] sm:$0xff]
      %v1011 = vld [vmem:[#allocation2 + $0xf2] sm:$0xff]
      %v1012 = vld [vmem:[#allocation2 + $0xfa] sm:$0xff]
      %v1013 = vld [vmem:[#allocation2 + $0x10a] sm:$0xff]
      %v1014 = vld [vmem:[#allocation2 + $0x112] sm:$0xff]
      %v1015 = vld [vmem:[#allocation2 + $0x122] sm:$0xff]
      %v1016 = vld [vmem:[#allocation2 + $0x12a] sm:$0xff]
      %v1017 = vld [vmem:[#allocation2 + $0x13a] sm:$0xff]
      %v1018 = vld [vmem:[#allocation2 + $0x142] sm:$0xff]
      %v1019 = vld [vmem:[#allocation2 + $0x152] sm:$0xff]
      %v1020 = vld [vmem:[#allocation2 + $0x15a] sm:$0xff]
      %v1021 = vld [vmem:[#allocation2 + $0x16a] sm:$0xff]
      %v1022 = vld [vmem:[#allocation2 + $0x172] sm:$0xff]
      %1023 = vst [vmem:[#allocation3 + $0x10] sm:$0xff] %v991
      %1024 = vst [vmem:[#allocation3 + $0x58] sm:$0xff] %v992
      %1025 = vst [vmem:[#allocation3 + $0xa0] sm:$0xff] %v993
      %1026 = vst [vmem:[#allocation3 + $0xe8] sm:$0xff] %v994
      %1027 = vst [vmem:[#allocation3 + $0x130] sm:$0xff] %v995
      %1028 = vst [vmem:[#allocation3 + $0x178] sm:$0xff] %v996
      %1029 = vst [vmem:[#allocation3 + $0x1c0] sm:$0xff] %v997
      %1030 = vst [vmem:[#allocation3 + $0x208] sm:$0xff] %v998
      %1031 = vst [vmem:[#allocation3 + $0x250] sm:$0xff] %v999
      %1032 = vst [vmem:[#allocation3 + $0x298] sm:$0xff] %v1000
      %1033 = vst [vmem:[#allocation3 + $0x2e0] sm:$0xff] %v1001
      %1034 = vst [vmem:[#allocation3 + $0x328] sm:$0xff] %v1002
      %1035 = vst [vmem:[#allocation3 + $0x370] sm:$0xff] %v1003
      %1036 = vst [vmem:[#allocation3 + $0x3b8] sm:$0xff] %v1004
      %1037 = vst [vmem:[#allocation3 + $0x400] sm:$0xff] %v1005
      %1038 = vst [vmem:[#allocation3 + $0x448] sm:$0xff] %v1006
      %1039 = vst [vmem:[#allocation3 + $0x490] sm:$0xff] %v1007
      %1040 = vst [vmem:[#allocation3 + $0x4d8] sm:$0xff] %v1008
      %1041 = vst [vmem:[#allocation3 + $0x520] sm:$0xff] %v1009
      %1042 = vst [vmem:[#allocation3 + $0x568] sm:$0xff] %v1010
      %1043 = vst [vmem:[#allocation3 + $0x5b0] sm:$0xff] %v1011
      %1044 = vst [vmem:[#allocation3 + $0x5f8] sm:$0xff] %v1012
      %1045 = vst [vmem:[#allocation3 + $0x640] sm:$0xff] %v1013
      %1046 = vst [vmem:[#allocation3 + $0x688] sm:$0xff] %v1014
      %1047 = vst [vmem:[#allocation3 + $0x6d0] sm:$0xff] %v1015
      %1048 = vst [vmem:[#allocation3 + $0x718] sm:$0xff] %v1016
      %1049 = vst [vmem:[#allocation3 + $0x760] sm:$0xff] %v1017
      %1050 = vst [vmem:[#allocation3 + $0x7a8] sm:$0xff] %v1018
      %1051 = vst [vmem:[#allocation3 + $0x7f0] sm:$0xff] %v1019
      %1052 = vst [vmem:[#allocation3 + $0x838] sm:$0xff] %v1020
      %1053 = vst [vmem:[#allocation3 + $0x880] sm:$0xff] %v1021
      %1054 = vst [vmem:[#allocation3 + $0x8c8] sm:$0xff] %v1022
      %v1055 = vld [vmem:[%s637] sm:$0xff]
      %v1056 = vld [vmem:[%s637 + $0x8] sm:$0xff]
      %v1057 = vld [vmem:[%s637 + $0x18] sm:$0xff]
      %v1058 = vld [vmem:[%s637 + $0x20] sm:$0xff]
      %v1059 = vld [vmem:[%s637 + $0x30] sm:$0xff]
      %v1060 = vld [vmem:[%s637 + $0x38] sm:$0xff]
      %v1061 = vld [vmem:[%s637 + $0x48] sm:$0xff]
      %v1062 = vld [vmem:[%s637 + $0x50] sm:$0xff]
      %v1063 = vld [vmem:[%s637 + $0x60] sm:$0xff]
      %v1064 = vld [vmem:[%s637 + $0x68] sm:$0xff]
      %v1065 = vld [vmem:[%s637 + $0x78] sm:$0xff]
      %v1066 = vld [vmem:[%s637 + $0x80] sm:$0xff]
      %v1067 = vld [vmem:[%s637 + $0x90] sm:$0xff]
      %v1068 = vld [vmem:[%s637 + $0x98] sm:$0xff]
      %v1069 = vld [vmem:[%s637 + $0xa8] sm:$0xff]
      %v1070 = vld [vmem:[%s637 + $0xb0] sm:$0xff]
      %v1071 = vld [vmem:[%s637 + $0xc0] sm:$0xff]
      %v1072 = vld [vmem:[%s637 + $0xc8] sm:$0xff]
      %v1073 = vld [vmem:[%s637 + $0xd8] sm:$0xff]
      %v1074 = vld [vmem:[%s637 + $0xe0] sm:$0xff]
      %v1075 = vld [vmem:[%s637 + $0xf0] sm:$0xff]
      %v1076 = vld [vmem:[%s637 + $0xf8] sm:$0xff]
      %v1077 = vld [vmem:[%s637 + $0x108] sm:$0xff]
      %v1078 = vld [vmem:[%s637 + $0x110] sm:$0xff]
      %v1079 = vld [vmem:[%s637 + $0x120] sm:$0xff]
      %v1080 = vld [vmem:[%s637 + $0x128] sm:$0xff]
      %v1081 = vld [vmem:[%s637 + $0x138] sm:$0xff]
      %v1082 = vld [vmem:[%s637 + $0x140] sm:$0xff]
      %v1083 = vld [vmem:[%s637 + $0x150] sm:$0xff]
      %v1084 = vld [vmem:[%s637 + $0x158] sm:$0xff]
      %v1085 = vld [vmem:[%s637 + $0x168] sm:$0xff]
      %v1086 = vld [vmem:[%s637 + $0x170] sm:$0xff]
      %1087 = vst [vmem:[#allocation3 + $0x18] sm:$0xff] %v1055
      %1088 = vst [vmem:[#allocation3 + $0x60] sm:$0xff] %v1056
      %1089 = vst [vmem:[#allocation3 + $0xa8] sm:$0xff] %v1057
      %1090 = vst [vmem:[#allocation3 + $0xf0] sm:$0xff] %v1058
      %1091 = vst [vmem:[#allocation3 + $0x138] sm:$0xff] %v1059
      %1092 = vst [vmem:[#allocation3 + $0x180] sm:$0xff] %v1060
      %1093 = vst [vmem:[#allocation3 + $0x1c8] sm:$0xff] %v1061
      %1094 = vst [vmem:[#allocation3 + $0x210] sm:$0xff] %v1062
      %1095 = vst [vmem:[#allocation3 + $0x258] sm:$0xff] %v1063
      %1096 = vst [vmem:[#allocation3 + $0x2a0] sm:$0xff] %v1064
      %1097 = vst [vmem:[#allocation3 + $0x2e8] sm:$0xff] %v1065
      %1098 = vst [vmem:[#allocation3 + $0x330] sm:$0xff] %v1066
      %1099 = vst [vmem:[#allocation3 + $0x378] sm:$0xff] %v1067
      %1100 = vst [vmem:[#allocation3 + $0x3c0] sm:$0xff] %v1068
      %1101 = vst [vmem:[#allocation3 + $0x408] sm:$0xff] %v1069
      %1102 = vst [vmem:[#allocation3 + $0x450] sm:$0xff] %v1070
      %1103 = vst [vmem:[#allocation3 + $0x498] sm:$0xff] %v1071
      %1104 = vst [vmem:[#allocation3 + $0x4e0] sm:$0xff] %v1072
      %1105 = vst [vmem:[#allocation3 + $0x528] sm:$0xff] %v1073
      %1106 = vst [vmem:[#allocation3 + $0x570] sm:$0xff] %v1074
      %1107 = vst [vmem:[#allocation3 + $0x5b8] sm:$0xff] %v1075
      %1108 = vst [vmem:[#allocation3 + $0x600] sm:$0xff] %v1076
      %1109 = vst [vmem:[#allocation3 + $0x648] sm:$0xff] %v1077
      %1110 = vst [vmem:[#allocation3 + $0x690] sm:$0xff] %v1078
      %1111 = vst [vmem:[#allocation3 + $0x6d8] sm:$0xff] %v1079
      %1112 = vst [vmem:[#allocation3 + $0x720] sm:$0xff] %v1080
      %1113 = vst [vmem:[#allocation3 + $0x768] sm:$0xff] %v1081
      %1114 = vst [vmem:[#allocation3 + $0x7b0] sm:$0xff] %v1082
      %1115 = vst [vmem:[#allocation3 + $0x7f8] sm:$0xff] %v1083
      %1116 = vst [vmem:[#allocation3 + $0x840] sm:$0xff] %v1084
      %1117 = vst [vmem:[#allocation3 + $0x888] sm:$0xff] %v1085
      %1118 = vst [vmem:[#allocation3 + $0x8d0] sm:$0xff] %v1086
      %v1119 = vld [vmem:[%s637 + $0x1] sm:$0xff]
      %v1120 = vld [vmem:[%s637 + $0x9] sm:$0xff]
      %v1121 = vld [vmem:[%s637 + $0x19] sm:$0xff]
      %v1122 = vld [vmem:[%s637 + $0x21] sm:$0xff]
      %v1123 = vld [vmem:[%s637 + $0x31] sm:$0xff]
      %v1124 = vld [vmem:[%s637 + $0x39] sm:$0xff]
      %v1125 = vld [vmem:[%s637 + $0x49] sm:$0xff]
      %v1126 = vld [vmem:[%s637 + $0x51] sm:$0xff]
      %v1127 = vld [vmem:[%s637 + $0x61] sm:$0xff]
      %v1128 = vld [vmem:[%s637 + $0x69] sm:$0xff]
      %v1129 = vld [vmem:[%s637 + $0x79] sm:$0xff]
      %v1130 = vld [vmem:[%s637 + $0x81] sm:$0xff]
      %v1131 = vld [vmem:[%s637 + $0x91] sm:$0xff]
      %v1132 = vld [vmem:[%s637 + $0x99] sm:$0xff]
      %v1133 = vld [vmem:[%s637 + $0xa9] sm:$0xff]
      %v1134 = vld [vmem:[%s637 + $0xb1] sm:$0xff]
      %v1135 = vld [vmem:[%s637 + $0xc1] sm:$0xff]
      %v1136 = vld [vmem:[%s637 + $0xc9] sm:$0xff]
      %v1137 = vld [vmem:[%s637 + $0xd9] sm:$0xff]
      %v1138 = vld [vmem:[%s637 + $0xe1] sm:$0xff]
      %v1139 = vld [vmem:[%s637 + $0xf1] sm:$0xff]
      %v1140 = vld [vmem:[%s637 + $0xf9] sm:$0xff]
      %v1141 = vld [vmem:[%s637 + $0x109] sm:$0xff]
      %v1142 = vld [vmem:[%s637 + $0x111] sm:$0xff]
      %v1143 = vld [vmem:[%s637 + $0x121] sm:$0xff]
      %v1144 = vld [vmem:[%s637 + $0x129] sm:$0xff]
      %v1145 = vld [vmem:[%s637 + $0x139] sm:$0xff]
      %v1146 = vld [vmem:[%s637 + $0x141] sm:$0xff]
      %v1147 = vld [vmem:[%s637 + $0x151] sm:$0xff]
      %v1148 = vld [vmem:[%s637 + $0x159] sm:$0xff]
      %v1149 = vld [vmem:[%s637 + $0x169] sm:$0xff]
      %v1150 = vld [vmem:[%s637 + $0x171] sm:$0xff]
      %1151 = vst [vmem:[#allocation3 + $0x20] sm:$0xff] %v1119
      %1152 = vst [vmem:[#allocation3 + $0x68] sm:$0xff] %v1120
      %1153 = vst [vmem:[#allocation3 + $0xb0] sm:$0xff] %v1121
      %1154 = vst [vmem:[#allocation3 + $0xf8] sm:$0xff] %v1122
      %1155 = vst [vmem:[#allocation3 + $0x140] sm:$0xff] %v1123
      %1156 = vst [vmem:[#allocation3 + $0x188] sm:$0xff] %v1124
      %1157 = vst [vmem:[#allocation3 + $0x1d0] sm:$0xff] %v1125
      %1158 = vst [vmem:[#allocation3 + $0x218] sm:$0xff] %v1126
      %1159 = vst [vmem:[#allocation3 + $0x260] sm:$0xff] %v1127
      %1160 = vst [vmem:[#allocation3 + $0x2a8] sm:$0xff] %v1128
      %1161 = vst [vmem:[#allocation3 + $0x2f0] sm:$0xff] %v1129
      %1162 = vst [vmem:[#allocation3 + $0x338] sm:$0xff] %v1130
      %1163 = vst [vmem:[#allocation3 + $0x380] sm:$0xff] %v1131
      %1164 = vst [vmem:[#allocation3 + $0x3c8] sm:$0xff] %v1132
      %1165 = vst [vmem:[#allocation3 + $0x410] sm:$0xff] %v1133
      %1166 = vst [vmem:[#allocation3 + $0x458] sm:$0xff] %v1134
      %1167 = vst [vmem:[#allocation3 + $0x4a0] sm:$0xff] %v1135
      %1168 = vst [vmem:[#allocation3 + $0x4e8] sm:$0xff] %v1136
      %1169 = vst [vmem:[#allocation3 + $0x530] sm:$0xff] %v1137
      %1170 = vst [vmem:[#allocation3 + $0x578] sm:$0xff] %v1138
      %1171 = vst [vmem:[#allocation3 + $0x5c0] sm:$0xff] %v1139
      %1172 = vst [vmem:[#allocation3 + $0x608] sm:$0xff] %v1140
      %1173 = vst [vmem:[#allocation3 + $0x650] sm:$0xff] %v1141
      %1174 = vst [vmem:[#allocation3 + $0x698] sm:$0xff] %v1142
      %1175 = vst [vmem:[#allocation3 + $0x6e0] sm:$0xff] %v1143
      %1176 = vst [vmem:[#allocation3 + $0x728] sm:$0xff] %v1144
      %1177 = vst [vmem:[#allocation3 + $0x770] sm:$0xff] %v1145
      %1178 = vst [vmem:[#allocation3 + $0x7b8] sm:$0xff] %v1146
      %1179 = vst [vmem:[#allocation3 + $0x800] sm:$0xff] %v1147
      %1180 = vst [vmem:[#allocation3 + $0x848] sm:$0xff] %v1148
      %1181 = vst [vmem:[#allocation3 + $0x890] sm:$0xff] %v1149
      %1182 = vst [vmem:[#allocation3 + $0x8d8] sm:$0xff] %v1150
      %v1183 = vld [vmem:[%s637 + $0x2] sm:$0xff]
      %v1184 = vld [vmem:[%s637 + $0xa] sm:$0xff]
      %v1185 = vld [vmem:[%s637 + $0x1a] sm:$0xff]
      %v1186 = vld [vmem:[%s637 + $0x22] sm:$0xff]
      %v1187 = vld [vmem:[%s637 + $0x32] sm:$0xff]
      %v1188 = vld [vmem:[%s637 + $0x3a] sm:$0xff]
      %v1189 = vld [vmem:[%s637 + $0x4a] sm:$0xff]
      %v1190 = vld [vmem:[%s637 + $0x52] sm:$0xff]
      %v1191 = vld [vmem:[%s637 + $0x62] sm:$0xff]
      %v1192 = vld [vmem:[%s637 + $0x6a] sm:$0xff]
      %v1193 = vld [vmem:[%s637 + $0x7a] sm:$0xff]
      %v1194 = vld [vmem:[%s637 + $0x82] sm:$0xff]
      %v1195 = vld [vmem:[%s637 + $0x92] sm:$0xff]
      %v1196 = vld [vmem:[%s637 + $0x9a] sm:$0xff]
      %v1197 = vld [vmem:[%s637 + $0xaa] sm:$0xff]
      %v1198 = vld [vmem:[%s637 + $0xb2] sm:$0xff]
      %v1199 = vld [vmem:[%s637 + $0xc2] sm:$0xff]
      %v1200 = vld [vmem:[%s637 + $0xca] sm:$0xff]
      %v1201 = vld [vmem:[%s637 + $0xda] sm:$0xff]
      %v1202 = vld [vmem:[%s637 + $0xe2] sm:$0xff]
      %v1203 = vld [vmem:[%s637 + $0xf2] sm:$0xff]
      %v1204 = vld [vmem:[%s637 + $0xfa] sm:$0xff]
      %v1205 = vld [vmem:[%s637 + $0x10a] sm:$0xff]
      %v1206 = vld [vmem:[%s637 + $0x112] sm:$0xff]
      %v1207 = vld [vmem:[%s637 + $0x122] sm:$0xff]
      %v1208 = vld [vmem:[%s637 + $0x12a] sm:$0xff]
      %v1209 = vld [vmem:[%s637 + $0x13a] sm:$0xff]
      %v1210 = vld [vmem:[%s637 + $0x142] sm:$0xff]
      %v1211 = vld [vmem:[%s637 + $0x152] sm:$0xff]
      %v1212 = vld [vmem:[%s637 + $0x15a] sm:$0xff]
      %v1213 = vld [vmem:[%s637 + $0x16a] sm:$0xff]
      %v1214 = vld [vmem:[%s637 + $0x172] sm:$0xff]
      %1215 = vst [vmem:[#allocation3 + $0x28] sm:$0xff] %v1183
      %1216 = vst [vmem:[#allocation3 + $0x70] sm:$0xff] %v1184
      %1217 = vst [vmem:[#allocation3 + $0xb8] sm:$0xff] %v1185
      %1218 = vst [vmem:[#allocation3 + $0x100] sm:$0xff] %v1186
      %1219 = vst [vmem:[#allocation3 + $0x148] sm:$0xff] %v1187
      %1220 = vst [vmem:[#allocation3 + $0x190] sm:$0xff] %v1188
      %1221 = vst [vmem:[#allocation3 + $0x1d8] sm:$0xff] %v1189
      %1222 = vst [vmem:[#allocation3 + $0x220] sm:$0xff] %v1190
      %1223 = vst [vmem:[#allocation3 + $0x268] sm:$0xff] %v1191
      %1224 = vst [vmem:[#allocation3 + $0x2b0] sm:$0xff] %v1192
      %1225 = vst [vmem:[#allocation3 + $0x2f8] sm:$0xff] %v1193
      %1226 = vst [vmem:[#allocation3 + $0x340] sm:$0xff] %v1194
      %1227 = vst [vmem:[#allocation3 + $0x388] sm:$0xff] %v1195
      %1228 = vst [vmem:[#allocation3 + $0x3d0] sm:$0xff] %v1196
      %1229 = vst [vmem:[#allocation3 + $0x418] sm:$0xff] %v1197
      %1230 = vst [vmem:[#allocation3 + $0x460] sm:$0xff] %v1198
      %1231 = vst [vmem:[#allocation3 + $0x4a8] sm:$0xff] %v1199
      %1232 = vst [vmem:[#allocation3 + $0x4f0] sm:$0xff] %v1200
      %1233 = vst [vmem:[#allocation3 + $0x538] sm:$0xff] %v1201
      %1234 = vst [vmem:[#allocation3 + $0x580] sm:$0xff] %v1202
      %1235 = vst [vmem:[#allocation3 + $0x5c8] sm:$0xff] %v1203
      %1236 = vst [vmem:[#allocation3 + $0x610] sm:$0xff] %v1204
      %1237 = vst [vmem:[#allocation3 + $0x658] sm:$0xff] %v1205
      %1238 = vst [vmem:[#allocation3 + $0x6a0] sm:$0xff] %v1206
      %1239 = vst [vmem:[#allocation3 + $0x6e8] sm:$0xff] %v1207
      %1240 = vst [vmem:[#allocation3 + $0x730] sm:$0xff] %v1208
      %1241 = vst [vmem:[#allocation3 + $0x778] sm:$0xff] %v1209
      %1242 = vst [vmem:[#allocation3 + $0x7c0] sm:$0xff] %v1210
      %1243 = vst [vmem:[#allocation3 + $0x808] sm:$0xff] %v1211
      %1244 = vst [vmem:[#allocation3 + $0x850] sm:$0xff] %v1212
      %1245 = vst [vmem:[#allocation3 + $0x898] sm:$0xff] %v1213
      %1246 = vst [vmem:[#allocation3 + $0x8e0] sm:$0xff] %v1214
      %s1247 = scalar_lea.vmem [#allocation2], 48
      %v1248 = vld [vmem:[%s1247] sm:$0xff]
      %v1249 = vld [vmem:[%s1247 + $0x8] sm:$0xff]
      %v1250 = vld [vmem:[%s1247 + $0x18] sm:$0xff]
      %v1251 = vld [vmem:[%s1247 + $0x20] sm:$0xff]
      %v1252 = vld [vmem:[%s1247 + $0x30] sm:$0xff]
      %v1253 = vld [vmem:[%s1247 + $0x38] sm:$0xff]
      %v1254 = vld [vmem:[%s1247 + $0x48] sm:$0xff]
      %v1255 = vld [vmem:[%s1247 + $0x50] sm:$0xff]
      %v1256 = vld [vmem:[%s1247 + $0x60] sm:$0xff]
      %v1257 = vld [vmem:[%s1247 + $0x68] sm:$0xff]
      %v1258 = vld [vmem:[%s1247 + $0x78] sm:$0xff]
      %v1259 = vld [vmem:[%s1247 + $0x80] sm:$0xff]
      %v1260 = vld [vmem:[%s1247 + $0x90] sm:$0xff]
      %v1261 = vld [vmem:[%s1247 + $0x98] sm:$0xff]
      %v1262 = vld [vmem:[%s1247 + $0xa8] sm:$0xff]
      %v1263 = vld [vmem:[%s1247 + $0xb0] sm:$0xff]
      %v1264 = vld [vmem:[%s1247 + $0xc0] sm:$0xff]
      %v1265 = vld [vmem:[%s1247 + $0xc8] sm:$0xff]
      %v1266 = vld [vmem:[%s1247 + $0xd8] sm:$0xff]
      %v1267 = vld [vmem:[%s1247 + $0xe0] sm:$0xff]
      %v1268 = vld [vmem:[%s1247 + $0xf0] sm:$0xff]
      %v1269 = vld [vmem:[%s1247 + $0xf8] sm:$0xff]
      %v1270 = vld [vmem:[%s1247 + $0x108] sm:$0xff]
      %v1271 = vld [vmem:[%s1247 + $0x110] sm:$0xff]
      %v1272 = vld [vmem:[%s1247 + $0x120] sm:$0xff]
      %v1273 = vld [vmem:[%s1247 + $0x128] sm:$0xff]
      %v1274 = vld [vmem:[%s1247 + $0x138] sm:$0xff]
      %v1275 = vld [vmem:[%s1247 + $0x140] sm:$0xff]
      %v1276 = vld [vmem:[%s1247 + $0x150] sm:$0xff]
      %v1277 = vld [vmem:[%s1247 + $0x158] sm:$0xff]
      %v1278 = vld [vmem:[%s1247 + $0x168] sm:$0xff]
      %v1279 = vld [vmem:[%s1247 + $0x170] sm:$0xff]
      %1280 = vst [vmem:[#allocation3 + $0x30] sm:$0xff] %v1248
      %1281 = vst [vmem:[#allocation3 + $0x78] sm:$0xff] %v1249
      %1282 = vst [vmem:[#allocation3 + $0xc0] sm:$0xff] %v1250
      %1283 = vst [vmem:[#allocation3 + $0x108] sm:$0xff] %v1251
      %1284 = vst [vmem:[#allocation3 + $0x150] sm:$0xff] %v1252
      %1285 = vst [vmem:[#allocation3 + $0x198] sm:$0xff] %v1253
      %1286 = vst [vmem:[#allocation3 + $0x1e0] sm:$0xff] %v1254
      %1287 = vst [vmem:[#allocation3 + $0x228] sm:$0xff] %v1255
      %1288 = vst [vmem:[#allocation3 + $0x270] sm:$0xff] %v1256
      %1289 = vst [vmem:[#allocation3 + $0x2b8] sm:$0xff] %v1257
      %1290 = vst [vmem:[#allocation3 + $0x300] sm:$0xff] %v1258
      %1291 = vst [vmem:[#allocation3 + $0x348] sm:$0xff] %v1259
      %1292 = vst [vmem:[#allocation3 + $0x390] sm:$0xff] %v1260
      %1293 = vst [vmem:[#allocation3 + $0x3d8] sm:$0xff] %v1261
      %1294 = vst [vmem:[#allocation3 + $0x420] sm:$0xff] %v1262
      %1295 = vst [vmem:[#allocation3 + $0x468] sm:$0xff] %v1263
      %1296 = vst [vmem:[#allocation3 + $0x4b0] sm:$0xff] %v1264
      %1297 = vst [vmem:[#allocation3 + $0x4f8] sm:$0xff] %v1265
      %1298 = vst [vmem:[#allocation3 + $0x540] sm:$0xff] %v1266
      %1299 = vst [vmem:[#allocation3 + $0x588] sm:$0xff] %v1267
      %1300 = vst [vmem:[#allocation3 + $0x5d0] sm:$0xff] %v1268
      %1301 = vst [vmem:[#allocation3 + $0x618] sm:$0xff] %v1269
      %1302 = vst [vmem:[#allocation3 + $0x660] sm:$0xff] %v1270
      %1303 = vst [vmem:[#allocation3 + $0x6a8] sm:$0xff] %v1271
      %1304 = vst [vmem:[#allocation3 + $0x6f0] sm:$0xff] %v1272
      %1305 = vst [vmem:[#allocation3 + $0x738] sm:$0xff] %v1273
      %1306 = vst [vmem:[#allocation3 + $0x780] sm:$0xff] %v1274
      %1307 = vst [vmem:[#allocation3 + $0x7c8] sm:$0xff] %v1275
      %1308 = vst [vmem:[#allocation3 + $0x810] sm:$0xff] %v1276
      %1309 = vst [vmem:[#allocation3 + $0x858] sm:$0xff] %v1277
      %1310 = vst [vmem:[#allocation3 + $0x8a0] sm:$0xff] %v1278
      %1311 = vst [vmem:[#allocation3 + $0x8e8] sm:$0xff] %v1279
      %v1312 = vld [vmem:[%s1247 + $0x1] sm:$0xff]
      %v1313 = vld [vmem:[%s1247 + $0x9] sm:$0xff]
      %v1314 = vld [vmem:[%s1247 + $0x19] sm:$0xff]
      %v1315 = vld [vmem:[%s1247 + $0x21] sm:$0xff]
      %v1316 = vld [vmem:[%s1247 + $0x31] sm:$0xff]
      %v1317 = vld [vmem:[%s1247 + $0x39] sm:$0xff]
      %v1318 = vld [vmem:[%s1247 + $0x49] sm:$0xff]
      %v1319 = vld [vmem:[%s1247 + $0x51] sm:$0xff]
      %v1320 = vld [vmem:[%s1247 + $0x61] sm:$0xff]
      %v1321 = vld [vmem:[%s1247 + $0x69] sm:$0xff]
      %v1322 = vld [vmem:[%s1247 + $0x79] sm:$0xff]
      %v1323 = vld [vmem:[%s1247 + $0x81] sm:$0xff]
      %v1324 = vld [vmem:[%s1247 + $0x91] sm:$0xff]
      %v1325 = vld [vmem:[%s1247 + $0x99] sm:$0xff]
      %v1326 = vld [vmem:[%s1247 + $0xa9] sm:$0xff]
      %v1327 = vld [vmem:[%s1247 + $0xb1] sm:$0xff]
      %v1328 = vld [vmem:[%s1247 + $0xc1] sm:$0xff]
      %v1329 = vld [vmem:[%s1247 + $0xc9] sm:$0xff]
      %v1330 = vld [vmem:[%s1247 + $0xd9] sm:$0xff]
      %v1331 = vld [vmem:[%s1247 + $0xe1] sm:$0xff]
      %v1332 = vld [vmem:[%s1247 + $0xf1] sm:$0xff]
      %v1333 = vld [vmem:[%s1247 + $0xf9] sm:$0xff]
      %v1334 = vld [vmem:[%s1247 + $0x109] sm:$0xff]
      %v1335 = vld [vmem:[%s1247 + $0x111] sm:$0xff]
      %v1336 = vld [vmem:[%s1247 + $0x121] sm:$0xff]
      %v1337 = vld [vmem:[%s1247 + $0x129] sm:$0xff]
      %v1338 = vld [vmem:[%s1247 + $0x139] sm:$0xff]
      %v1339 = vld [vmem:[%s1247 + $0x141] sm:$0xff]
      %v1340 = vld [vmem:[%s1247 + $0x151] sm:$0xff]
      %v1341 = vld [vmem:[%s1247 + $0x159] sm:$0xff]
      %v1342 = vld [vmem:[%s1247 + $0x169] sm:$0xff]
      %v1343 = vld [vmem:[%s1247 + $0x171] sm:$0xff]
      %1344 = vst [vmem:[#allocation3 + $0x38] sm:$0xff] %v1312
      %1345 = vst [vmem:[#allocation3 + $0x80] sm:$0xff] %v1313
      %1346 = vst [vmem:[#allocation3 + $0xc8] sm:$0xff] %v1314
      %1347 = vst [vmem:[#allocation3 + $0x110] sm:$0xff] %v1315
      %1348 = vst [vmem:[#allocation3 + $0x158] sm:$0xff] %v1316
      %1349 = vst [vmem:[#allocation3 + $0x1a0] sm:$0xff] %v1317
      %1350 = vst [vmem:[#allocation3 + $0x1e8] sm:$0xff] %v1318
      %1351 = vst [vmem:[#allocation3 + $0x230] sm:$0xff] %v1319
      %1352 = vst [vmem:[#allocation3 + $0x278] sm:$0xff] %v1320
      %1353 = vst [vmem:[#allocation3 + $0x2c0] sm:$0xff] %v1321
      %1354 = vst [vmem:[#allocation3 + $0x308] sm:$0xff] %v1322
      %1355 = vst [vmem:[#allocation3 + $0x350] sm:$0xff] %v1323
      %1356 = vst [vmem:[#allocation3 + $0x398] sm:$0xff] %v1324
      %1357 = vst [vmem:[#allocation3 + $0x3e0] sm:$0xff] %v1325
      %1358 = vst [vmem:[#allocation3 + $0x428] sm:$0xff] %v1326
      %1359 = vst [vmem:[#allocation3 + $0x470] sm:$0xff] %v1327
      %1360 = vst [vmem:[#allocation3 + $0x4b8] sm:$0xff] %v1328
      %1361 = vst [vmem:[#allocation3 + $0x500] sm:$0xff] %v1329
      %1362 = vst [vmem:[#allocation3 + $0x548] sm:$0xff] %v1330
      %1363 = vst [vmem:[#allocation3 + $0x590] sm:$0xff] %v1331
      %1364 = vst [vmem:[#allocation3 + $0x5d8] sm:$0xff] %v1332
      %1365 = vst [vmem:[#allocation3 + $0x620] sm:$0xff] %v1333
      %1366 = vst [vmem:[#allocation3 + $0x668] sm:$0xff] %v1334
      %1367 = vst [vmem:[#allocation3 + $0x6b0] sm:$0xff] %v1335
      %1368 = vst [vmem:[#allocation3 + $0x6f8] sm:$0xff] %v1336
      %1369 = vst [vmem:[#allocation3 + $0x740] sm:$0xff] %v1337
      %1370 = vst [vmem:[#allocation3 + $0x788] sm:$0xff] %v1338
      %1371 = vst [vmem:[#allocation3 + $0x7d0] sm:$0xff] %v1339
      %1372 = vst [vmem:[#allocation3 + $0x818] sm:$0xff] %v1340
      %1373 = vst [vmem:[#allocation3 + $0x860] sm:$0xff] %v1341
      %1374 = vst [vmem:[#allocation3 + $0x8a8] sm:$0xff] %v1342
      %1375 = vst [vmem:[#allocation3 + $0x8f0] sm:$0xff] %v1343
      %v1376 = vld [vmem:[%s1247 + $0x2] sm:$0xff]
      %v1377 = vld [vmem:[%s1247 + $0xa] sm:$0xff]
      %v1378 = vld [vmem:[%s1247 + $0x1a] sm:$0xff]
      %v1379 = vld [vmem:[%s1247 + $0x22] sm:$0xff]
      %v1380 = vld [vmem:[%s1247 + $0x32] sm:$0xff]
      %v1381 = vld [vmem:[%s1247 + $0x3a] sm:$0xff]
      %v1382 = vld [vmem:[%s1247 + $0x4a] sm:$0xff]
      %v1383 = vld [vmem:[%s1247 + $0x52] sm:$0xff]
      %v1384 = vld [vmem:[%s1247 + $0x62] sm:$0xff]
      %v1385 = vld [vmem:[%s1247 + $0x6a] sm:$0xff]
      %v1386 = vld [vmem:[%s1247 + $0x7a] sm:$0xff]
      %v1387 = vld [vmem:[%s1247 + $0x82] sm:$0xff]
      %v1388 = vld [vmem:[%s1247 + $0x92] sm:$0xff]
      %v1389 = vld [vmem:[%s1247 + $0x9a] sm:$0xff]
      %v1390 = vld [vmem:[%s1247 + $0xaa] sm:$0xff]
      %v1391 = vld [vmem:[%s1247 + $0xb2] sm:$0xff]
      %v1392 = vld [vmem:[%s1247 + $0xc2] sm:$0xff]
      %v1393 = vld [vmem:[%s1247 + $0xca] sm:$0xff]
      %v1394 = vld [vmem:[%s1247 + $0xda] sm:$0xff]
      %v1395 = vld [vmem:[%s1247 + $0xe2] sm:$0xff]
      %v1396 = vld [vmem:[%s1247 + $0xf2] sm:$0xff]
      %v1397 = vld [vmem:[%s1247 + $0xfa] sm:$0xff]
      %v1398 = vld [vmem:[%s1247 + $0x10a] sm:$0xff]
      %v1399 = vld [vmem:[%s1247 + $0x112] sm:$0xff]
      %v1400 = vld [vmem:[%s1247 + $0x122] sm:$0xff]
      %v1401 = vld [vmem:[%s1247 + $0x12a] sm:$0xff]
      %v1402 = vld [vmem:[%s1247 + $0x13a] sm:$0xff]
      %v1403 = vld [vmem:[%s1247 + $0x142] sm:$0xff]
      %v1404 = vld [vmem:[%s1247 + $0x152] sm:$0xff]
      %v1405 = vld [vmem:[%s1247 + $0x15a] sm:$0xff]
      %v1406 = vld [vmem:[%s1247 + $0x16a] sm:$0xff]
      %v1407 = vld [vmem:[%s1247 + $0x172] sm:$0xff]
      %1408 = vst [vmem:[#allocation3 + $0x40] sm:$0xff] %v1376
      %1409 = vst [vmem:[#allocation3 + $0x88] sm:$0xff] %v1377
      %1410 = vst [vmem:[#allocation3 + $0xd0] sm:$0xff] %v1378
      %1411 = vst [vmem:[#allocation3 + $0x118] sm:$0xff] %v1379
      %1412 = vst [vmem:[#allocation3 + $0x160] sm:$0xff] %v1380
      %1413 = vst [vmem:[#allocation3 + $0x1a8] sm:$0xff] %v1381
      %1414 = vst [vmem:[#allocation3 + $0x1f0] sm:$0xff] %v1382
      %1415 = vst [vmem:[#allocation3 + $0x238] sm:$0xff] %v1383
      %1416 = vst [vmem:[#allocation3 + $0x280] sm:$0xff] %v1384
      %1417 = vst [vmem:[#allocation3 + $0x2c8] sm:$0xff] %v1385
      %1418 = vst [vmem:[#allocation3 + $0x310] sm:$0xff] %v1386
      %1419 = vst [vmem:[#allocation3 + $0x358] sm:$0xff] %v1387
      %1420 = vst [vmem:[#allocation3 + $0x3a0] sm:$0xff] %v1388
      %1421 = vst [vmem:[#allocation3 + $0x3e8] sm:$0xff] %v1389
      %1422 = vst [vmem:[#allocation3 + $0x430] sm:$0xff] %v1390
      %1423 = vst [vmem:[#allocation3 + $0x478] sm:$0xff] %v1391
      %1424 = vst [vmem:[#allocation3 + $0x4c0] sm:$0xff] %v1392
      %1425 = vst [vmem:[#allocation3 + $0x508] sm:$0xff] %v1393
      %1426 = vst [vmem:[#allocation3 + $0x550] sm:$0xff] %v1394
      %1427 = vst [vmem:[#allocation3 + $0x598] sm:$0xff] %v1395
      %1428 = vst [vmem:[#allocation3 + $0x5e0] sm:$0xff] %v1396
      %1429 = vst [vmem:[#allocation3 + $0x628] sm:$0xff] %v1397
      %1430 = vst [vmem:[#allocation3 + $0x670] sm:$0xff] %v1398
      %1431 = vst [vmem:[#allocation3 + $0x6b8] sm:$0xff] %v1399
      %1432 = vst [vmem:[#allocation3 + $0x700] sm:$0xff] %v1400
      %1433 = vst [vmem:[#allocation3 + $0x748] sm:$0xff] %v1401
      %1434 = vst [vmem:[#allocation3 + $0x790] sm:$0xff] %v1402
      %1435 = vst [vmem:[#allocation3 + $0x7d8] sm:$0xff] %v1403
      %1436 = vst [vmem:[#allocation3 + $0x820] sm:$0xff] %v1404
      %1437 = vst [vmem:[#allocation3 + $0x868] sm:$0xff] %v1405
      %1438 = vst [vmem:[#allocation3 + $0x8b0] sm:$0xff] %v1406
      %1439 = vst [vmem:[#allocation3 + $0x8f8] sm:$0xff] %v1407
      %v1440 = vld [vmem:[#allocation3] sm:$0xff]
      %v1441 = vld [vmem:[#allocation3 + $0x8] sm:$0xff]
      %v1442 = vld [vmem:[#allocation3 + $0x10] sm:$0xff]
      %v1443 = vld [vmem:[#allocation3 + $0x18] sm:$0xff]
      %v1444 = vld [vmem:[#allocation3 + $0x20] sm:$0xff]
      %v1445 = vld [vmem:[#allocation3 + $0x28] sm:$0xff]
      %v1446 = vld [vmem:[#allocation3 + $0x30] sm:$0xff]
      %v1447 = vld [vmem:[#allocation3 + $0x38] sm:$0xff]
      %v1448 = vld [vmem:[#allocation3 + $0x40] sm:$0xff]
      %v1449 = vld [vmem:[#allocation3 + $0x48] sm:$0xff]
      %v1450 = vld [vmem:[#allocation3 + $0x50] sm:$0xff]
      %v1451 = vld [vmem:[#allocation3 + $0x58] sm:$0xff]
      %v1452 = vld [vmem:[#allocation3 + $0x60] sm:$0xff]
      %v1453 = vld [vmem:[#allocation3 + $0x68] sm:$0xff]
      %v1454 = vld [vmem:[#allocation3 + $0x70] sm:$0xff]
      %v1455 = vld [vmem:[#allocation3 + $0x78] sm:$0xff]
      %v1456 = vld [vmem:[#allocation3 + $0x80] sm:$0xff]
      %v1457 = vld [vmem:[#allocation3 + $0x88] sm:$0xff]
      %v1458 = vld [vmem:[#allocation3 + $0x90] sm:$0xff]
      %v1459 = vld [vmem:[#allocation3 + $0x98] sm:$0xff]
      %v1460 = vld [vmem:[#allocation3 + $0xa0] sm:$0xff]
      %v1461 = vld [vmem:[#allocation3 + $0xa8] sm:$0xff]
      %v1462 = vld [vmem:[#allocation3 + $0xb0] sm:$0xff]
      %v1463 = vld [vmem:[#allocation3 + $0xb8] sm:$0xff]
      %v1464 = vld [vmem:[#allocation3 + $0xc0] sm:$0xff]
      %v1465 = vld [vmem:[#allocation3 + $0xc8] sm:$0xff]
      %v1466 = vld [vmem:[#allocation3 + $0xd0] sm:$0xff]
      %v1467 = vld [vmem:[#allocation3 + $0xd8] sm:$0xff]
      %v1468 = vld [vmem:[#allocation3 + $0xe0] sm:$0xff]
      %v1469 = vld [vmem:[#allocation3 + $0xe8] sm:$0xff]
      %v1470 = vld [vmem:[#allocation3 + $0xf0] sm:$0xff]
      %v1471 = vld [vmem:[#allocation3 + $0xf8] sm:$0xff]
      %v1472 = vld [vmem:[#allocation3 + $0x100] sm:$0xff]
      %v1473 = vld [vmem:[#allocation3 + $0x108] sm:$0xff]
      %v1474 = vld [vmem:[#allocation3 + $0x110] sm:$0xff]
      %v1475 = vld [vmem:[#allocation3 + $0x118] sm:$0xff]
      %v1476 = vld [vmem:[#allocation3 + $0x120] sm:$0xff]
      %v1477 = vld [vmem:[#allocation3 + $0x128] sm:$0xff]
      %v1478 = vld [vmem:[#allocation3 + $0x130] sm:$0xff]
      %v1479 = vld [vmem:[#allocation3 + $0x138] sm:$0xff]
      %v1480 = vld [vmem:[#allocation3 + $0x140] sm:$0xff]
      %v1481 = vld [vmem:[#allocation3 + $0x148] sm:$0xff]
      %v1482 = vld [vmem:[#allocation3 + $0x150] sm:$0xff]
      %v1483 = vld [vmem:[#allocation3 + $0x158] sm:$0xff]
      %v1484 = vld [vmem:[#allocation3 + $0x160] sm:$0xff]
      %v1485 = vld [vmem:[#allocation3 + $0x168] sm:$0xff]
      %v1486 = vld [vmem:[#allocation3 + $0x170] sm:$0xff]
      %v1487 = vld [vmem:[#allocation3 + $0x178] sm:$0xff]
      %v1488 = vld [vmem:[#allocation3 + $0x180] sm:$0xff]
      %v1489 = vld [vmem:[#allocation3 + $0x188] sm:$0xff]
      %v1490 = vld [vmem:[#allocation3 + $0x190] sm:$0xff]
      %v1491 = vld [vmem:[#allocation3 + $0x198] sm:$0xff]
      %v1492 = vld [vmem:[#allocation3 + $0x1a0] sm:$0xff]
      %v1493 = vld [vmem:[#allocation3 + $0x1a8] sm:$0xff]
      %v1494 = vld [vmem:[#allocation3 + $0x1b0] sm:$0xff]
      %v1495 = vld [vmem:[#allocation3 + $0x1b8] sm:$0xff]
      %v1496 = vld [vmem:[#allocation3 + $0x1c0] sm:$0xff]
      %v1497 = vld [vmem:[#allocation3 + $0x1c8] sm:$0xff]
      %v1498 = vld [vmem:[#allocation3 + $0x1d0] sm:$0xff]
      %v1499 = vld [vmem:[#allocation3 + $0x1d8] sm:$0xff]
      %v1500 = vld [vmem:[#allocation3 + $0x1e0] sm:$0xff]
      %v1501 = vld [vmem:[#allocation3 + $0x1e8] sm:$0xff]
      %v1502 = vld [vmem:[#allocation3 + $0x1f0] sm:$0xff]
      %v1503 = vld [vmem:[#allocation3 + $0x1f8] sm:$0xff]
      %v1504 = vld [vmem:[#allocation3 + $0x200] sm:$0xff]
      %v1505 = vld [vmem:[#allocation3 + $0x208] sm:$0xff]
      %v1506 = vld [vmem:[#allocation3 + $0x210] sm:$0xff]
      %v1507 = vld [vmem:[#allocation3 + $0x218] sm:$0xff]
      %v1508 = vld [vmem:[#allocation3 + $0x220] sm:$0xff]
      %v1509 = vld [vmem:[#allocation3 + $0x228] sm:$0xff]
      %v1510 = vld [vmem:[#allocation3 + $0x230] sm:$0xff]
      %v1511 = vld [vmem:[#allocation3 + $0x238] sm:$0xff]
      %v1512 = vld [vmem:[#allocation3 + $0x240] sm:$0xff]
      %v1513 = vld [vmem:[#allocation3 + $0x248] sm:$0xff]
      %v1514 = vld [vmem:[#allocation3 + $0x250] sm:$0xff]
      %v1515 = vld [vmem:[#allocation3 + $0x258] sm:$0xff]
      %v1516 = vld [vmem:[#allocation3 + $0x260] sm:$0xff]
      %v1517 = vld [vmem:[#allocation3 + $0x268] sm:$0xff]
      %v1518 = vld [vmem:[#allocation3 + $0x270] sm:$0xff]
      %v1519 = vld [vmem:[#allocation3 + $0x278] sm:$0xff]
      %v1520 = vld [vmem:[#allocation3 + $0x280] sm:$0xff]
      %v1521 = vld [vmem:[#allocation3 + $0x288] sm:$0xff]
      %v1522 = vld [vmem:[#allocation3 + $0x290] sm:$0xff]
      %v1523 = vld [vmem:[#allocation3 + $0x298] sm:$0xff]
      %v1524 = vld [vmem:[#allocation3 + $0x2a0] sm:$0xff]
      %v1525 = vld [vmem:[#allocation3 + $0x2a8] sm:$0xff]
      %v1526 = vld [vmem:[#allocation3 + $0x2b0] sm:$0xff]
      %v1527 = vld [vmem:[#allocation3 + $0x2b8] sm:$0xff]
      %v1528 = vld [vmem:[#allocation3 + $0x2c0] sm:$0xff]
      %v1529 = vld [vmem:[#allocation3 + $0x2c8] sm:$0xff]
      %v1530 = vld [vmem:[#allocation3 + $0x2d0] sm:$0xff]
      %v1531 = vld [vmem:[#allocation3 + $0x2d8] sm:$0xff]
      %v1532 = vld [vmem:[#allocation3 + $0x2e0] sm:$0xff]
      %v1533 = vld [vmem:[#allocation3 + $0x2e8] sm:$0xff]
      %v1534 = vld [vmem:[#allocation3 + $0x2f0] sm:$0xff]
      %v1535 = vld [vmem:[#allocation3 + $0x2f8] sm:$0xff]
      %v1536 = vld [vmem:[#allocation3 + $0x300] sm:$0xff]
      %v1537 = vld [vmem:[#allocation3 + $0x308] sm:$0xff]
      %v1538 = vld [vmem:[#allocation3 + $0x310] sm:$0xff]
      %v1539 = vld [vmem:[#allocation3 + $0x318] sm:$0xff]
      %v1540 = vld [vmem:[#allocation3 + $0x320] sm:$0xff]
      %v1541 = vld [vmem:[#allocation3 + $0x328] sm:$0xff]
      %v1542 = vld [vmem:[#allocation3 + $0x330] sm:$0xff]
      %v1543 = vld [vmem:[#allocation3 + $0x338] sm:$0xff]
      %v1544 = vld [vmem:[#allocation3 + $0x340] sm:$0xff]
      %v1545 = vld [vmem:[#allocation3 + $0x348] sm:$0xff]
      %v1546 = vld [vmem:[#allocation3 + $0x350] sm:$0xff]
      %v1547 = vld [vmem:[#allocation3 + $0x358] sm:$0xff]
      %v1548 = vld [vmem:[#allocation3 + $0x360] sm:$0xff]
      %v1549 = vld [vmem:[#allocation3 + $0x368] sm:$0xff]
      %v1550 = vld [vmem:[#allocation3 + $0x370] sm:$0xff]
      %v1551 = vld [vmem:[#allocation3 + $0x378] sm:$0xff]
      %v1552 = vld [vmem:[#allocation3 + $0x380] sm:$0xff]
      %v1553 = vld [vmem:[#allocation3 + $0x388] sm:$0xff]
      %v1554 = vld [vmem:[#allocation3 + $0x390] sm:$0xff]
      %v1555 = vld [vmem:[#allocation3 + $0x398] sm:$0xff]
      %v1556 = vld [vmem:[#allocation3 + $0x3a0] sm:$0xff]
      %v1557 = vld [vmem:[#allocation3 + $0x3a8] sm:$0xff]
      %v1558 = vld [vmem:[#allocation3 + $0x3b0] sm:$0xff]
      %v1559 = vld [vmem:[#allocation3 + $0x3b8] sm:$0xff]
      %v1560 = vld [vmem:[#allocation3 + $0x3c0] sm:$0xff]
      %v1561 = vld [vmem:[#allocation3 + $0x3c8] sm:$0xff]
      %v1562 = vld [vmem:[#allocation3 + $0x3d0] sm:$0xff]
      %v1563 = vld [vmem:[#allocation3 + $0x3d8] sm:$0xff]
      %v1564 = vld [vmem:[#allocation3 + $0x3e0] sm:$0xff]
      %v1565 = vld [vmem:[#allocation3 + $0x3e8] sm:$0xff]
      %v1566 = vld [vmem:[#allocation3 + $0x3f0] sm:$0xff]
      %v1567 = vld [vmem:[#allocation3 + $0x3f8] sm:$0xff]
      %v1568 = vld [vmem:[#allocation3 + $0x400] sm:$0xff]
      %v1569 = vld [vmem:[#allocation3 + $0x408] sm:$0xff]
      %v1570 = vld [vmem:[#allocation3 + $0x410] sm:$0xff]
      %v1571 = vld [vmem:[#allocation3 + $0x418] sm:$0xff]
      %v1572 = vld [vmem:[#allocation3 + $0x420] sm:$0xff]
      %v1573 = vld [vmem:[#allocation3 + $0x428] sm:$0xff]
      %v1574 = vld [vmem:[#allocation3 + $0x430] sm:$0xff]
      %v1575 = vld [vmem:[#allocation3 + $0x438] sm:$0xff]
      %v1576 = vld [vmem:[#allocation3 + $0x440] sm:$0xff]
      %v1577 = vld [vmem:[#allocation3 + $0x448] sm:$0xff]
      %v1578 = vld [vmem:[#allocation3 + $0x450] sm:$0xff]
      %v1579 = vld [vmem:[#allocation3 + $0x458] sm:$0xff]
      %v1580 = vld [vmem:[#allocation3 + $0x460] sm:$0xff]
      %v1581 = vld [vmem:[#allocation3 + $0x468] sm:$0xff]
      %v1582 = vld [vmem:[#allocation3 + $0x470] sm:$0xff]
      %v1583 = vld [vmem:[#allocation3 + $0x478] sm:$0xff]
      %v1584 = vld [vmem:[#allocation3 + $0x480] sm:$0xff]
      %v1585 = vld [vmem:[#allocation3 + $0x488] sm:$0xff]
      %v1586 = vld [vmem:[#allocation3 + $0x490] sm:$0xff]
      %v1587 = vld [vmem:[#allocation3 + $0x498] sm:$0xff]
      %v1588 = vld [vmem:[#allocation3 + $0x4a0] sm:$0xff]
      %v1589 = vld [vmem:[#allocation3 + $0x4a8] sm:$0xff]
      %v1590 = vld [vmem:[#allocation3 + $0x4b0] sm:$0xff]
      %v1591 = vld [vmem:[#allocation3 + $0x4b8] sm:$0xff]
      %v1592 = vld [vmem:[#allocation3 + $0x4c0] sm:$0xff]
      %v1593 = vld [vmem:[#allocation3 + $0x4c8] sm:$0xff]
      %v1594 = vld [vmem:[#allocation3 + $0x4d0] sm:$0xff]
      %v1595 = vld [vmem:[#allocation3 + $0x4d8] sm:$0xff]
      %v1596 = vld [vmem:[#allocation3 + $0x4e0] sm:$0xff]
      %v1597 = vld [vmem:[#allocation3 + $0x4e8] sm:$0xff]
      %v1598 = vld [vmem:[#allocation3 + $0x4f0] sm:$0xff]
      %v1599 = vld [vmem:[#allocation3 + $0x4f8] sm:$0xff]
      %v1600 = vld [vmem:[#allocation3 + $0x500] sm:$0xff]
      %v1601 = vld [vmem:[#allocation3 + $0x508] sm:$0xff]
      %v1602 = vld [vmem:[#allocation3 + $0x510] sm:$0xff]
      %v1603 = vld [vmem:[#allocation3 + $0x518] sm:$0xff]
      %v1604 = vld [vmem:[#allocation3 + $0x520] sm:$0xff]
      %v1605 = vld [vmem:[#allocation3 + $0x528] sm:$0xff]
      %v1606 = vld [vmem:[#allocation3 + $0x530] sm:$0xff]
      %v1607 = vld [vmem:[#allocation3 + $0x538] sm:$0xff]
      %v1608 = vld [vmem:[#allocation3 + $0x540] sm:$0xff]
      %v1609 = vld [vmem:[#allocation3 + $0x548] sm:$0xff]
      %v1610 = vld [vmem:[#allocation3 + $0x550] sm:$0xff]
      %v1611 = vld [vmem:[#allocation3 + $0x558] sm:$0xff]
      %v1612 = vld [vmem:[#allocation3 + $0x560] sm:$0xff]
      %v1613 = vld [vmem:[#allocation3 + $0x568] sm:$0xff]
      %v1614 = vld [vmem:[#allocation3 + $0x570] sm:$0xff]
      %v1615 = vld [vmem:[#allocation3 + $0x578] sm:$0xff]
      %v1616 = vld [vmem:[#allocation3 + $0x580] sm:$0xff]
      %v1617 = vld [vmem:[#allocation3 + $0x588] sm:$0xff]
      %v1618 = vld [vmem:[#allocation3 + $0x590] sm:$0xff]
      %v1619 = vld [vmem:[#allocation3 + $0x598] sm:$0xff]
      %v1620 = vld [vmem:[#allocation3 + $0x5a0] sm:$0xff]
      %v1621 = vld [vmem:[#allocation3 + $0x5a8] sm:$0xff]
      %v1622 = vld [vmem:[#allocation3 + $0x5b0] sm:$0xff]
      %v1623 = vld [vmem:[#allocation3 + $0x5b8] sm:$0xff]
      %v1624 = vld [vmem:[#allocation3 + $0x5c0] sm:$0xff]
      %v1625 = vld [vmem:[#allocation3 + $0x5c8] sm:$0xff]
      %v1626 = vld [vmem:[#allocation3 + $0x5d0] sm:$0xff]
      %v1627 = vld [vmem:[#allocation3 + $0x5d8] sm:$0xff]
      %v1628 = vld [vmem:[#allocation3 + $0x5e0] sm:$0xff]
      %v1629 = vld [vmem:[#allocation3 + $0x5e8] sm:$0xff]
      %v1630 = vld [vmem:[#allocation3 + $0x5f0] sm:$0xff]
      %v1631 = vld [vmem:[#allocation3 + $0x5f8] sm:$0xff]
      %v1632 = vld [vmem:[#allocation3 + $0x600] sm:$0xff]
      %v1633 = vld [vmem:[#allocation3 + $0x608] sm:$0xff]
      %v1634 = vld [vmem:[#allocation3 + $0x610] sm:$0xff]
      %v1635 = vld [vmem:[#allocation3 + $0x618] sm:$0xff]
      %v1636 = vld [vmem:[#allocation3 + $0x620] sm:$0xff]
      %v1637 = vld [vmem:[#allocation3 + $0x628] sm:$0xff]
      %v1638 = vld [vmem:[#allocation3 + $0x630] sm:$0xff]
      %v1639 = vld [vmem:[#allocation3 + $0x638] sm:$0xff]
      %v1640 = vld [vmem:[#allocation3 + $0x640] sm:$0xff]
      %v1641 = vld [vmem:[#allocation3 + $0x648] sm:$0xff]
      %v1642 = vld [vmem:[#allocation3 + $0x650] sm:$0xff]
      %v1643 = vld [vmem:[#allocation3 + $0x658] sm:$0xff]
      %v1644 = vld [vmem:[#allocation3 + $0x660] sm:$0xff]
      %v1645 = vld [vmem:[#allocation3 + $0x668] sm:$0xff]
      %v1646 = vld [vmem:[#allocation3 + $0x670] sm:$0xff]
      %v1647 = vld [vmem:[#allocation3 + $0x678] sm:$0xff]
      %v1648 = vld [vmem:[#allocation3 + $0x680] sm:$0xff]
      %v1649 = vld [vmem:[#allocation3 + $0x688] sm:$0xff]
      %v1650 = vld [vmem:[#allocation3 + $0x690] sm:$0xff]
      %v1651 = vld [vmem:[#allocation3 + $0x698] sm:$0xff]
      %v1652 = vld [vmem:[#allocation3 + $0x6a0] sm:$0xff]
      %v1653 = vld [vmem:[#allocation3 + $0x6a8] sm:$0xff]
      %v1654 = vld [vmem:[#allocation3 + $0x6b0] sm:$0xff]
      %v1655 = vld [vmem:[#allocation3 + $0x6b8] sm:$0xff]
      %v1656 = vld [vmem:[#allocation3 + $0x6c0] sm:$0xff]
      %v1657 = vld [vmem:[#allocation3 + $0x6c8] sm:$0xff]
      %v1658 = vld [vmem:[#allocation3 + $0x6d0] sm:$0xff]
      %v1659 = vld [vmem:[#allocation3 + $0x6d8] sm:$0xff]
      %v1660 = vld [vmem:[#allocation3 + $0x6e0] sm:$0xff]
      %v1661 = vld [vmem:[#allocation3 + $0x6e8] sm:$0xff]
      %v1662 = vld [vmem:[#allocation3 + $0x6f0] sm:$0xff]
      %v1663 = vld [vmem:[#allocation3 + $0x6f8] sm:$0xff]
      %v1664 = vld [vmem:[#allocation3 + $0x700] sm:$0xff]
      %v1665 = vld [vmem:[#allocation3 + $0x708] sm:$0xff]
      %v1666 = vld [vmem:[#allocation3 + $0x710] sm:$0xff]
      %v1667 = vld [vmem:[#allocation3 + $0x718] sm:$0xff]
      %v1668 = vld [vmem:[#allocation3 + $0x720] sm:$0xff]
      %v1669 = vld [vmem:[#allocation3 + $0x728] sm:$0xff]
      %v1670 = vld [vmem:[#allocation3 + $0x730] sm:$0xff]
      %v1671 = vld [vmem:[#allocation3 + $0x738] sm:$0xff]
      %v1672 = vld [vmem:[#allocation3 + $0x740] sm:$0xff]
      %v1673 = vld [vmem:[#allocation3 + $0x748] sm:$0xff]
      %v1674 = vld [vmem:[#allocation3 + $0x750] sm:$0xff]
      %v1675 = vld [vmem:[#allocation3 + $0x758] sm:$0xff]
      %v1676 = vld [vmem:[#allocation3 + $0x760] sm:$0xff]
      %v1677 = vld [vmem:[#allocation3 + $0x768] sm:$0xff]
      %v1678 = vld [vmem:[#allocation3 + $0x770] sm:$0xff]
      %v1679 = vld [vmem:[#allocation3 + $0x778] sm:$0xff]
      %v1680 = vld [vmem:[#allocation3 + $0x780] sm:$0xff]
      %v1681 = vld [vmem:[#allocation3 + $0x788] sm:$0xff]
      %v1682 = vld [vmem:[#allocation3 + $0x790] sm:$0xff]
      %v1683 = vld [vmem:[#allocation3 + $0x798] sm:$0xff]
      %v1684 = vld [vmem:[#allocation3 + $0x7a0] sm:$0xff]
      %v1685 = vld [vmem:[#allocation3 + $0x7a8] sm:$0xff]
      %v1686 = vld [vmem:[#allocation3 + $0x7b0] sm:$0xff]
      %v1687 = vld [vmem:[#allocation3 + $0x7b8] sm:$0xff]
      %v1688 = vld [vmem:[#allocation3 + $0x7c0] sm:$0xff]
      %v1689 = vld [vmem:[#allocation3 + $0x7c8] sm:$0xff]
      %v1690 = vld [vmem:[#allocation3 + $0x7d0] sm:$0xff]
      %v1691 = vld [vmem:[#allocation3 + $0x7d8] sm:$0xff]
      %v1692 = vld [vmem:[#allocation3 + $0x7e0] sm:$0xff]
      %v1693 = vld [vmem:[#allocation3 + $0x7e8] sm:$0xff]
      %v1694 = vld [vmem:[#allocation3 + $0x7f0] sm:$0xff]
      %v1695 = vld [vmem:[#allocation3 + $0x7f8] sm:$0xff]
      %v1696 = vld [vmem:[#allocation3 + $0x800] sm:$0xff]
      %v1697 = vld [vmem:[#allocation3 + $0x808] sm:$0xff]
      %v1698 = vld [vmem:[#allocation3 + $0x810] sm:$0xff]
      %v1699 = vld [vmem:[#allocation3 + $0x818] sm:$0xff]
      %v1700 = vld [vmem:[#allocation3 + $0x820] sm:$0xff]
      %v1701 = vld [vmem:[#allocation3 + $0x828] sm:$0xff]
      %v1702 = vld [vmem:[#allocation3 + $0x830] sm:$0xff]
      %v1703 = vld [vmem:[#allocation3 + $0x838] sm:$0xff]
      %v1704 = vld [vmem:[#allocation3 + $0x840] sm:$0xff]
      %v1705 = vld [vmem:[#allocation3 + $0x848] sm:$0xff]
      %v1706 = vld [vmem:[#allocation3 + $0x850] sm:$0xff]
      %v1707 = vld [vmem:[#allocation3 + $0x858] sm:$0xff]
      %v1708 = vld [vmem:[#allocation3 + $0x860] sm:$0xff]
      %v1709 = vld [vmem:[#allocation3 + $0x868] sm:$0xff]
      %v1710 = vld [vmem:[#allocation3 + $0x870] sm:$0xff]
      %v1711 = vld [vmem:[#allocation3 + $0x878] sm:$0xff]
      %v1712 = vld [vmem:[#allocation3 + $0x880] sm:$0xff]
      %v1713 = vld [vmem:[#allocation3 + $0x888] sm:$0xff]
      %v1714 = vld [vmem:[#allocation3 + $0x890] sm:$0xff]
      %v1715 = vld [vmem:[#allocation3 + $0x898] sm:$0xff]
      %v1716 = vld [vmem:[#allocation3 + $0x8a0] sm:$0xff]
      %v1717 = vld [vmem:[#allocation3 + $0x8a8] sm:$0xff]
      %v1718 = vld [vmem:[#allocation3 + $0x8b0] sm:$0xff]
      %v1719 = vld [vmem:[#allocation3 + $0x8b8] sm:$0xff]
      %v1720 = vld [vmem:[#allocation3 + $0x8c0] sm:$0xff]
      %v1721 = vld [vmem:[#allocation3 + $0x8c8] sm:$0xff]
      %v1722 = vld [vmem:[#allocation3 + $0x8d0] sm:$0xff]
      %v1723 = vld [vmem:[#allocation3 + $0x8d8] sm:$0xff]
      %v1724 = vld [vmem:[#allocation3 + $0x8e0] sm:$0xff]
      %v1725 = vld [vmem:[#allocation3 + $0x8e8] sm:$0xff]
      %v1726 = vld [vmem:[#allocation3 + $0x8f0] sm:$0xff]
      %v1727 = vld [vmem:[#allocation3 + $0x8f8] sm:$0xff]
      %v1728 = vld [vmem:[%s3] sm:$0xff]
      %v1729 = vld [vmem:[%s3 + $0x8] sm:$0xff]
      %v1730 = vld [vmem:[%s3 + $0x10] sm:$0xff]
      %v1731 = vld [vmem:[%s3 + $0x18] sm:$0xff]
      %v1732 = vld [vmem:[%s3 + $0x20] sm:$0xff]
      %v1733 = vld [vmem:[%s3 + $0x28] sm:$0xff]
      %v1734 = vld [vmem:[%s3 + $0x30] sm:$0xff]
      %v1735 = vld [vmem:[%s3 + $0x38] sm:$0xff]
      %v1736 = vld [vmem:[%s3 + $0x40] sm:$0xff]
      %v1737 = vld [vmem:[%s3 + $0x48] sm:$0xff]
      %v1738 = vld [vmem:[%s3 + $0x50] sm:$0xff]
      %v1739 = vld [vmem:[%s3 + $0x58] sm:$0xff]
      %v1740 = vld [vmem:[%s3 + $0x60] sm:$0xff]
      %v1741 = vld [vmem:[%s3 + $0x68] sm:$0xff]
      %v1742 = vld [vmem:[%s3 + $0x70] sm:$0xff]
      %v1743 = vld [vmem:[%s3 + $0x78] sm:$0xff]
      %v1744 = vld [vmem:[%s3 + $0x80] sm:$0xff]
      %v1745 = vld [vmem:[%s3 + $0x88] sm:$0xff]
      %v1746 = vld [vmem:[%s3 + $0x90] sm:$0xff]
      %v1747 = vld [vmem:[%s3 + $0x98] sm:$0xff]
      %v1748 = vld [vmem:[%s3 + $0xa0] sm:$0xff]
      %v1749 = vld [vmem:[%s3 + $0xa8] sm:$0xff]
      %v1750 = vld [vmem:[%s3 + $0xb0] sm:$0xff]
      %v1751 = vld [vmem:[%s3 + $0xb8] sm:$0xff]
      %v1752 = vld [vmem:[%s3 + $0xc0] sm:$0xff]
      %v1753 = vld [vmem:[%s3 + $0xc8] sm:$0xff]
      %v1754 = vld [vmem:[%s3 + $0xd0] sm:$0xff]
      %v1755 = vld [vmem:[%s3 + $0xd8] sm:$0xff]
      %v1756 = vld [vmem:[%s3 + $0xe0] sm:$0xff]
      %v1757 = vld [vmem:[%s3 + $0xe8] sm:$0xff]
      %v1758 = vld [vmem:[%s3 + $0xf0] sm:$0xff]
      %v1759 = vld [vmem:[%s3 + $0xf8] sm:$0xff]
      %v1760 = vld [vmem:[%s3 + $0x100] sm:$0xff]
      %v1761 = vld [vmem:[%s3 + $0x108] sm:$0xff]
      %v1762 = vld [vmem:[%s3 + $0x110] sm:$0xff]
      %v1763 = vld [vmem:[%s3 + $0x118] sm:$0xff]
      %v1764 = vld [vmem:[%s3 + $0x120] sm:$0xff]
      %v1765 = vld [vmem:[%s3 + $0x128] sm:$0xff]
      %v1766 = vld [vmem:[%s3 + $0x130] sm:$0xff]
      %v1767 = vld [vmem:[%s3 + $0x138] sm:$0xff]
      %v1768 = vld [vmem:[%s3 + $0x140] sm:$0xff]
      %v1769 = vld [vmem:[%s3 + $0x148] sm:$0xff]
      %v1770 = vld [vmem:[%s3 + $0x150] sm:$0xff]
      %v1771 = vld [vmem:[%s3 + $0x158] sm:$0xff]
      %v1772 = vld [vmem:[%s3 + $0x160] sm:$0xff]
      %v1773 = vld [vmem:[%s3 + $0x168] sm:$0xff]
      %v1774 = vld [vmem:[%s3 + $0x170] sm:$0xff]
      %v1775 = vld [vmem:[%s3 + $0x178] sm:$0xff]
      %v1776 = vld [vmem:[%s3 + $0x180] sm:$0xff]
      %v1777 = vld [vmem:[%s3 + $0x188] sm:$0xff]
      %v1778 = vld [vmem:[%s3 + $0x190] sm:$0xff]
      %v1779 = vld [vmem:[%s3 + $0x198] sm:$0xff]
      %v1780 = vld [vmem:[%s3 + $0x1a0] sm:$0xff]
      %v1781 = vld [vmem:[%s3 + $0x1a8] sm:$0xff]
      %v1782 = vld [vmem:[%s3 + $0x1b0] sm:$0xff]
      %v1783 = vld [vmem:[%s3 + $0x1b8] sm:$0xff]
      %v1784 = vld [vmem:[%s3 + $0x1c0] sm:$0xff]
      %v1785 = vld [vmem:[%s3 + $0x1c8] sm:$0xff]
      %v1786 = vld [vmem:[%s3 + $0x1d0] sm:$0xff]
      %v1787 = vld [vmem:[%s3 + $0x1d8] sm:$0xff]
      %v1788 = vld [vmem:[%s3 + $0x1e0] sm:$0xff]
      %v1789 = vld [vmem:[%s3 + $0x1e8] sm:$0xff]
      %v1790 = vld [vmem:[%s3 + $0x1f0] sm:$0xff]
      %v1791 = vld [vmem:[%s3 + $0x1f8] sm:$0xff]
      %v1792 = vld [vmem:[%s3 + $0x200] sm:$0xff]
      %v1793 = vld [vmem:[%s3 + $0x208] sm:$0xff]
      %v1794 = vld [vmem:[%s3 + $0x210] sm:$0xff]
      %v1795 = vld [vmem:[%s3 + $0x218] sm:$0xff]
      %v1796 = vld [vmem:[%s3 + $0x220] sm:$0xff]
      %v1797 = vld [vmem:[%s3 + $0x228] sm:$0xff]
      %v1798 = vld [vmem:[%s3 + $0x230] sm:$0xff]
      %v1799 = vld [vmem:[%s3 + $0x238] sm:$0xff]
      %v1800 = vld [vmem:[%s3 + $0x240] sm:$0xff]
      %v1801 = vld [vmem:[%s3 + $0x248] sm:$0xff]
      %v1802 = vld [vmem:[%s3 + $0x250] sm:$0xff]
      %v1803 = vld [vmem:[%s3 + $0x258] sm:$0xff]
      %v1804 = vld [vmem:[%s3 + $0x260] sm:$0xff]
      %v1805 = vld [vmem:[%s3 + $0x268] sm:$0xff]
      %v1806 = vld [vmem:[%s3 + $0x270] sm:$0xff]
      %v1807 = vld [vmem:[%s3 + $0x278] sm:$0xff]
      %v1808 = vld [vmem:[%s3 + $0x280] sm:$0xff]
      %v1809 = vld [vmem:[%s3 + $0x288] sm:$0xff]
      %v1810 = vld [vmem:[%s3 + $0x290] sm:$0xff]
      %v1811 = vld [vmem:[%s3 + $0x298] sm:$0xff]
      %v1812 = vld [vmem:[%s3 + $0x2a0] sm:$0xff]
      %v1813 = vld [vmem:[%s3 + $0x2a8] sm:$0xff]
      %v1814 = vld [vmem:[%s3 + $0x2b0] sm:$0xff]
      %v1815 = vld [vmem:[%s3 + $0x2b8] sm:$0xff]
      %v1816 = vld [vmem:[%s3 + $0x2c0] sm:$0xff]
      %v1817 = vld [vmem:[%s3 + $0x2c8] sm:$0xff]
      %v1818 = vld [vmem:[%s3 + $0x2d0] sm:$0xff]
      %v1819 = vld [vmem:[%s3 + $0x2d8] sm:$0xff]
      %v1820 = vld [vmem:[%s3 + $0x2e0] sm:$0xff]
      %v1821 = vld [vmem:[%s3 + $0x2e8] sm:$0xff]
      %v1822 = vld [vmem:[%s3 + $0x2f0] sm:$0xff]
      %v1823 = vld [vmem:[%s3 + $0x2f8] sm:$0xff]
      %v1824 = vld [vmem:[%s3 + $0x300] sm:$0xff]
      %v1825 = vld [vmem:[%s3 + $0x308] sm:$0xff]
      %v1826 = vld [vmem:[%s3 + $0x310] sm:$0xff]
      %v1827 = vld [vmem:[%s3 + $0x318] sm:$0xff]
      %v1828 = vld [vmem:[%s3 + $0x320] sm:$0xff]
      %v1829 = vld [vmem:[%s3 + $0x328] sm:$0xff]
      %v1830 = vld [vmem:[%s3 + $0x330] sm:$0xff]
      %v1831 = vld [vmem:[%s3 + $0x338] sm:$0xff]
      %v1832 = vld [vmem:[%s3 + $0x340] sm:$0xff]
      %v1833 = vld [vmem:[%s3 + $0x348] sm:$0xff]
      %v1834 = vld [vmem:[%s3 + $0x350] sm:$0xff]
      %v1835 = vld [vmem:[%s3 + $0x358] sm:$0xff]
      %v1836 = vld [vmem:[%s3 + $0x360] sm:$0xff]
      %v1837 = vld [vmem:[%s3 + $0x368] sm:$0xff]
      %v1838 = vld [vmem:[%s3 + $0x370] sm:$0xff]
      %v1839 = vld [vmem:[%s3 + $0x378] sm:$0xff]
      %v1840 = vld [vmem:[%s3 + $0x380] sm:$0xff]
      %v1841 = vld [vmem:[%s3 + $0x388] sm:$0xff]
      %v1842 = vld [vmem:[%s3 + $0x390] sm:$0xff]
      %v1843 = vld [vmem:[%s3 + $0x398] sm:$0xff]
      %v1844 = vld [vmem:[%s3 + $0x3a0] sm:$0xff]
      %v1845 = vld [vmem:[%s3 + $0x3a8] sm:$0xff]
      %v1846 = vld [vmem:[%s3 + $0x3b0] sm:$0xff]
      %v1847 = vld [vmem:[%s3 + $0x3b8] sm:$0xff]
      %v1848 = vld [vmem:[%s3 + $0x3c0] sm:$0xff]
      %v1849 = vld [vmem:[%s3 + $0x3c8] sm:$0xff]
      %v1850 = vld [vmem:[%s3 + $0x3d0] sm:$0xff]
      %v1851 = vld [vmem:[%s3 + $0x3d8] sm:$0xff]
      %v1852 = vld [vmem:[%s3 + $0x3e0] sm:$0xff]
      %v1853 = vld [vmem:[%s3 + $0x3e8] sm:$0xff]
      %v1854 = vld [vmem:[%s3 + $0x3f0] sm:$0xff]
      %v1855 = vld [vmem:[%s3 + $0x3f8] sm:$0xff]
      %v1856 = vld [vmem:[%s3 + $0x400] sm:$0xff]
      %v1857 = vld [vmem:[%s3 + $0x408] sm:$0xff]
      %v1858 = vld [vmem:[%s3 + $0x410] sm:$0xff]
      %v1859 = vld [vmem:[%s3 + $0x418] sm:$0xff]
      %v1860 = vld [vmem:[%s3 + $0x420] sm:$0xff]
      %v1861 = vld [vmem:[%s3 + $0x428] sm:$0xff]
      %v1862 = vld [vmem:[%s3 + $0x430] sm:$0xff]
      %v1863 = vld [vmem:[%s3 + $0x438] sm:$0xff]
      %v1864 = vld [vmem:[%s3 + $0x440] sm:$0xff]
      %v1865 = vld [vmem:[%s3 + $0x448] sm:$0xff]
      %v1866 = vld [vmem:[%s3 + $0x450] sm:$0xff]
      %v1867 = vld [vmem:[%s3 + $0x458] sm:$0xff]
      %v1868 = vld [vmem:[%s3 + $0x460] sm:$0xff]
      %v1869 = vld [vmem:[%s3 + $0x468] sm:$0xff]
      %v1870 = vld [vmem:[%s3 + $0x470] sm:$0xff]
      %v1871 = vld [vmem:[%s3 + $0x478] sm:$0xff]
      %v1872 = vld [vmem:[%s4] sm:$0x1]
      %v1874 = vperm.slane %v1872, 0
      %1876 = vmatpush.msra.mxu0 %v1743
      %1877 = vmatpush.msra.mxu0 %v1742
      %1878 = vmatpush.msra.mxu0 %v1741
      %1879 = vmatpush.msra.mxu0 %v1740
      %1880 = vmatpush.msra.mxu0 %v1739
      %1881 = vmatpush.msra.mxu0 %v1738
      %1882 = vmatpush.msra.mxu0 %v1737
      %1883 = vmatpush.msra.mxu0 %v1736
      %1884 = vmatpush.msra.mxu0 %v1735
      %1885 = vmatpush.msra.mxu0 %v1734
      %1886 = vmatpush.msra.mxu0 %v1733
      %1887 = vmatpush.msra.mxu0 %v1732
      %1888 = vmatpush.msra.mxu0 %v1731
      %1889 = vmatpush.msra.mxu0 %v1730
      %1890 = vmatpush.msra.mxu0 %v1729
      %1891 = vmatpush.msra.mxu0 %v1728
      %1892 = vmatmul.f32.gmra.mxu0 %v1440
      %v1893 = vpop.f32.mrf.mxu0
      %v1894 = vadd.f32 %v1874, %v1893
      %1895 = vmatmul.f32.gmra.mxu0 %v1449
      %v1896 = vpop.f32.mrf.mxu0
      %v1897 = vadd.f32 %v1874, %v1896
      %1898 = vmatmul.f32.gmra.mxu0 %v1458
      %v1899 = vpop.f32.mrf.mxu0
      %v1900 = vadd.f32 %v1874, %v1899
      %1901 = vmatmul.f32.gmra.mxu0 %v1467
      %v1902 = vpop.f32.mrf.mxu0
      %v1903 = vadd.f32 %v1874, %v1902
      %1904 = vmatmul.f32.gmra.mxu0 %v1476
      %v1905 = vpop.f32.mrf.mxu0
      %v1906 = vadd.f32 %v1874, %v1905
      %1907 = vmatmul.f32.gmra.mxu0 %v1485
      %v1908 = vpop.f32.mrf.mxu0
      %v1909 = vadd.f32 %v1874, %v1908
      %1910 = vmatmul.f32.gmra.mxu0 %v1494
      %v1911 = vpop.f32.mrf.mxu0
      %v1912 = vadd.f32 %v1874, %v1911
      %1913 = vmatmul.f32.gmra.mxu0 %v1503
      %v1914 = vpop.f32.mrf.mxu0
      %v1915 = vadd.f32 %v1874, %v1914
      %1916 = vmatmul.f32.gmra.mxu0 %v1512
      %v1917 = vpop.f32.mrf.mxu0
      %v1918 = vadd.f32 %v1874, %v1917
      %1919 = vmatmul.f32.gmra.mxu0 %v1521
      %v1920 = vpop.f32.mrf.mxu0
      %v1921 = vadd.f32 %v1874, %v1920
      %1922 = vmatmul.f32.gmra.mxu0 %v1530
      %v1923 = vpop.f32.mrf.mxu0
      %v1924 = vadd.f32 %v1874, %v1923
      %1925 = vmatmul.f32.gmra.mxu0 %v1539
      %v1926 = vpop.f32.mrf.mxu0
      %v1927 = vadd.f32 %v1874, %v1926
      %1928 = vmatmul.f32.gmra.mxu0 %v1548
      %v1929 = vpop.f32.mrf.mxu0
      %v1930 = vadd.f32 %v1874, %v1929
      %1931 = vmatmul.f32.gmra.mxu0 %v1557
      %v1932 = vpop.f32.mrf.mxu0
      %v1933 = vadd.f32 %v1874, %v1932
      %1934 = vmatmul.f32.gmra.mxu0 %v1566
      %v1935 = vpop.f32.mrf.mxu0
      %v1936 = vadd.f32 %v1874, %v1935
      %1937 = vmatmul.f32.gmra.mxu0 %v1575
      %v1938 = vpop.f32.mrf.mxu0
      %v1939 = vadd.f32 %v1874, %v1938
      %1940 = vmatmul.f32.gmra.mxu0 %v1584
      %v1941 = vpop.f32.mrf.mxu0
      %v1942 = vadd.f32 %v1874, %v1941
      %1943 = vmatmul.f32.gmra.mxu0 %v1593
      %v1944 = vpop.f32.mrf.mxu0
      %v1945 = vadd.f32 %v1874, %v1944
      %1946 = vmatmul.f32.gmra.mxu0 %v1602
      %v1947 = vpop.f32.mrf.mxu0
      %v1948 = vadd.f32 %v1874, %v1947
      %1949 = vmatmul.f32.gmra.mxu0 %v1611
      %v1950 = vpop.f32.mrf.mxu0
      %v1951 = vadd.f32 %v1874, %v1950
      %1952 = vmatmul.f32.gmra.mxu0 %v1620
      %v1953 = vpop.f32.mrf.mxu0
      %v1954 = vadd.f32 %v1874, %v1953
      %1955 = vmatmul.f32.gmra.mxu0 %v1629
      %v1956 = vpop.f32.mrf.mxu0
      %v1957 = vadd.f32 %v1874, %v1956
      %1958 = vmatmul.f32.gmra.mxu0 %v1638
      %v1959 = vpop.f32.mrf.mxu0
      %v1960 = vadd.f32 %v1874, %v1959
      %1961 = vmatmul.f32.gmra.mxu0 %v1647
      %v1962 = vpop.f32.mrf.mxu0
      %v1963 = vadd.f32 %v1874, %v1962
      %1964 = vmatmul.f32.gmra.mxu0 %v1656
      %v1965 = vpop.f32.mrf.mxu0
      %v1966 = vadd.f32 %v1874, %v1965
      %1967 = vmatmul.f32.gmra.mxu0 %v1665
      %v1968 = vpop.f32.mrf.mxu0
      %v1969 = vadd.f32 %v1874, %v1968
      %1970 = vmatmul.f32.gmra.mxu0 %v1674
      %v1971 = vpop.f32.mrf.mxu0
      %v1972 = vadd.f32 %v1874, %v1971
      %1973 = vmatmul.f32.gmra.mxu0 %v1683
      %v1974 = vpop.f32.mrf.mxu0
      %v1975 = vadd.f32 %v1874, %v1974
      %1976 = vmatmul.f32.gmra.mxu0 %v1692
      %v1977 = vpop.f32.mrf.mxu0
      %v1978 = vadd.f32 %v1874, %v1977
      %1979 = vmatmul.f32.gmra.mxu0 %v1701
      %v1980 = vpop.f32.mrf.mxu0
      %v1981 = vadd.f32 %v1874, %v1980
      %1982 = vmatmul.f32.gmra.mxu0 %v1710
      %v1983 = vpop.f32.mrf.mxu0
      %v1984 = vadd.f32 %v1874, %v1983
      %1985 = vmatmul.f32.gmra.mxu0 %v1719
      %v1986 = vpop.f32.mrf.mxu0
      %v1987 = vadd.f32 %v1874, %v1986
      %1988 = vdwg.mxu0
      %1989 = vmatpush.msra.mxu0 %v1759
      %1990 = vmatpush.msra.mxu0 %v1758
      %1991 = vmatpush.msra.mxu0 %v1757
      %1992 = vmatpush.msra.mxu0 %v1756
      %1993 = vmatpush.msra.mxu0 %v1755
      %1994 = vmatpush.msra.mxu0 %v1754
      %1995 = vmatpush.msra.mxu0 %v1753
      %1996 = vmatpush.msra.mxu0 %v1752
      %1997 = vmatpush.msra.mxu0 %v1751
      %1998 = vmatpush.msra.mxu0 %v1750
      %1999 = vmatpush.msra.mxu0 %v1749
      %2000 = vmatpush.msra.mxu0 %v1748
      %2001 = vmatpush.msra.mxu0 %v1747
      %2002 = vmatpush.msra.mxu0 %v1746
      %2003 = vmatpush.msra.mxu0 %v1745
      %2004 = vmatpush.msra.mxu0 %v1744
      %2005 = vmatmul.f32.gmra.mxu0 %v1441
      %v2006 = vpop.f32.mrf.mxu0
      %v2007 = vadd.f32 %v1894, %v2006
      %2008 = vmatmul.f32.gmra.mxu0 %v1450
      %v2009 = vpop.f32.mrf.mxu0
      %v2010 = vadd.f32 %v1897, %v2009
      %2011 = vmatmul.f32.gmra.mxu0 %v1459
      %v2012 = vpop.f32.mrf.mxu0
      %v2013 = vadd.f32 %v1900, %v2012
      %2014 = vmatmul.f32.gmra.mxu0 %v1468
      %v2015 = vpop.f32.mrf.mxu0
      %v2016 = vadd.f32 %v1903, %v2015
      %2017 = vmatmul.f32.gmra.mxu0 %v1477
      %v2018 = vpop.f32.mrf.mxu0
      %v2019 = vadd.f32 %v1906, %v2018
      %2020 = vmatmul.f32.gmra.mxu0 %v1486
      %v2021 = vpop.f32.mrf.mxu0
      %v2022 = vadd.f32 %v1909, %v2021
      %2023 = vmatmul.f32.gmra.mxu0 %v1495
      %v2024 = vpop.f32.mrf.mxu0
      %v2025 = vadd.f32 %v1912, %v2024
      %2026 = vmatmul.f32.gmra.mxu0 %v1504
      %v2027 = vpop.f32.mrf.mxu0
      %v2028 = vadd.f32 %v1915, %v2027
      %2029 = vmatmul.f32.gmra.mxu0 %v1513
      %v2030 = vpop.f32.mrf.mxu0
      %v2031 = vadd.f32 %v1918, %v2030
      %2032 = vmatmul.f32.gmra.mxu0 %v1522
      %v2033 = vpop.f32.mrf.mxu0
      %v2034 = vadd.f32 %v1921, %v2033
      %2035 = vmatmul.f32.gmra.mxu0 %v1531
      %v2036 = vpop.f32.mrf.mxu0
      %v2037 = vadd.f32 %v1924, %v2036
      %2038 = vmatmul.f32.gmra.mxu0 %v1540
      %v2039 = vpop.f32.mrf.mxu0
      %v2040 = vadd.f32 %v1927, %v2039
      %2041 = vmatmul.f32.gmra.mxu0 %v1549
      %v2042 = vpop.f32.mrf.mxu0
      %v2043 = vadd.f32 %v1930, %v2042
      %2044 = vmatmul.f32.gmra.mxu0 %v1558
      %v2045 = vpop.f32.mrf.mxu0
      %v2046 = vadd.f32 %v1933, %v2045
      %2047 = vmatmul.f32.gmra.mxu0 %v1567
      %v2048 = vpop.f32.mrf.mxu0
      %v2049 = vadd.f32 %v1936, %v2048
      %2050 = vmatmul.f32.gmra.mxu0 %v1576
      %v2051 = vpop.f32.mrf.mxu0
      %v2052 = vadd.f32 %v1939, %v2051
      %2053 = vmatmul.f32.gmra.mxu0 %v1585
      %v2054 = vpop.f32.mrf.mxu0
      %v2055 = vadd.f32 %v1942, %v2054
      %2056 = vmatmul.f32.gmra.mxu0 %v1594
      %v2057 = vpop.f32.mrf.mxu0
      %v2058 = vadd.f32 %v1945, %v2057
      %2059 = vmatmul.f32.gmra.mxu0 %v1603
      %v2060 = vpop.f32.mrf.mxu0
      %v2061 = vadd.f32 %v1948, %v2060
      %2062 = vmatmul.f32.gmra.mxu0 %v1612
      %v2063 = vpop.f32.mrf.mxu0
      %v2064 = vadd.f32 %v1951, %v2063
      %2065 = vmatmul.f32.gmra.mxu0 %v1621
      %v2066 = vpop.f32.mrf.mxu0
      %v2067 = vadd.f32 %v1954, %v2066
      %2068 = vmatmul.f32.gmra.mxu0 %v1630
      %v2069 = vpop.f32.mrf.mxu0
      %v2070 = vadd.f32 %v1957, %v2069
      %2071 = vmatmul.f32.gmra.mxu0 %v1639
      %v2072 = vpop.f32.mrf.mxu0
      %v2073 = vadd.f32 %v1960, %v2072
      %2074 = vmatmul.f32.gmra.mxu0 %v1648
      %v2075 = vpop.f32.mrf.mxu0
      %v2076 = vadd.f32 %v1963, %v2075
      %2077 = vmatmul.f32.gmra.mxu0 %v1657
      %v2078 = vpop.f32.mrf.mxu0
      %v2079 = vadd.f32 %v1966, %v2078
      %2080 = vmatmul.f32.gmra.mxu0 %v1666
      %v2081 = vpop.f32.mrf.mxu0
      %v2082 = vadd.f32 %v1969, %v2081
      %2083 = vmatmul.f32.gmra.mxu0 %v1675
      %v2084 = vpop.f32.mrf.mxu0
      %v2085 = vadd.f32 %v1972, %v2084
      %2086 = vmatmul.f32.gmra.mxu0 %v1684
      %v2087 = vpop.f32.mrf.mxu0
      %v2088 = vadd.f32 %v1975, %v2087
      %2089 = vmatmul.f32.gmra.mxu0 %v1693
      %v2090 = vpop.f32.mrf.mxu0
      %v2091 = vadd.f32 %v1978, %v2090
      %2092 = vmatmul.f32.gmra.mxu0 %v1702
      %v2093 = vpop.f32.mrf.mxu0
      %v2094 = vadd.f32 %v1981, %v2093
      %2095 = vmatmul.f32.gmra.mxu0 %v1711
      %v2096 = vpop.f32.mrf.mxu0
      %v2097 = vadd.f32 %v1984, %v2096
      %2098 = vmatmul.f32.gmra.mxu0 %v1720
      %v2099 = vpop.f32.mrf.mxu0
      %v2100 = vadd.f32 %v1987, %v2099
      %2101 = vdwg.mxu0
      %2102 = vmatpush.msra.mxu0 %v1775
      %2103 = vmatpush.msra.mxu0 %v1774
      %2104 = vmatpush.msra.mxu0 %v1773
      %2105 = vmatpush.msra.mxu0 %v1772
      %2106 = vmatpush.msra.mxu0 %v1771
      %2107 = vmatpush.msra.mxu0 %v1770
      %2108 = vmatpush.msra.mxu0 %v1769
      %2109 = vmatpush.msra.mxu0 %v1768
      %2110 = vmatpush.msra.mxu0 %v1767
      %2111 = vmatpush.msra.mxu0 %v1766
      %2112 = vmatpush.msra.mxu0 %v1765
      %2113 = vmatpush.msra.mxu0 %v1764
      %2114 = vmatpush.msra.mxu0 %v1763
      %2115 = vmatpush.msra.mxu0 %v1762
      %2116 = vmatpush.msra.mxu0 %v1761
      %2117 = vmatpush.msra.mxu0 %v1760
      %2118 = vmatmul.f32.gmra.mxu0 %v1442
      %v2119 = vpop.f32.mrf.mxu0
      %v2120 = vadd.f32 %v2007, %v2119
      %2121 = vmatmul.f32.gmra.mxu0 %v1451
      %v2122 = vpop.f32.mrf.mxu0
      %v2123 = vadd.f32 %v2010, %v2122
      %2124 = vmatmul.f32.gmra.mxu0 %v1460
      %v2125 = vpop.f32.mrf.mxu0
      %v2126 = vadd.f32 %v2013, %v2125
      %2127 = vmatmul.f32.gmra.mxu0 %v1469
      %v2128 = vpop.f32.mrf.mxu0
      %v2129 = vadd.f32 %v2016, %v2128
      %2130 = vmatmul.f32.gmra.mxu0 %v1478
      %v2131 = vpop.f32.mrf.mxu0
      %v2132 = vadd.f32 %v2019, %v2131
      %2133 = vmatmul.f32.gmra.mxu0 %v1487
      %v2134 = vpop.f32.mrf.mxu0
      %v2135 = vadd.f32 %v2022, %v2134
      %2136 = vmatmul.f32.gmra.mxu0 %v1496
      %v2137 = vpop.f32.mrf.mxu0
      %v2138 = vadd.f32 %v2025, %v2137
      %2139 = vmatmul.f32.gmra.mxu0 %v1505
      %v2140 = vpop.f32.mrf.mxu0
      %v2141 = vadd.f32 %v2028, %v2140
      %2142 = vmatmul.f32.gmra.mxu0 %v1514
      %v2143 = vpop.f32.mrf.mxu0
      %v2144 = vadd.f32 %v2031, %v2143
      %2145 = vmatmul.f32.gmra.mxu0 %v1523
      %v2146 = vpop.f32.mrf.mxu0
      %v2147 = vadd.f32 %v2034, %v2146
      %2148 = vmatmul.f32.gmra.mxu0 %v1532
      %v2149 = vpop.f32.mrf.mxu0
      %v2150 = vadd.f32 %v2037, %v2149
      %2151 = vmatmul.f32.gmra.mxu0 %v1541
      %v2152 = vpop.f32.mrf.mxu0
      %v2153 = vadd.f32 %v2040, %v2152
      %2154 = vmatmul.f32.gmra.mxu0 %v1550
      %v2155 = vpop.f32.mrf.mxu0
      %v2156 = vadd.f32 %v2043, %v2155
      %2157 = vmatmul.f32.gmra.mxu0 %v1559
      %v2158 = vpop.f32.mrf.mxu0
      %v2159 = vadd.f32 %v2046, %v2158
      %2160 = vmatmul.f32.gmra.mxu0 %v1568
      %v2161 = vpop.f32.mrf.mxu0
      %v2162 = vadd.f32 %v2049, %v2161
      %2163 = vmatmul.f32.gmra.mxu0 %v1577
      %v2164 = vpop.f32.mrf.mxu0
      %v2165 = vadd.f32 %v2052, %v2164
      %2166 = vmatmul.f32.gmra.mxu0 %v1586
      %v2167 = vpop.f32.mrf.mxu0
      %v2168 = vadd.f32 %v2055, %v2167
      %2169 = vmatmul.f32.gmra.mxu0 %v1595
      %v2170 = vpop.f32.mrf.mxu0
      %v2171 = vadd.f32 %v2058, %v2170
      %2172 = vmatmul.f32.gmra.mxu0 %v1604
      %v2173 = vpop.f32.mrf.mxu0
      %v2174 = vadd.f32 %v2061, %v2173
      %2175 = vmatmul.f32.gmra.mxu0 %v1613
      %v2176 = vpop.f32.mrf.mxu0
      %v2177 = vadd.f32 %v2064, %v2176
      %2178 = vmatmul.f32.gmra.mxu0 %v1622
      %v2179 = vpop.f32.mrf.mxu0
      %v2180 = vadd.f32 %v2067, %v2179
      %2181 = vmatmul.f32.gmra.mxu0 %v1631
      %v2182 = vpop.f32.mrf.mxu0
      %v2183 = vadd.f32 %v2070, %v2182
      %2184 = vmatmul.f32.gmra.mxu0 %v1640
      %v2185 = vpop.f32.mrf.mxu0
      %v2186 = vadd.f32 %v2073, %v2185
      %2187 = vmatmul.f32.gmra.mxu0 %v1649
      %v2188 = vpop.f32.mrf.mxu0
      %v2189 = vadd.f32 %v2076, %v2188
      %2190 = vmatmul.f32.gmra.mxu0 %v1658
      %v2191 = vpop.f32.mrf.mxu0
      %v2192 = vadd.f32 %v2079, %v2191
      %2193 = vmatmul.f32.gmra.mxu0 %v1667
      %v2194 = vpop.f32.mrf.mxu0
      %v2195 = vadd.f32 %v2082, %v2194
      %2196 = vmatmul.f32.gmra.mxu0 %v1676
      %v2197 = vpop.f32.mrf.mxu0
      %v2198 = vadd.f32 %v2085, %v2197
      %2199 = vmatmul.f32.gmra.mxu0 %v1685
      %v2200 = vpop.f32.mrf.mxu0
      %v2201 = vadd.f32 %v2088, %v2200
      %2202 = vmatmul.f32.gmra.mxu0 %v1694
      %v2203 = vpop.f32.mrf.mxu0
      %v2204 = vadd.f32 %v2091, %v2203
      %2205 = vmatmul.f32.gmra.mxu0 %v1703
      %v2206 = vpop.f32.mrf.mxu0
      %v2207 = vadd.f32 %v2094, %v2206
      %2208 = vmatmul.f32.gmra.mxu0 %v1712
      %v2209 = vpop.f32.mrf.mxu0
      %v2210 = vadd.f32 %v2097, %v2209
      %2211 = vmatmul.f32.gmra.mxu0 %v1721
      %v2212 = vpop.f32.mrf.mxu0
      %v2213 = vadd.f32 %v2100, %v2212
      %2214 = vdwg.mxu0
      %2215 = vmatpush.msra.mxu0 %v1791
      %2216 = vmatpush.msra.mxu0 %v1790
      %2217 = vmatpush.msra.mxu0 %v1789
      %2218 = vmatpush.msra.mxu0 %v1788
      %2219 = vmatpush.msra.mxu0 %v1787
      %2220 = vmatpush.msra.mxu0 %v1786
      %2221 = vmatpush.msra.mxu0 %v1785
      %2222 = vmatpush.msra.mxu0 %v1784
      %2223 = vmatpush.msra.mxu0 %v1783
      %2224 = vmatpush.msra.mxu0 %v1782
      %2225 = vmatpush.msra.mxu0 %v1781
      %2226 = vmatpush.msra.mxu0 %v1780
      %2227 = vmatpush.msra.mxu0 %v1779
      %2228 = vmatpush.msra.mxu0 %v1778
      %2229 = vmatpush.msra.mxu0 %v1777
      %2230 = vmatpush.msra.mxu0 %v1776
      %2231 = vmatmul.f32.gmra.mxu0 %v1443
      %v2232 = vpop.f32.mrf.mxu0
      %v2233 = vadd.f32 %v2120, %v2232
      %2234 = vmatmul.f32.gmra.mxu0 %v1452
      %v2235 = vpop.f32.mrf.mxu0
      %v2236 = vadd.f32 %v2123, %v2235
      %2237 = vmatmul.f32.gmra.mxu0 %v1461
      %v2238 = vpop.f32.mrf.mxu0
      %v2239 = vadd.f32 %v2126, %v2238
      %2240 = vmatmul.f32.gmra.mxu0 %v1470
      %v2241 = vpop.f32.mrf.mxu0
      %v2242 = vadd.f32 %v2129, %v2241
      %2243 = vmatmul.f32.gmra.mxu0 %v1479
      %v2244 = vpop.f32.mrf.mxu0
      %v2245 = vadd.f32 %v2132, %v2244
      %2246 = vmatmul.f32.gmra.mxu0 %v1488
      %v2247 = vpop.f32.mrf.mxu0
      %v2248 = vadd.f32 %v2135, %v2247
      %2249 = vmatmul.f32.gmra.mxu0 %v1497
      %v2250 = vpop.f32.mrf.mxu0
      %v2251 = vadd.f32 %v2138, %v2250
      %2252 = vmatmul.f32.gmra.mxu0 %v1506
      %v2253 = vpop.f32.mrf.mxu0
      %v2254 = vadd.f32 %v2141, %v2253
      %2255 = vmatmul.f32.gmra.mxu0 %v1515
      %v2256 = vpop.f32.mrf.mxu0
      %v2257 = vadd.f32 %v2144, %v2256
      %2258 = vmatmul.f32.gmra.mxu0 %v1524
      %v2259 = vpop.f32.mrf.mxu0
      %v2260 = vadd.f32 %v2147, %v2259
      %2261 = vmatmul.f32.gmra.mxu0 %v1533
      %v2262 = vpop.f32.mrf.mxu0
      %v2263 = vadd.f32 %v2150, %v2262
      %2264 = vmatmul.f32.gmra.mxu0 %v1542
      %v2265 = vpop.f32.mrf.mxu0
      %v2266 = vadd.f32 %v2153, %v2265
      %2267 = vmatmul.f32.gmra.mxu0 %v1551
      %v2268 = vpop.f32.mrf.mxu0
      %v2269 = vadd.f32 %v2156, %v2268
      %2270 = vmatmul.f32.gmra.mxu0 %v1560
      %v2271 = vpop.f32.mrf.mxu0
      %v2272 = vadd.f32 %v2159, %v2271
      %2273 = vmatmul.f32.gmra.mxu0 %v1569
      %v2274 = vpop.f32.mrf.mxu0
      %v2275 = vadd.f32 %v2162, %v2274
      %2276 = vmatmul.f32.gmra.mxu0 %v1578
      %v2277 = vpop.f32.mrf.mxu0
      %v2278 = vadd.f32 %v2165, %v2277
      %2279 = vmatmul.f32.gmra.mxu0 %v1587
      %v2280 = vpop.f32.mrf.mxu0
      %v2281 = vadd.f32 %v2168, %v2280
      %2282 = vmatmul.f32.gmra.mxu0 %v1596
      %v2283 = vpop.f32.mrf.mxu0
      %v2284 = vadd.f32 %v2171, %v2283
      %2285 = vmatmul.f32.gmra.mxu0 %v1605
      %v2286 = vpop.f32.mrf.mxu0
      %v2287 = vadd.f32 %v2174, %v2286
      %2288 = vmatmul.f32.gmra.mxu0 %v1614
      %v2289 = vpop.f32.mrf.mxu0
      %v2290 = vadd.f32 %v2177, %v2289
      %2291 = vmatmul.f32.gmra.mxu0 %v1623
      %v2292 = vpop.f32.mrf.mxu0
      %v2293 = vadd.f32 %v2180, %v2292
      %2294 = vmatmul.f32.gmra.mxu0 %v1632
      %v2295 = vpop.f32.mrf.mxu0
      %v2296 = vadd.f32 %v2183, %v2295
      %2297 = vmatmul.f32.gmra.mxu0 %v1641
      %v2298 = vpop.f32.mrf.mxu0
      %v2299 = vadd.f32 %v2186, %v2298
      %2300 = vmatmul.f32.gmra.mxu0 %v1650
      %v2301 = vpop.f32.mrf.mxu0
      %v2302 = vadd.f32 %v2189, %v2301
      %2303 = vmatmul.f32.gmra.mxu0 %v1659
      %v2304 = vpop.f32.mrf.mxu0
      %v2305 = vadd.f32 %v2192, %v2304
      %2306 = vmatmul.f32.gmra.mxu0 %v1668
      %v2307 = vpop.f32.mrf.mxu0
      %v2308 = vadd.f32 %v2195, %v2307
      %2309 = vmatmul.f32.gmra.mxu0 %v1677
      %v2310 = vpop.f32.mrf.mxu0
      %v2311 = vadd.f32 %v2198, %v2310
      %2312 = vmatmul.f32.gmra.mxu0 %v1686
      %v2313 = vpop.f32.mrf.mxu0
      %v2314 = vadd.f32 %v2201, %v2313
      %2315 = vmatmul.f32.gmra.mxu0 %v1695
      %v2316 = vpop.f32.mrf.mxu0
      %v2317 = vadd.f32 %v2204, %v2316
      %2318 = vmatmul.f32.gmra.mxu0 %v1704
      %v2319 = vpop.f32.mrf.mxu0
      %v2320 = vadd.f32 %v2207, %v2319
      %2321 = vmatmul.f32.gmra.mxu0 %v1713
      %v2322 = vpop.f32.mrf.mxu0
      %v2323 = vadd.f32 %v2210, %v2322
      %2324 = vmatmul.f32.gmra.mxu0 %v1722
      %v2325 = vpop.f32.mrf.mxu0
      %v2326 = vadd.f32 %v2213, %v2325
      %2327 = vdwg.mxu0
      %2328 = vmatpush.msra.mxu0 %v1807
      %2329 = vmatpush.msra.mxu0 %v1806
      %2330 = vmatpush.msra.mxu0 %v1805
      %2331 = vmatpush.msra.mxu0 %v1804
      %2332 = vmatpush.msra.mxu0 %v1803
      %2333 = vmatpush.msra.mxu0 %v1802
      %2334 = vmatpush.msra.mxu0 %v1801
      %2335 = vmatpush.msra.mxu0 %v1800
      %2336 = vmatpush.msra.mxu0 %v1799
      %2337 = vmatpush.msra.mxu0 %v1798
      %2338 = vmatpush.msra.mxu0 %v1797
      %2339 = vmatpush.msra.mxu0 %v1796
      %2340 = vmatpush.msra.mxu0 %v1795
      %2341 = vmatpush.msra.mxu0 %v1794
      %2342 = vmatpush.msra.mxu0 %v1793
      %2343 = vmatpush.msra.mxu0 %v1792
      %2344 = vmatmul.f32.gmra.mxu0 %v1444
      %v2345 = vpop.f32.mrf.mxu0
      %v2346 = vadd.f32 %v2233, %v2345
      %2347 = vmatmul.f32.gmra.mxu0 %v1453
      %v2348 = vpop.f32.mrf.mxu0
      %v2349 = vadd.f32 %v2236, %v2348
      %2350 = vmatmul.f32.gmra.mxu0 %v1462
      %v2351 = vpop.f32.mrf.mxu0
      %v2352 = vadd.f32 %v2239, %v2351
      %2353 = vmatmul.f32.gmra.mxu0 %v1471
      %v2354 = vpop.f32.mrf.mxu0
      %v2355 = vadd.f32 %v2242, %v2354
      %2356 = vmatmul.f32.gmra.mxu0 %v1480
      %v2357 = vpop.f32.mrf.mxu0
      %v2358 = vadd.f32 %v2245, %v2357
      %2359 = vmatmul.f32.gmra.mxu0 %v1489
      %v2360 = vpop.f32.mrf.mxu0
      %v2361 = vadd.f32 %v2248, %v2360
      %2362 = vmatmul.f32.gmra.mxu0 %v1498
      %v2363 = vpop.f32.mrf.mxu0
      %v2364 = vadd.f32 %v2251, %v2363
      %2365 = vmatmul.f32.gmra.mxu0 %v1507
      %v2366 = vpop.f32.mrf.mxu0
      %v2367 = vadd.f32 %v2254, %v2366
      %2368 = vmatmul.f32.gmra.mxu0 %v1516
      %v2369 = vpop.f32.mrf.mxu0
      %v2370 = vadd.f32 %v2257, %v2369
      %2371 = vmatmul.f32.gmra.mxu0 %v1525
      %v2372 = vpop.f32.mrf.mxu0
      %v2373 = vadd.f32 %v2260, %v2372
      %2374 = vmatmul.f32.gmra.mxu0 %v1534
      %v2375 = vpop.f32.mrf.mxu0
      %v2376 = vadd.f32 %v2263, %v2375
      %2377 = vmatmul.f32.gmra.mxu0 %v1543
      %v2378 = vpop.f32.mrf.mxu0
      %v2379 = vadd.f32 %v2266, %v2378
      %2380 = vmatmul.f32.gmra.mxu0 %v1552
      %v2381 = vpop.f32.mrf.mxu0
      %v2382 = vadd.f32 %v2269, %v2381
      %2383 = vmatmul.f32.gmra.mxu0 %v1561
      %v2384 = vpop.f32.mrf.mxu0
      %v2385 = vadd.f32 %v2272, %v2384
      %2386 = vmatmul.f32.gmra.mxu0 %v1570
      %v2387 = vpop.f32.mrf.mxu0
      %v2388 = vadd.f32 %v2275, %v2387
      %2389 = vmatmul.f32.gmra.mxu0 %v1579
      %v2390 = vpop.f32.mrf.mxu0
      %v2391 = vadd.f32 %v2278, %v2390
      %2392 = vmatmul.f32.gmra.mxu0 %v1588
      %v2393 = vpop.f32.mrf.mxu0
      %v2394 = vadd.f32 %v2281, %v2393
      %2395 = vmatmul.f32.gmra.mxu0 %v1597
      %v2396 = vpop.f32.mrf.mxu0
      %v2397 = vadd.f32 %v2284, %v2396
      %2398 = vmatmul.f32.gmra.mxu0 %v1606
      %v2399 = vpop.f32.mrf.mxu0
      %v2400 = vadd.f32 %v2287, %v2399
      %2401 = vmatmul.f32.gmra.mxu0 %v1615
      %v2402 = vpop.f32.mrf.mxu0
      %v2403 = vadd.f32 %v2290, %v2402
      %2404 = vmatmul.f32.gmra.mxu0 %v1624
      %v2405 = vpop.f32.mrf.mxu0
      %v2406 = vadd.f32 %v2293, %v2405
      %2407 = vmatmul.f32.gmra.mxu0 %v1633
      %v2408 = vpop.f32.mrf.mxu0
      %v2409 = vadd.f32 %v2296, %v2408
      %2410 = vmatmul.f32.gmra.mxu0 %v1642
      %v2411 = vpop.f32.mrf.mxu0
      %v2412 = vadd.f32 %v2299, %v2411
      %2413 = vmatmul.f32.gmra.mxu0 %v1651
      %v2414 = vpop.f32.mrf.mxu0
      %v2415 = vadd.f32 %v2302, %v2414
      %2416 = vmatmul.f32.gmra.mxu0 %v1660
      %v2417 = vpop.f32.mrf.mxu0
      %v2418 = vadd.f32 %v2305, %v2417
      %2419 = vmatmul.f32.gmra.mxu0 %v1669
      %v2420 = vpop.f32.mrf.mxu0
      %v2421 = vadd.f32 %v2308, %v2420
      %2422 = vmatmul.f32.gmra.mxu0 %v1678
      %v2423 = vpop.f32.mrf.mxu0
      %v2424 = vadd.f32 %v2311, %v2423
      %2425 = vmatmul.f32.gmra.mxu0 %v1687
      %v2426 = vpop.f32.mrf.mxu0
      %v2427 = vadd.f32 %v2314, %v2426
      %2428 = vmatmul.f32.gmra.mxu0 %v1696
      %v2429 = vpop.f32.mrf.mxu0
      %v2430 = vadd.f32 %v2317, %v2429
      %2431 = vmatmul.f32.gmra.mxu0 %v1705
      %v2432 = vpop.f32.mrf.mxu0
      %v2433 = vadd.f32 %v2320, %v2432
      %2434 = vmatmul.f32.gmra.mxu0 %v1714
      %v2435 = vpop.f32.mrf.mxu0
      %v2436 = vadd.f32 %v2323, %v2435
      %2437 = vmatmul.f32.gmra.mxu0 %v1723
      %v2438 = vpop.f32.mrf.mxu0
      %v2439 = vadd.f32 %v2326, %v2438
      %2440 = vdwg.mxu0
      %2441 = vmatpush.msra.mxu0 %v1823
      %2442 = vmatpush.msra.mxu0 %v1822
      %2443 = vmatpush.msra.mxu0 %v1821
      %2444 = vmatpush.msra.mxu0 %v1820
      %2445 = vmatpush.msra.mxu0 %v1819
      %2446 = vmatpush.msra.mxu0 %v1818
      %2447 = vmatpush.msra.mxu0 %v1817
      %2448 = vmatpush.msra.mxu0 %v1816
      %2449 = vmatpush.msra.mxu0 %v1815
      %2450 = vmatpush.msra.mxu0 %v1814
      %2451 = vmatpush.msra.mxu0 %v1813
      %2452 = vmatpush.msra.mxu0 %v1812
      %2453 = vmatpush.msra.mxu0 %v1811
      %2454 = vmatpush.msra.mxu0 %v1810
      %2455 = vmatpush.msra.mxu0 %v1809
      %2456 = vmatpush.msra.mxu0 %v1808
      %2457 = vmatmul.f32.gmra.mxu0 %v1445
      %v2458 = vpop.f32.mrf.mxu0
      %v2459 = vadd.f32 %v2346, %v2458
      %2460 = vmatmul.f32.gmra.mxu0 %v1454
      %v2461 = vpop.f32.mrf.mxu0
      %v2462 = vadd.f32 %v2349, %v2461
      %2463 = vmatmul.f32.gmra.mxu0 %v1463
      %v2464 = vpop.f32.mrf.mxu0
      %v2465 = vadd.f32 %v2352, %v2464
      %2466 = vmatmul.f32.gmra.mxu0 %v1472
      %v2467 = vpop.f32.mrf.mxu0
      %v2468 = vadd.f32 %v2355, %v2467
      %2469 = vmatmul.f32.gmra.mxu0 %v1481
      %v2470 = vpop.f32.mrf.mxu0
      %v2471 = vadd.f32 %v2358, %v2470
      %2472 = vmatmul.f32.gmra.mxu0 %v1490
      %v2473 = vpop.f32.mrf.mxu0
      %v2474 = vadd.f32 %v2361, %v2473
      %2475 = vmatmul.f32.gmra.mxu0 %v1499
      %v2476 = vpop.f32.mrf.mxu0
      %v2477 = vadd.f32 %v2364, %v2476
      %2478 = vmatmul.f32.gmra.mxu0 %v1508
      %v2479 = vpop.f32.mrf.mxu0
      %v2480 = vadd.f32 %v2367, %v2479
      %2481 = vmatmul.f32.gmra.mxu0 %v1517
      %v2482 = vpop.f32.mrf.mxu0
      %v2483 = vadd.f32 %v2370, %v2482
      %2484 = vmatmul.f32.gmra.mxu0 %v1526
      %v2485 = vpop.f32.mrf.mxu0
      %v2486 = vadd.f32 %v2373, %v2485
      %2487 = vmatmul.f32.gmra.mxu0 %v1535
      %v2488 = vpop.f32.mrf.mxu0
      %v2489 = vadd.f32 %v2376, %v2488
      %2490 = vmatmul.f32.gmra.mxu0 %v1544
      %v2491 = vpop.f32.mrf.mxu0
      %v2492 = vadd.f32 %v2379, %v2491
      %2493 = vmatmul.f32.gmra.mxu0 %v1553
      %v2494 = vpop.f32.mrf.mxu0
      %v2495 = vadd.f32 %v2382, %v2494
      %2496 = vmatmul.f32.gmra.mxu0 %v1562
      %v2497 = vpop.f32.mrf.mxu0
      %v2498 = vadd.f32 %v2385, %v2497
      %2499 = vmatmul.f32.gmra.mxu0 %v1571
      %v2500 = vpop.f32.mrf.mxu0
      %v2501 = vadd.f32 %v2388, %v2500
      %2502 = vmatmul.f32.gmra.mxu0 %v1580
      %v2503 = vpop.f32.mrf.mxu0
      %v2504 = vadd.f32 %v2391, %v2503
      %2505 = vmatmul.f32.gmra.mxu0 %v1589
      %v2506 = vpop.f32.mrf.mxu0
      %v2507 = vadd.f32 %v2394, %v2506
      %2508 = vmatmul.f32.gmra.mxu0 %v1598
      %v2509 = vpop.f32.mrf.mxu0
      %v2510 = vadd.f32 %v2397, %v2509
      %2511 = vmatmul.f32.gmra.mxu0 %v1607
      %v2512 = vpop.f32.mrf.mxu0
      %v2513 = vadd.f32 %v2400, %v2512
      %2514 = vmatmul.f32.gmra.mxu0 %v1616
      %v2515 = vpop.f32.mrf.mxu0
      %v2516 = vadd.f32 %v2403, %v2515
      %2517 = vmatmul.f32.gmra.mxu0 %v1625
      %v2518 = vpop.f32.mrf.mxu0
      %v2519 = vadd.f32 %v2406, %v2518
      %2520 = vmatmul.f32.gmra.mxu0 %v1634
      %v2521 = vpop.f32.mrf.mxu0
      %v2522 = vadd.f32 %v2409, %v2521
      %2523 = vmatmul.f32.gmra.mxu0 %v1643
      %v2524 = vpop.f32.mrf.mxu0
      %v2525 = vadd.f32 %v2412, %v2524
      %2526 = vmatmul.f32.gmra.mxu0 %v1652
      %v2527 = vpop.f32.mrf.mxu0
      %v2528 = vadd.f32 %v2415, %v2527
      %2529 = vmatmul.f32.gmra.mxu0 %v1661
      %v2530 = vpop.f32.mrf.mxu0
      %v2531 = vadd.f32 %v2418, %v2530
      %2532 = vmatmul.f32.gmra.mxu0 %v1670
      %v2533 = vpop.f32.mrf.mxu0
      %v2534 = vadd.f32 %v2421, %v2533
      %2535 = vmatmul.f32.gmra.mxu0 %v1679
      %v2536 = vpop.f32.mrf.mxu0
      %v2537 = vadd.f32 %v2424, %v2536
      %2538 = vmatmul.f32.gmra.mxu0 %v1688
      %v2539 = vpop.f32.mrf.mxu0
      %v2540 = vadd.f32 %v2427, %v2539
      %2541 = vmatmul.f32.gmra.mxu0 %v1697
      %v2542 = vpop.f32.mrf.mxu0
      %v2543 = vadd.f32 %v2430, %v2542
      %2544 = vmatmul.f32.gmra.mxu0 %v1706
      %v2545 = vpop.f32.mrf.mxu0
      %v2546 = vadd.f32 %v2433, %v2545
      %2547 = vmatmul.f32.gmra.mxu0 %v1715
      %v2548 = vpop.f32.mrf.mxu0
      %v2549 = vadd.f32 %v2436, %v2548
      %2550 = vmatmul.f32.gmra.mxu0 %v1724
      %v2551 = vpop.f32.mrf.mxu0
      %v2552 = vadd.f32 %v2439, %v2551
      %2553 = vdwg.mxu0
      %2554 = vmatpush.msra.mxu0 %v1839
      %2555 = vmatpush.msra.mxu0 %v1838
      %2556 = vmatpush.msra.mxu0 %v1837
      %2557 = vmatpush.msra.mxu0 %v1836
      %2558 = vmatpush.msra.mxu0 %v1835
      %2559 = vmatpush.msra.mxu0 %v1834
      %2560 = vmatpush.msra.mxu0 %v1833
      %2561 = vmatpush.msra.mxu0 %v1832
      %2562 = vmatpush.msra.mxu0 %v1831
      %2563 = vmatpush.msra.mxu0 %v1830
      %2564 = vmatpush.msra.mxu0 %v1829
      %2565 = vmatpush.msra.mxu0 %v1828
      %2566 = vmatpush.msra.mxu0 %v1827
      %2567 = vmatpush.msra.mxu0 %v1826
      %2568 = vmatpush.msra.mxu0 %v1825
      %2569 = vmatpush.msra.mxu0 %v1824
      %2570 = vmatmul.f32.gmra.mxu0 %v1446
      %v2571 = vpop.f32.mrf.mxu0
      %v2572 = vadd.f32 %v2459, %v2571
      %2573 = vmatmul.f32.gmra.mxu0 %v1455
      %v2574 = vpop.f32.mrf.mxu0
      %v2575 = vadd.f32 %v2462, %v2574
      %2576 = vmatmul.f32.gmra.mxu0 %v1464
      %v2577 = vpop.f32.mrf.mxu0
      %v2578 = vadd.f32 %v2465, %v2577
      %2579 = vmatmul.f32.gmra.mxu0 %v1473
      %v2580 = vpop.f32.mrf.mxu0
      %v2581 = vadd.f32 %v2468, %v2580
      %2582 = vmatmul.f32.gmra.mxu0 %v1482
      %v2583 = vpop.f32.mrf.mxu0
      %v2584 = vadd.f32 %v2471, %v2583
      %2585 = vmatmul.f32.gmra.mxu0 %v1491
      %v2586 = vpop.f32.mrf.mxu0
      %v2587 = vadd.f32 %v2474, %v2586
      %2588 = vmatmul.f32.gmra.mxu0 %v1500
      %v2589 = vpop.f32.mrf.mxu0
      %v2590 = vadd.f32 %v2477, %v2589
      %2591 = vmatmul.f32.gmra.mxu0 %v1509
      %v2592 = vpop.f32.mrf.mxu0
      %v2593 = vadd.f32 %v2480, %v2592
      %2594 = vmatmul.f32.gmra.mxu0 %v1518
      %v2595 = vpop.f32.mrf.mxu0
      %v2596 = vadd.f32 %v2483, %v2595
      %2597 = vmatmul.f32.gmra.mxu0 %v1527
      %v2598 = vpop.f32.mrf.mxu0
      %v2599 = vadd.f32 %v2486, %v2598
      %2600 = vmatmul.f32.gmra.mxu0 %v1536
      %v2601 = vpop.f32.mrf.mxu0
      %v2602 = vadd.f32 %v2489, %v2601
      %2603 = vmatmul.f32.gmra.mxu0 %v1545
      %v2604 = vpop.f32.mrf.mxu0
      %v2605 = vadd.f32 %v2492, %v2604
      %2606 = vmatmul.f32.gmra.mxu0 %v1554
      %v2607 = vpop.f32.mrf.mxu0
      %v2608 = vadd.f32 %v2495, %v2607
      %2609 = vmatmul.f32.gmra.mxu0 %v1563
      %v2610 = vpop.f32.mrf.mxu0
      %v2611 = vadd.f32 %v2498, %v2610
      %2612 = vmatmul.f32.gmra.mxu0 %v1572
      %v2613 = vpop.f32.mrf.mxu0
      %v2614 = vadd.f32 %v2501, %v2613
      %2615 = vmatmul.f32.gmra.mxu0 %v1581
      %v2616 = vpop.f32.mrf.mxu0
      %v2617 = vadd.f32 %v2504, %v2616
      %2618 = vmatmul.f32.gmra.mxu0 %v1590
      %v2619 = vpop.f32.mrf.mxu0
      %v2620 = vadd.f32 %v2507, %v2619
      %2621 = vmatmul.f32.gmra.mxu0 %v1599
      %v2622 = vpop.f32.mrf.mxu0
      %v2623 = vadd.f32 %v2510, %v2622
      %2624 = vmatmul.f32.gmra.mxu0 %v1608
      %v2625 = vpop.f32.mrf.mxu0
      %v2626 = vadd.f32 %v2513, %v2625
      %2627 = vmatmul.f32.gmra.mxu0 %v1617
      %v2628 = vpop.f32.mrf.mxu0
      %v2629 = vadd.f32 %v2516, %v2628
      %2630 = vmatmul.f32.gmra.mxu0 %v1626
      %v2631 = vpop.f32.mrf.mxu0
      %v2632 = vadd.f32 %v2519, %v2631
      %2633 = vmatmul.f32.gmra.mxu0 %v1635
      %v2634 = vpop.f32.mrf.mxu0
      %v2635 = vadd.f32 %v2522, %v2634
      %2636 = vmatmul.f32.gmra.mxu0 %v1644
      %v2637 = vpop.f32.mrf.mxu0
      %v2638 = vadd.f32 %v2525, %v2637
      %2639 = vmatmul.f32.gmra.mxu0 %v1653
      %v2640 = vpop.f32.mrf.mxu0
      %v2641 = vadd.f32 %v2528, %v2640
      %2642 = vmatmul.f32.gmra.mxu0 %v1662
      %v2643 = vpop.f32.mrf.mxu0
      %v2644 = vadd.f32 %v2531, %v2643
      %2645 = vmatmul.f32.gmra.mxu0 %v1671
      %v2646 = vpop.f32.mrf.mxu0
      %v2647 = vadd.f32 %v2534, %v2646
      %2648 = vmatmul.f32.gmra.mxu0 %v1680
      %v2649 = vpop.f32.mrf.mxu0
      %v2650 = vadd.f32 %v2537, %v2649
      %2651 = vmatmul.f32.gmra.mxu0 %v1689
      %v2652 = vpop.f32.mrf.mxu0
      %v2653 = vadd.f32 %v2540, %v2652
      %2654 = vmatmul.f32.gmra.mxu0 %v1698
      %v2655 = vpop.f32.mrf.mxu0
      %v2656 = vadd.f32 %v2543, %v2655
      %2657 = vmatmul.f32.gmra.mxu0 %v1707
      %v2658 = vpop.f32.mrf.mxu0
      %v2659 = vadd.f32 %v2546, %v2658
      %2660 = vmatmul.f32.gmra.mxu0 %v1716
      %v2661 = vpop.f32.mrf.mxu0
      %v2662 = vadd.f32 %v2549, %v2661
      %2663 = vmatmul.f32.gmra.mxu0 %v1725
      %v2664 = vpop.f32.mrf.mxu0
      %v2665 = vadd.f32 %v2552, %v2664
      %2666 = vdwg.mxu0
      %2667 = vmatpush.msra.mxu0 %v1855
      %2668 = vmatpush.msra.mxu0 %v1854
      %2669 = vmatpush.msra.mxu0 %v1853
      %2670 = vmatpush.msra.mxu0 %v1852
      %2671 = vmatpush.msra.mxu0 %v1851
      %2672 = vmatpush.msra.mxu0 %v1850
      %2673 = vmatpush.msra.mxu0 %v1849
      %2674 = vmatpush.msra.mxu0 %v1848
      %2675 = vmatpush.msra.mxu0 %v1847
      %2676 = vmatpush.msra.mxu0 %v1846
      %2677 = vmatpush.msra.mxu0 %v1845
      %2678 = vmatpush.msra.mxu0 %v1844
      %2679 = vmatpush.msra.mxu0 %v1843
      %2680 = vmatpush.msra.mxu0 %v1842
      %2681 = vmatpush.msra.mxu0 %v1841
      %2682 = vmatpush.msra.mxu0 %v1840
      %2683 = vmatmul.f32.gmra.mxu0 %v1447
      %v2684 = vpop.f32.mrf.mxu0
      %v2685 = vadd.f32 %v2572, %v2684
      %2686 = vmatmul.f32.gmra.mxu0 %v1456
      %v2687 = vpop.f32.mrf.mxu0
      %v2688 = vadd.f32 %v2575, %v2687
      %2689 = vmatmul.f32.gmra.mxu0 %v1465
      %v2690 = vpop.f32.mrf.mxu0
      %v2691 = vadd.f32 %v2578, %v2690
      %2692 = vmatmul.f32.gmra.mxu0 %v1474
      %v2693 = vpop.f32.mrf.mxu0
      %v2694 = vadd.f32 %v2581, %v2693
      %2695 = vmatmul.f32.gmra.mxu0 %v1483
      %v2696 = vpop.f32.mrf.mxu0
      %v2697 = vadd.f32 %v2584, %v2696
      %2698 = vmatmul.f32.gmra.mxu0 %v1492
      %v2699 = vpop.f32.mrf.mxu0
      %v2700 = vadd.f32 %v2587, %v2699
      %2701 = vmatmul.f32.gmra.mxu0 %v1501
      %v2702 = vpop.f32.mrf.mxu0
      %v2703 = vadd.f32 %v2590, %v2702
      %2704 = vmatmul.f32.gmra.mxu0 %v1510
      %v2705 = vpop.f32.mrf.mxu0
      %v2706 = vadd.f32 %v2593, %v2705
      %2707 = vmatmul.f32.gmra.mxu0 %v1519
      %v2708 = vpop.f32.mrf.mxu0
      %v2709 = vadd.f32 %v2596, %v2708
      %2710 = vmatmul.f32.gmra.mxu0 %v1528
      %v2711 = vpop.f32.mrf.mxu0
      %v2712 = vadd.f32 %v2599, %v2711
      %2713 = vmatmul.f32.gmra.mxu0 %v1537
      %v2714 = vpop.f32.mrf.mxu0
      %v2715 = vadd.f32 %v2602, %v2714
      %2716 = vmatmul.f32.gmra.mxu0 %v1546
      %v2717 = vpop.f32.mrf.mxu0
      %v2718 = vadd.f32 %v2605, %v2717
      %2719 = vmatmul.f32.gmra.mxu0 %v1555
      %v2720 = vpop.f32.mrf.mxu0
      %v2721 = vadd.f32 %v2608, %v2720
      %2722 = vmatmul.f32.gmra.mxu0 %v1564
      %v2723 = vpop.f32.mrf.mxu0
      %v2724 = vadd.f32 %v2611, %v2723
      %2725 = vmatmul.f32.gmra.mxu0 %v1573
      %v2726 = vpop.f32.mrf.mxu0
      %v2727 = vadd.f32 %v2614, %v2726
      %2728 = vmatmul.f32.gmra.mxu0 %v1582
      %v2729 = vpop.f32.mrf.mxu0
      %v2730 = vadd.f32 %v2617, %v2729
      %2731 = vmatmul.f32.gmra.mxu0 %v1591
      %v2732 = vpop.f32.mrf.mxu0
      %v2733 = vadd.f32 %v2620, %v2732
      %2734 = vmatmul.f32.gmra.mxu0 %v1600
      %v2735 = vpop.f32.mrf.mxu0
      %v2736 = vadd.f32 %v2623, %v2735
      %2737 = vmatmul.f32.gmra.mxu0 %v1609
      %v2738 = vpop.f32.mrf.mxu0
      %v2739 = vadd.f32 %v2626, %v2738
      %2740 = vmatmul.f32.gmra.mxu0 %v1618
      %v2741 = vpop.f32.mrf.mxu0
      %v2742 = vadd.f32 %v2629, %v2741
      %2743 = vmatmul.f32.gmra.mxu0 %v1627
      %v2744 = vpop.f32.mrf.mxu0
      %v2745 = vadd.f32 %v2632, %v2744
      %2746 = vmatmul.f32.gmra.mxu0 %v1636
      %v2747 = vpop.f32.mrf.mxu0
      %v2748 = vadd.f32 %v2635, %v2747
      %2749 = vmatmul.f32.gmra.mxu0 %v1645
      %v2750 = vpop.f32.mrf.mxu0
      %v2751 = vadd.f32 %v2638, %v2750
      %2752 = vmatmul.f32.gmra.mxu0 %v1654
      %v2753 = vpop.f32.mrf.mxu0
      %v2754 = vadd.f32 %v2641, %v2753
      %2755 = vmatmul.f32.gmra.mxu0 %v1663
      %v2756 = vpop.f32.mrf.mxu0
      %v2757 = vadd.f32 %v2644, %v2756
      %2758 = vmatmul.f32.gmra.mxu0 %v1672
      %v2759 = vpop.f32.mrf.mxu0
      %v2760 = vadd.f32 %v2647, %v2759
      %2761 = vmatmul.f32.gmra.mxu0 %v1681
      %v2762 = vpop.f32.mrf.mxu0
      %v2763 = vadd.f32 %v2650, %v2762
      %2764 = vmatmul.f32.gmra.mxu0 %v1690
      %v2765 = vpop.f32.mrf.mxu0
      %v2766 = vadd.f32 %v2653, %v2765
      %2767 = vmatmul.f32.gmra.mxu0 %v1699
      %v2768 = vpop.f32.mrf.mxu0
      %v2769 = vadd.f32 %v2656, %v2768
      %2770 = vmatmul.f32.gmra.mxu0 %v1708
      %v2771 = vpop.f32.mrf.mxu0
      %v2772 = vadd.f32 %v2659, %v2771
      %2773 = vmatmul.f32.gmra.mxu0 %v1717
      %v2774 = vpop.f32.mrf.mxu0
      %v2775 = vadd.f32 %v2662, %v2774
      %2776 = vmatmul.f32.gmra.mxu0 %v1726
      %v2777 = vpop.f32.mrf.mxu0
      %v2778 = vadd.f32 %v2665, %v2777
      %2779 = vdwg.mxu0
      %2780 = vmatpush.msra.mxu0 %v1871
      %2781 = vmatpush.msra.mxu0 %v1870
      %2782 = vmatpush.msra.mxu0 %v1869
      %2783 = vmatpush.msra.mxu0 %v1868
      %2784 = vmatpush.msra.mxu0 %v1867
      %2785 = vmatpush.msra.mxu0 %v1866
      %2786 = vmatpush.msra.mxu0 %v1865
      %2787 = vmatpush.msra.mxu0 %v1864
      %2788 = vmatpush.msra.mxu0 %v1863
      %2789 = vmatpush.msra.mxu0 %v1862
      %2790 = vmatpush.msra.mxu0 %v1861
      %2791 = vmatpush.msra.mxu0 %v1860
      %2792 = vmatpush.msra.mxu0 %v1859
      %2793 = vmatpush.msra.mxu0 %v1858
      %2794 = vmatpush.msra.mxu0 %v1857
      %2795 = vmatpush.msra.mxu0 %v1856
      %2796 = vmatmul.f32.gmra.mxu0 %v1448
      %v2797 = vpop.f32.mrf.mxu0
      %v2798 = vadd.f32 %v2685, %v2797
      %2799 = vmatmul.f32.gmra.mxu0 %v1457
      %v2800 = vpop.f32.mrf.mxu0
      %v2801 = vadd.f32 %v2688, %v2800
      %2802 = vmatmul.f32.gmra.mxu0 %v1466
      %v2803 = vpop.f32.mrf.mxu0
      %v2804 = vadd.f32 %v2691, %v2803
      %2805 = vmatmul.f32.gmra.mxu0 %v1475
      %v2806 = vpop.f32.mrf.mxu0
      %v2807 = vadd.f32 %v2694, %v2806
      %2808 = vmatmul.f32.gmra.mxu0 %v1484
      %v2809 = vpop.f32.mrf.mxu0
      %v2810 = vadd.f32 %v2697, %v2809
      %2811 = vmatmul.f32.gmra.mxu0 %v1493
      %v2812 = vpop.f32.mrf.mxu0
      %v2813 = vadd.f32 %v2700, %v2812
      %2814 = vmatmul.f32.gmra.mxu0 %v1502
      %v2815 = vpop.f32.mrf.mxu0
      %v2816 = vadd.f32 %v2703, %v2815
      %2817 = vmatmul.f32.gmra.mxu0 %v1511
      %v2818 = vpop.f32.mrf.mxu0
      %v2819 = vadd.f32 %v2706, %v2818
      %2820 = vmatmul.f32.gmra.mxu0 %v1520
      %v2821 = vpop.f32.mrf.mxu0
      %v2822 = vadd.f32 %v2709, %v2821
      %2823 = vmatmul.f32.gmra.mxu0 %v1529
      %v2824 = vpop.f32.mrf.mxu0
      %v2825 = vadd.f32 %v2712, %v2824
      %2826 = vmatmul.f32.gmra.mxu0 %v1538
      %v2827 = vpop.f32.mrf.mxu0
      %v2828 = vadd.f32 %v2715, %v2827
      %2829 = vmatmul.f32.gmra.mxu0 %v1547
      %v2830 = vpop.f32.mrf.mxu0
      %v2831 = vadd.f32 %v2718, %v2830
      %2832 = vmatmul.f32.gmra.mxu0 %v1556
      %v2833 = vpop.f32.mrf.mxu0
      %v2834 = vadd.f32 %v2721, %v2833
      %2835 = vmatmul.f32.gmra.mxu0 %v1565
      %v2836 = vpop.f32.mrf.mxu0
      %v2837 = vadd.f32 %v2724, %v2836
      %2838 = vmatmul.f32.gmra.mxu0 %v1574
      %v2839 = vpop.f32.mrf.mxu0
      %v2840 = vadd.f32 %v2727, %v2839
      %2841 = vmatmul.f32.gmra.mxu0 %v1583
      %v2842 = vpop.f32.mrf.mxu0
      %v2843 = vadd.f32 %v2730, %v2842
      %2844 = vmatmul.f32.gmra.mxu0 %v1592
      %v2845 = vpop.f32.mrf.mxu0
      %v2846 = vadd.f32 %v2733, %v2845
      %2847 = vmatmul.f32.gmra.mxu0 %v1601
      %v2848 = vpop.f32.mrf.mxu0
      %v2849 = vadd.f32 %v2736, %v2848
      %2850 = vmatmul.f32.gmra.mxu0 %v1610
      %v2851 = vpop.f32.mrf.mxu0
      %v2852 = vadd.f32 %v2739, %v2851
      %2853 = vmatmul.f32.gmra.mxu0 %v1619
      %v2854 = vpop.f32.mrf.mxu0
      %v2855 = vadd.f32 %v2742, %v2854
      %2856 = vmatmul.f32.gmra.mxu0 %v1628
      %v2857 = vpop.f32.mrf.mxu0
      %v2858 = vadd.f32 %v2745, %v2857
      %2859 = vmatmul.f32.gmra.mxu0 %v1637
      %v2860 = vpop.f32.mrf.mxu0
      %v2861 = vadd.f32 %v2748, %v2860
      %2862 = vmatmul.f32.gmra.mxu0 %v1646
      %v2863 = vpop.f32.mrf.mxu0
      %v2864 = vadd.f32 %v2751, %v2863
      %2865 = vmatmul.f32.gmra.mxu0 %v1655
      %v2866 = vpop.f32.mrf.mxu0
      %v2867 = vadd.f32 %v2754, %v2866
      %2868 = vmatmul.f32.gmra.mxu0 %v1664
      %v2869 = vpop.f32.mrf.mxu0
      %v2870 = vadd.f32 %v2757, %v2869
      %2871 = vmatmul.f32.gmra.mxu0 %v1673
      %v2872 = vpop.f32.mrf.mxu0
      %v2873 = vadd.f32 %v2760, %v2872
      %2874 = vmatmul.f32.gmra.mxu0 %v1682
      %v2875 = vpop.f32.mrf.mxu0
      %v2876 = vadd.f32 %v2763, %v2875
      %2877 = vmatmul.f32.gmra.mxu0 %v1691
      %v2878 = vpop.f32.mrf.mxu0
      %v2879 = vadd.f32 %v2766, %v2878
      %2880 = vmatmul.f32.gmra.mxu0 %v1700
      %v2881 = vpop.f32.mrf.mxu0
      %v2882 = vadd.f32 %v2769, %v2881
      %2883 = vmatmul.f32.gmra.mxu0 %v1709
      %v2884 = vpop.f32.mrf.mxu0
      %v2885 = vadd.f32 %v2772, %v2884
      %2886 = vmatmul.f32.gmra.mxu0 %v1718
      %v2887 = vpop.f32.mrf.mxu0
      %v2888 = vadd.f32 %v2775, %v2887
      %2889 = vmatmul.f32.gmra.mxu0 %v1727
      %v2890 = vpop.f32.mrf.mxu0
      %v2891 = vadd.f32 %v2778, %v2890
      %2892 = vdwg.mxu0
      %v2893 = vmax.f32 %v2798, 0.0
      %v2894 = vmax.f32 %v2801, 0.0
      %v2895 = vmax.f32 %v2804, 0.0
      %v2896 = vmax.f32 %v2807, 0.0
      %v2897 = vmax.f32 %v2810, 0.0
      %v2898 = vmax.f32 %v2813, 0.0
      %v2899 = vmax.f32 %v2816, 0.0
      %v2900 = vmax.f32 %v2819, 0.0
      %v2901 = vmax.f32 %v2822, 0.0
      %v2902 = vmax.f32 %v2825, 0.0
      %v2903 = vmax.f32 %v2828, 0.0
      %v2904 = vmax.f32 %v2831, 0.0
      %v2905 = vmax.f32 %v2834, 0.0
      %v2906 = vmax.f32 %v2837, 0.0
      %v2907 = vmax.f32 %v2840, 0.0
      %v2908 = vmax.f32 %v2843, 0.0
      %v2909 = vmax.f32 %v2846, 0.0
      %v2910 = vmax.f32 %v2849, 0.0
      %v2911 = vmax.f32 %v2852, 0.0
      %v2912 = vmax.f32 %v2855, 0.0
      %v2913 = vmax.f32 %v2858, 0.0
      %v2914 = vmax.f32 %v2861, 0.0
      %v2915 = vmax.f32 %v2864, 0.0
      %v2916 = vmax.f32 %v2867, 0.0
      %v2917 = vmax.f32 %v2870, 0.0
      %v2918 = vmax.f32 %v2873, 0.0
      %v2919 = vmax.f32 %v2876, 0.0
      %v2920 = vmax.f32 %v2879, 0.0
      %v2921 = vmax.f32 %v2882, 0.0
      %v2922 = vmax.f32 %v2885, 0.0
      %v2923 = vmax.f32 %v2888, 0.0
      %v2924 = vmax.f32 %v2891, 0.0
      %s2925 = scalar_lea.vmem [#allocation4], 24
      %2926 = vst.msk [vmem:[%s2925 + $0x1] sm:$0xff] %vm342, %v2893
      %2927 = vst.msk [vmem:[%s2925 + $0x9] sm:$0xff] %vm342, %v2894
      %2928 = vst.msk [vmem:[%s2925 + $0x19] sm:$0xff] %vm342, %v2895
      %2929 = vst.msk [vmem:[%s2925 + $0x21] sm:$0xff] %vm342, %v2896
      %2930 = vst.msk [vmem:[%s2925 + $0x31] sm:$0xff] %vm342, %v2897
      %2931 = vst.msk [vmem:[%s2925 + $0x39] sm:$0xff] %vm342, %v2898
      %2932 = vst.msk [vmem:[%s2925 + $0x49] sm:$0xff] %vm342, %v2899
      %2933 = vst.msk [vmem:[%s2925 + $0x51] sm:$0xff] %vm342, %v2900
      %2934 = vst.msk [vmem:[%s2925 + $0x61] sm:$0xff] %vm342, %v2901
      %2935 = vst.msk [vmem:[%s2925 + $0x69] sm:$0xff] %vm342, %v2902
      %2936 = vst.msk [vmem:[%s2925 + $0x79] sm:$0xff] %vm342, %v2903
      %2937 = vst.msk [vmem:[%s2925 + $0x81] sm:$0xff] %vm342, %v2904
      %2938 = vst.msk [vmem:[%s2925 + $0x91] sm:$0xff] %vm342, %v2905
      %2939 = vst.msk [vmem:[%s2925 + $0x99] sm:$0xff] %vm342, %v2906
      %2940 = vst.msk [vmem:[%s2925 + $0xa9] sm:$0xff] %vm342, %v2907
      %2941 = vst.msk [vmem:[%s2925 + $0xb1] sm:$0xff] %vm342, %v2908
      %2942 = vst.msk [vmem:[%s2925 + $0xc1] sm:$0xff] %vm342, %v2909
      %2943 = vst.msk [vmem:[%s2925 + $0xc9] sm:$0xff] %vm342, %v2910
      %2944 = vst.msk [vmem:[%s2925 + $0xd9] sm:$0xff] %vm342, %v2911
      %2945 = vst.msk [vmem:[%s2925 + $0xe1] sm:$0xff] %vm342, %v2912
      %2946 = vst.msk [vmem:[%s2925 + $0xf1] sm:$0xff] %vm342, %v2913
      %2947 = vst.msk [vmem:[%s2925 + $0xf9] sm:$0xff] %vm342, %v2914
      %2948 = vst.msk [vmem:[%s2925 + $0x109] sm:$0xff] %vm342, %v2915
      %2949 = vst.msk [vmem:[%s2925 + $0x111] sm:$0xff] %vm342, %v2916
      %2950 = vst.msk [vmem:[%s2925 + $0x121] sm:$0xff] %vm342, %v2917
      %2951 = vst.msk [vmem:[%s2925 + $0x129] sm:$0xff] %vm342, %v2918
      %2952 = vst.msk [vmem:[%s2925 + $0x139] sm:$0xff] %vm342, %v2919
      %2953 = vst.msk [vmem:[%s2925 + $0x141] sm:$0xff] %vm342, %v2920
      %2954 = vst.msk [vmem:[%s2925 + $0x151] sm:$0xff] %vm342, %v2921
      %2955 = vst.msk [vmem:[%s2925 + $0x159] sm:$0xff] %vm342, %v2922
      %2956 = vst.msk [vmem:[%s2925 + $0x169] sm:$0xff] %vm342, %v2923
      %2957 = vst.msk [vmem:[%s2925 + $0x171] sm:$0xff] %vm342, %v2924
      %v2958 = vld [vmem:[#allocation4] sm:$0xff]
      %v2959 = vld [vmem:[#allocation4 + $0x8] sm:$0xff]
      %v2960 = vld [vmem:[#allocation4 + $0x18] sm:$0xff]
      %v2961 = vld [vmem:[#allocation4 + $0x20] sm:$0xff]
      %v2962 = vld [vmem:[#allocation4 + $0x30] sm:$0xff]
      %v2963 = vld [vmem:[#allocation4 + $0x38] sm:$0xff]
      %v2964 = vld [vmem:[#allocation4 + $0x48] sm:$0xff]
      %v2965 = vld [vmem:[#allocation4 + $0x50] sm:$0xff]
      %v2966 = vld [vmem:[#allocation4 + $0x60] sm:$0xff]
      %v2967 = vld [vmem:[#allocation4 + $0x68] sm:$0xff]
      %v2968 = vld [vmem:[#allocation4 + $0x78] sm:$0xff]
      %v2969 = vld [vmem:[#allocation4 + $0x80] sm:$0xff]
      %v2970 = vld [vmem:[#allocation4 + $0x90] sm:$0xff]
      %v2971 = vld [vmem:[#allocation4 + $0x98] sm:$0xff]
      %v2972 = vld [vmem:[#allocation4 + $0xa8] sm:$0xff]
      %v2973 = vld [vmem:[#allocation4 + $0xb0] sm:$0xff]
      %v2974 = vld [vmem:[#allocation4 + $0xc0] sm:$0xff]
      %v2975 = vld [vmem:[#allocation4 + $0xc8] sm:$0xff]
      %v2976 = vld [vmem:[#allocation4 + $0xd8] sm:$0xff]
      %v2977 = vld [vmem:[#allocation4 + $0xe0] sm:$0xff]
      %v2978 = vld [vmem:[#allocation4 + $0xf0] sm:$0xff]
      %v2979 = vld [vmem:[#allocation4 + $0xf8] sm:$0xff]
      %v2980 = vld [vmem:[#allocation4 + $0x108] sm:$0xff]
      %v2981 = vld [vmem:[#allocation4 + $0x110] sm:$0xff]
      %v2982 = vld [vmem:[#allocation4 + $0x120] sm:$0xff]
      %v2983 = vld [vmem:[#allocation4 + $0x128] sm:$0xff]
      %v2984 = vld [vmem:[#allocation4 + $0x138] sm:$0xff]
      %v2985 = vld [vmem:[#allocation4 + $0x140] sm:$0xff]
      %v2986 = vld [vmem:[#allocation4 + $0x150] sm:$0xff]
      %v2987 = vld [vmem:[#allocation4 + $0x158] sm:$0xff]
      %v2988 = vld [vmem:[#allocation4 + $0x168] sm:$0xff]
      %v2989 = vld [vmem:[#allocation4 + $0x170] sm:$0xff]
      %2990 = vst.msk [vmem:[#allocation5] sm:$0xff] %vm342, %v2958
      %2991 = vst.msk [vmem:[#allocation5 + $0x28] sm:$0xff] %vm342, %v2959
      %2992 = vst.msk [vmem:[#allocation5 + $0x50] sm:$0xff] %vm342, %v2960
      %2993 = vst.msk [vmem:[#allocation5 + $0x78] sm:$0xff] %vm342, %v2961
      %2994 = vst.msk [vmem:[#allocation5 + $0xa0] sm:$0xff] %vm342, %v2962
      %2995 = vst.msk [vmem:[#allocation5 + $0xc8] sm:$0xff] %vm342, %v2963
      %2996 = vst.msk [vmem:[#allocation5 + $0xf0] sm:$0xff] %vm342, %v2964
      %2997 = vst.msk [vmem:[#allocation5 + $0x118] sm:$0xff] %vm342, %v2965
      %2998 = vst.msk [vmem:[#allocation5 + $0x140] sm:$0xff] %vm342, %v2966
      %2999 = vst.msk [vmem:[#allocation5 + $0x168] sm:$0xff] %vm342, %v2967
      %3000 = vst.msk [vmem:[#allocation5 + $0x190] sm:$0xff] %vm342, %v2968
      %3001 = vst.msk [vmem:[#allocation5 + $0x1b8] sm:$0xff] %vm342, %v2969
      %3002 = vst.msk [vmem:[#allocation5 + $0x1e0] sm:$0xff] %vm342, %v2970
      %3003 = vst.msk [vmem:[#allocation5 + $0x208] sm:$0xff] %vm342, %v2971
      %3004 = vst.msk [vmem:[#allocation5 + $0x230] sm:$0xff] %vm342, %v2972
      %3005 = vst.msk [vmem:[#allocation5 + $0x258] sm:$0xff] %vm342, %v2973
      %3006 = vst.msk [vmem:[#allocation5 + $0x280] sm:$0xff] %vm342, %v2974
      %3007 = vst.msk [vmem:[#allocation5 + $0x2a8] sm:$0xff] %vm342, %v2975
      %3008 = vst.msk [vmem:[#allocation5 + $0x2d0] sm:$0xff] %vm342, %v2976
      %3009 = vst.msk [vmem:[#allocation5 + $0x2f8] sm:$0xff] %vm342, %v2977
      %3010 = vst.msk [vmem:[#allocation5 + $0x320] sm:$0xff] %vm342, %v2978
      %3011 = vst.msk [vmem:[#allocation5 + $0x348] sm:$0xff] %vm342, %v2979
      %3012 = vst.msk [vmem:[#allocation5 + $0x370] sm:$0xff] %vm342, %v2980
      %3013 = vst.msk [vmem:[#allocation5 + $0x398] sm:$0xff] %vm342, %v2981
      %3014 = vst.msk [vmem:[#allocation5 + $0x3c0] sm:$0xff] %vm342, %v2982
      %3015 = vst.msk [vmem:[#allocation5 + $0x3e8] sm:$0xff] %vm342, %v2983
      %3016 = vst.msk [vmem:[#allocation5 + $0x410] sm:$0xff] %vm342, %v2984
      %3017 = vst.msk [vmem:[#allocation5 + $0x438] sm:$0xff] %vm342, %v2985
      %3018 = vst.msk [vmem:[#allocation5 + $0x460] sm:$0xff] %vm342, %v2986
      %3019 = vst.msk [vmem:[#allocation5 + $0x488] sm:$0xff] %vm342, %v2987
      %3020 = vst.msk [vmem:[#allocation5 + $0x4b0] sm:$0xff] %vm342, %v2988
      %3021 = vst.msk [vmem:[#allocation5 + $0x4d8] sm:$0xff] %vm342, %v2989
      %v3022 = vld [vmem:[#allocation4 + $0x1] sm:$0xff]
      %v3023 = vld [vmem:[#allocation4 + $0x9] sm:$0xff]
      %v3024 = vld [vmem:[#allocation4 + $0x19] sm:$0xff]
      %v3025 = vld [vmem:[#allocation4 + $0x21] sm:$0xff]
      %v3026 = vld [vmem:[#allocation4 + $0x31] sm:$0xff]
      %v3027 = vld [vmem:[#allocation4 + $0x39] sm:$0xff]
      %v3028 = vld [vmem:[#allocation4 + $0x49] sm:$0xff]
      %v3029 = vld [vmem:[#allocation4 + $0x51] sm:$0xff]
      %v3030 = vld [vmem:[#allocation4 + $0x61] sm:$0xff]
      %v3031 = vld [vmem:[#allocation4 + $0x69] sm:$0xff]
      %v3032 = vld [vmem:[#allocation4 + $0x79] sm:$0xff]
      %v3033 = vld [vmem:[#allocation4 + $0x81] sm:$0xff]
      %v3034 = vld [vmem:[#allocation4 + $0x91] sm:$0xff]
      %v3035 = vld [vmem:[#allocation4 + $0x99] sm:$0xff]
      %v3036 = vld [vmem:[#allocation4 + $0xa9] sm:$0xff]
      %v3037 = vld [vmem:[#allocation4 + $0xb1] sm:$0xff]
      %v3038 = vld [vmem:[#allocation4 + $0xc1] sm:$0xff]
      %v3039 = vld [vmem:[#allocation4 + $0xc9] sm:$0xff]
      %v3040 = vld [vmem:[#allocation4 + $0xd9] sm:$0xff]
      %v3041 = vld [vmem:[#allocation4 + $0xe1] sm:$0xff]
      %v3042 = vld [vmem:[#allocation4 + $0xf1] sm:$0xff]
      %v3043 = vld [vmem:[#allocation4 + $0xf9] sm:$0xff]
      %v3044 = vld [vmem:[#allocation4 + $0x109] sm:$0xff]
      %v3045 = vld [vmem:[#allocation4 + $0x111] sm:$0xff]
      %v3046 = vld [vmem:[#allocation4 + $0x121] sm:$0xff]
      %v3047 = vld [vmem:[#allocation4 + $0x129] sm:$0xff]
      %v3048 = vld [vmem:[#allocation4 + $0x139] sm:$0xff]
      %v3049 = vld [vmem:[#allocation4 + $0x141] sm:$0xff]
      %v3050 = vld [vmem:[#allocation4 + $0x151] sm:$0xff]
      %v3051 = vld [vmem:[#allocation4 + $0x159] sm:$0xff]
      %v3052 = vld [vmem:[#allocation4 + $0x169] sm:$0xff]
      %v3053 = vld [vmem:[#allocation4 + $0x171] sm:$0xff]
      %3086 = vrot.lane.b32.xlu0 %v3022, 64
      %v3087 = vpop.permute.xlu0 %3086
      %3088 = vrot.lane.b32.xlu0 %v3023, 64
      %v3089 = vpop.permute.xlu0 %3088
      %3090 = vrot.lane.b32.xlu0 %v3024, 64
      %v3091 = vpop.permute.xlu0 %3090
      %3092 = vrot.lane.b32.xlu0 %v3025, 64
      %v3093 = vpop.permute.xlu0 %3092
      %3094 = vrot.lane.b32.xlu0 %v3026, 64
      %v3095 = vpop.permute.xlu0 %3094
      %3096 = vrot.lane.b32.xlu0 %v3027, 64
      %v3097 = vpop.permute.xlu0 %3096
      %3098 = vrot.lane.b32.xlu0 %v3028, 64
      %v3099 = vpop.permute.xlu0 %3098
      %3100 = vrot.lane.b32.xlu0 %v3029, 64
      %v3101 = vpop.permute.xlu0 %3100
      %3102 = vrot.lane.b32.xlu0 %v3030, 64
      %v3103 = vpop.permute.xlu0 %3102
      %3104 = vrot.lane.b32.xlu0 %v3031, 64
      %v3105 = vpop.permute.xlu0 %3104
      %3106 = vrot.lane.b32.xlu0 %v3032, 64
      %v3107 = vpop.permute.xlu0 %3106
      %3108 = vrot.lane.b32.xlu0 %v3033, 64
      %v3109 = vpop.permute.xlu0 %3108
      %3110 = vrot.lane.b32.xlu0 %v3034, 64
      %v3111 = vpop.permute.xlu0 %3110
      %3112 = vrot.lane.b32.xlu0 %v3035, 64
      %v3113 = vpop.permute.xlu0 %3112
      %3114 = vrot.lane.b32.xlu0 %v3036, 64
      %v3115 = vpop.permute.xlu0 %3114
      %3116 = vrot.lane.b32.xlu0 %v3037, 64
      %v3117 = vpop.permute.xlu0 %3116
      %3118 = vrot.lane.b32.xlu0 %v3038, 64
      %v3119 = vpop.permute.xlu0 %3118
      %3120 = vrot.lane.b32.xlu0 %v3039, 64
      %v3121 = vpop.permute.xlu0 %3120
      %3122 = vrot.lane.b32.xlu0 %v3040, 64
      %v3123 = vpop.permute.xlu0 %3122
      %3124 = vrot.lane.b32.xlu0 %v3041, 64
      %v3125 = vpop.permute.xlu0 %3124
      %3126 = vrot.lane.b32.xlu0 %v3042, 64
      %v3127 = vpop.permute.xlu0 %3126
      %3128 = vrot.lane.b32.xlu0 %v3043, 64
      %v3129 = vpop.permute.xlu0 %3128
      %3130 = vrot.lane.b32.xlu0 %v3044, 64
      %v3131 = vpop.permute.xlu0 %3130
      %3132 = vrot.lane.b32.xlu0 %v3045, 64
      %v3133 = vpop.permute.xlu0 %3132
      %3134 = vrot.lane.b32.xlu0 %v3046, 64
      %v3135 = vpop.permute.xlu0 %3134
      %3136 = vrot.lane.b32.xlu0 %v3047, 64
      %v3137 = vpop.permute.xlu0 %3136
      %3138 = vrot.lane.b32.xlu0 %v3048, 64
      %v3139 = vpop.permute.xlu0 %3138
      %3140 = vrot.lane.b32.xlu0 %v3049, 64
      %v3141 = vpop.permute.xlu0 %3140
      %3142 = vrot.lane.b32.xlu0 %v3050, 64
      %v3143 = vpop.permute.xlu0 %3142
      %3144 = vrot.lane.b32.xlu0 %v3051, 64
      %v3145 = vpop.permute.xlu0 %3144
      %3146 = vrot.lane.b32.xlu0 %v3052, 64
      %v3147 = vpop.permute.xlu0 %3146
      %3148 = vrot.lane.b32.xlu0 %v3053, 64
      %v3149 = vpop.permute.xlu0 %3148
      %3182 = vst.msk [vmem:[#allocation5] sm:$0xff] %vm830, %v3087
      %3183 = vst.msk [vmem:[#allocation5 + $0x28] sm:$0xff] %vm830, %v3089
      %3184 = vst.msk [vmem:[#allocation5 + $0x50] sm:$0xff] %vm830, %v3091
      %3185 = vst.msk [vmem:[#allocation5 + $0x78] sm:$0xff] %vm830, %v3093
      %3186 = vst.msk [vmem:[#allocation5 + $0xa0] sm:$0xff] %vm830, %v3095
      %3187 = vst.msk [vmem:[#allocation5 + $0xc8] sm:$0xff] %vm830, %v3097
      %3188 = vst.msk [vmem:[#allocation5 + $0xf0] sm:$0xff] %vm830, %v3099
      %3189 = vst.msk [vmem:[#allocation5 + $0x118] sm:$0xff] %vm830, %v3101
      %3190 = vst.msk [vmem:[#allocation5 + $0x140] sm:$0xff] %vm830, %v3103
      %3191 = vst.msk [vmem:[#allocation5 + $0x168] sm:$0xff] %vm830, %v3105
      %3192 = vst.msk [vmem:[#allocation5 + $0x190] sm:$0xff] %vm830, %v3107
      %3193 = vst.msk [vmem:[#allocation5 + $0x1b8] sm:$0xff] %vm830, %v3109
      %3194 = vst.msk [vmem:[#allocation5 + $0x1e0] sm:$0xff] %vm830, %v3111
      %3195 = vst.msk [vmem:[#allocation5 + $0x208] sm:$0xff] %vm830, %v3113
      %3196 = vst.msk [vmem:[#allocation5 + $0x230] sm:$0xff] %vm830, %v3115
      %3197 = vst.msk [vmem:[#allocation5 + $0x258] sm:$0xff] %vm830, %v3117
      %3198 = vst.msk [vmem:[#allocation5 + $0x280] sm:$0xff] %vm830, %v3119
      %3199 = vst.msk [vmem:[#allocation5 + $0x2a8] sm:$0xff] %vm830, %v3121
      %3200 = vst.msk [vmem:[#allocation5 + $0x2d0] sm:$0xff] %vm830, %v3123
      %3201 = vst.msk [vmem:[#allocation5 + $0x2f8] sm:$0xff] %vm830, %v3125
      %3202 = vst.msk [vmem:[#allocation5 + $0x320] sm:$0xff] %vm830, %v3127
      %3203 = vst.msk [vmem:[#allocation5 + $0x348] sm:$0xff] %vm830, %v3129
      %3204 = vst.msk [vmem:[#allocation5 + $0x370] sm:$0xff] %vm830, %v3131
      %3205 = vst.msk [vmem:[#allocation5 + $0x398] sm:$0xff] %vm830, %v3133
      %3206 = vst.msk [vmem:[#allocation5 + $0x3c0] sm:$0xff] %vm830, %v3135
      %3207 = vst.msk [vmem:[#allocation5 + $0x3e8] sm:$0xff] %vm830, %v3137
      %3208 = vst.msk [vmem:[#allocation5 + $0x410] sm:$0xff] %vm830, %v3139
      %3209 = vst.msk [vmem:[#allocation5 + $0x438] sm:$0xff] %vm830, %v3141
      %3210 = vst.msk [vmem:[#allocation5 + $0x460] sm:$0xff] %vm830, %v3143
      %3211 = vst.msk [vmem:[#allocation5 + $0x488] sm:$0xff] %vm830, %v3145
      %3212 = vst.msk [vmem:[#allocation5 + $0x4b0] sm:$0xff] %vm830, %v3147
      %3213 = vst.msk [vmem:[#allocation5 + $0x4d8] sm:$0xff] %vm830, %v3149
      %v3214 = vld [vmem:[#allocation4 + $0x2] sm:$0xff]
      %v3215 = vld [vmem:[#allocation4 + $0xa] sm:$0xff]
      %v3216 = vld [vmem:[#allocation4 + $0x1a] sm:$0xff]
      %v3217 = vld [vmem:[#allocation4 + $0x22] sm:$0xff]
      %v3218 = vld [vmem:[#allocation4 + $0x32] sm:$0xff]
      %v3219 = vld [vmem:[#allocation4 + $0x3a] sm:$0xff]
      %v3220 = vld [vmem:[#allocation4 + $0x4a] sm:$0xff]
      %v3221 = vld [vmem:[#allocation4 + $0x52] sm:$0xff]
      %v3222 = vld [vmem:[#allocation4 + $0x62] sm:$0xff]
      %v3223 = vld [vmem:[#allocation4 + $0x6a] sm:$0xff]
      %v3224 = vld [vmem:[#allocation4 + $0x7a] sm:$0xff]
      %v3225 = vld [vmem:[#allocation4 + $0x82] sm:$0xff]
      %v3226 = vld [vmem:[#allocation4 + $0x92] sm:$0xff]
      %v3227 = vld [vmem:[#allocation4 + $0x9a] sm:$0xff]
      %v3228 = vld [vmem:[#allocation4 + $0xaa] sm:$0xff]
      %v3229 = vld [vmem:[#allocation4 + $0xb2] sm:$0xff]
      %v3230 = vld [vmem:[#allocation4 + $0xc2] sm:$0xff]
      %v3231 = vld [vmem:[#allocation4 + $0xca] sm:$0xff]
      %v3232 = vld [vmem:[#allocation4 + $0xda] sm:$0xff]
      %v3233 = vld [vmem:[#allocation4 + $0xe2] sm:$0xff]
      %v3234 = vld [vmem:[#allocation4 + $0xf2] sm:$0xff]
      %v3235 = vld [vmem:[#allocation4 + $0xfa] sm:$0xff]
      %v3236 = vld [vmem:[#allocation4 + $0x10a] sm:$0xff]
      %v3237 = vld [vmem:[#allocation4 + $0x112] sm:$0xff]
      %v3238 = vld [vmem:[#allocation4 + $0x122] sm:$0xff]
      %v3239 = vld [vmem:[#allocation4 + $0x12a] sm:$0xff]
      %v3240 = vld [vmem:[#allocation4 + $0x13a] sm:$0xff]
      %v3241 = vld [vmem:[#allocation4 + $0x142] sm:$0xff]
      %v3242 = vld [vmem:[#allocation4 + $0x152] sm:$0xff]
      %v3243 = vld [vmem:[#allocation4 + $0x15a] sm:$0xff]
      %v3244 = vld [vmem:[#allocation4 + $0x16a] sm:$0xff]
      %v3245 = vld [vmem:[#allocation4 + $0x172] sm:$0xff]
      %3246 = vst.msk [vmem:[#allocation5 + $0x8] sm:$0xff] %vm342, %v3214
      %3247 = vst.msk [vmem:[#allocation5 + $0x30] sm:$0xff] %vm342, %v3215
      %3248 = vst.msk [vmem:[#allocation5 + $0x58] sm:$0xff] %vm342, %v3216
      %3249 = vst.msk [vmem:[#allocation5 + $0x80] sm:$0xff] %vm342, %v3217
      %3250 = vst.msk [vmem:[#allocation5 + $0xa8] sm:$0xff] %vm342, %v3218
      %3251 = vst.msk [vmem:[#allocation5 + $0xd0] sm:$0xff] %vm342, %v3219
      %3252 = vst.msk [vmem:[#allocation5 + $0xf8] sm:$0xff] %vm342, %v3220
      %3253 = vst.msk [vmem:[#allocation5 + $0x120] sm:$0xff] %vm342, %v3221
      %3254 = vst.msk [vmem:[#allocation5 + $0x148] sm:$0xff] %vm342, %v3222
      %3255 = vst.msk [vmem:[#allocation5 + $0x170] sm:$0xff] %vm342, %v3223
      %3256 = vst.msk [vmem:[#allocation5 + $0x198] sm:$0xff] %vm342, %v3224
      %3257 = vst.msk [vmem:[#allocation5 + $0x1c0] sm:$0xff] %vm342, %v3225
      %3258 = vst.msk [vmem:[#allocation5 + $0x1e8] sm:$0xff] %vm342, %v3226
      %3259 = vst.msk [vmem:[#allocation5 + $0x210] sm:$0xff] %vm342, %v3227
      %3260 = vst.msk [vmem:[#allocation5 + $0x238] sm:$0xff] %vm342, %v3228
      %3261 = vst.msk [vmem:[#allocation5 + $0x260] sm:$0xff] %vm342, %v3229
      %3262 = vst.msk [vmem:[#allocation5 + $0x288] sm:$0xff] %vm342, %v3230
      %3263 = vst.msk [vmem:[#allocation5 + $0x2b0] sm:$0xff] %vm342, %v3231
      %3264 = vst.msk [vmem:[#allocation5 + $0x2d8] sm:$0xff] %vm342, %v3232
      %3265 = vst.msk [vmem:[#allocation5 + $0x300] sm:$0xff] %vm342, %v3233
      %3266 = vst.msk [vmem:[#allocation5 + $0x328] sm:$0xff] %vm342, %v3234
      %3267 = vst.msk [vmem:[#allocation5 + $0x350] sm:$0xff] %vm342, %v3235
      %3268 = vst.msk [vmem:[#allocation5 + $0x378] sm:$0xff] %vm342, %v3236
      %3269 = vst.msk [vmem:[#allocation5 + $0x3a0] sm:$0xff] %vm342, %v3237
      %3270 = vst.msk [vmem:[#allocation5 + $0x3c8] sm:$0xff] %vm342, %v3238
      %3271 = vst.msk [vmem:[#allocation5 + $0x3f0] sm:$0xff] %vm342, %v3239
      %3272 = vst.msk [vmem:[#allocation5 + $0x418] sm:$0xff] %vm342, %v3240
      %3273 = vst.msk [vmem:[#allocation5 + $0x440] sm:$0xff] %vm342, %v3241
      %3274 = vst.msk [vmem:[#allocation5 + $0x468] sm:$0xff] %vm342, %v3242
      %3275 = vst.msk [vmem:[#allocation5 + $0x490] sm:$0xff] %vm342, %v3243
      %3276 = vst.msk [vmem:[#allocation5 + $0x4b8] sm:$0xff] %vm342, %v3244
      %3277 = vst.msk [vmem:[#allocation5 + $0x4e0] sm:$0xff] %vm342, %v3245
      %v3278 = vld [vmem:[%s2925] sm:$0xff]
      %v3279 = vld [vmem:[%s2925 + $0x8] sm:$0xff]
      %v3280 = vld [vmem:[%s2925 + $0x18] sm:$0xff]
      %v3281 = vld [vmem:[%s2925 + $0x20] sm:$0xff]
      %v3282 = vld [vmem:[%s2925 + $0x30] sm:$0xff]
      %v3283 = vld [vmem:[%s2925 + $0x38] sm:$0xff]
      %v3284 = vld [vmem:[%s2925 + $0x48] sm:$0xff]
      %v3285 = vld [vmem:[%s2925 + $0x50] sm:$0xff]
      %v3286 = vld [vmem:[%s2925 + $0x60] sm:$0xff]
      %v3287 = vld [vmem:[%s2925 + $0x68] sm:$0xff]
      %v3288 = vld [vmem:[%s2925 + $0x78] sm:$0xff]
      %v3289 = vld [vmem:[%s2925 + $0x80] sm:$0xff]
      %v3290 = vld [vmem:[%s2925 + $0x90] sm:$0xff]
      %v3291 = vld [vmem:[%s2925 + $0x98] sm:$0xff]
      %v3292 = vld [vmem:[%s2925 + $0xa8] sm:$0xff]
      %v3293 = vld [vmem:[%s2925 + $0xb0] sm:$0xff]
      %v3294 = vld [vmem:[%s2925 + $0xc0] sm:$0xff]
      %v3295 = vld [vmem:[%s2925 + $0xc8] sm:$0xff]
      %v3296 = vld [vmem:[%s2925 + $0xd8] sm:$0xff]
      %v3297 = vld [vmem:[%s2925 + $0xe0] sm:$0xff]
      %v3298 = vld [vmem:[%s2925 + $0xf0] sm:$0xff]
      %v3299 = vld [vmem:[%s2925 + $0xf8] sm:$0xff]
      %v3300 = vld [vmem:[%s2925 + $0x108] sm:$0xff]
      %v3301 = vld [vmem:[%s2925 + $0x110] sm:$0xff]
      %v3302 = vld [vmem:[%s2925 + $0x120] sm:$0xff]
      %v3303 = vld [vmem:[%s2925 + $0x128] sm:$0xff]
      %v3304 = vld [vmem:[%s2925 + $0x138] sm:$0xff]
      %v3305 = vld [vmem:[%s2925 + $0x140] sm:$0xff]
      %v3306 = vld [vmem:[%s2925 + $0x150] sm:$0xff]
      %v3307 = vld [vmem:[%s2925 + $0x158] sm:$0xff]
      %v3308 = vld [vmem:[%s2925 + $0x168] sm:$0xff]
      %v3309 = vld [vmem:[%s2925 + $0x170] sm:$0xff]
      %3342 = vrot.lane.b32.xlu0 %v3278, 64
      %v3343 = vpop.permute.xlu0 %3342
      %3344 = vrot.lane.b32.xlu0 %v3279, 64
      %v3345 = vpop.permute.xlu0 %3344
      %3346 = vrot.lane.b32.xlu0 %v3280, 64
      %v3347 = vpop.permute.xlu0 %3346
      %3348 = vrot.lane.b32.xlu0 %v3281, 64
      %v3349 = vpop.permute.xlu0 %3348
      %3350 = vrot.lane.b32.xlu0 %v3282, 64
      %v3351 = vpop.permute.xlu0 %3350
      %3352 = vrot.lane.b32.xlu0 %v3283, 64
      %v3353 = vpop.permute.xlu0 %3352
      %3354 = vrot.lane.b32.xlu0 %v3284, 64
      %v3355 = vpop.permute.xlu0 %3354
      %3356 = vrot.lane.b32.xlu0 %v3285, 64
      %v3357 = vpop.permute.xlu0 %3356
      %3358 = vrot.lane.b32.xlu0 %v3286, 64
      %v3359 = vpop.permute.xlu0 %3358
      %3360 = vrot.lane.b32.xlu0 %v3287, 64
      %v3361 = vpop.permute.xlu0 %3360
      %3362 = vrot.lane.b32.xlu0 %v3288, 64
      %v3363 = vpop.permute.xlu0 %3362
      %3364 = vrot.lane.b32.xlu0 %v3289, 64
      %v3365 = vpop.permute.xlu0 %3364
      %3366 = vrot.lane.b32.xlu0 %v3290, 64
      %v3367 = vpop.permute.xlu0 %3366
      %3368 = vrot.lane.b32.xlu0 %v3291, 64
      %v3369 = vpop.permute.xlu0 %3368
      %3370 = vrot.lane.b32.xlu0 %v3292, 64
      %v3371 = vpop.permute.xlu0 %3370
      %3372 = vrot.lane.b32.xlu0 %v3293, 64
      %v3373 = vpop.permute.xlu0 %3372
      %3374 = vrot.lane.b32.xlu0 %v3294, 64
      %v3375 = vpop.permute.xlu0 %3374
      %3376 = vrot.lane.b32.xlu0 %v3295, 64
      %v3377 = vpop.permute.xlu0 %3376
      %3378 = vrot.lane.b32.xlu0 %v3296, 64
      %v3379 = vpop.permute.xlu0 %3378
      %3380 = vrot.lane.b32.xlu0 %v3297, 64
      %v3381 = vpop.permute.xlu0 %3380
      %3382 = vrot.lane.b32.xlu0 %v3298, 64
      %v3383 = vpop.permute.xlu0 %3382
      %3384 = vrot.lane.b32.xlu0 %v3299, 64
      %v3385 = vpop.permute.xlu0 %3384
      %3386 = vrot.lane.b32.xlu0 %v3300, 64
      %v3387 = vpop.permute.xlu0 %3386
      %3388 = vrot.lane.b32.xlu0 %v3301, 64
      %v3389 = vpop.permute.xlu0 %3388
      %3390 = vrot.lane.b32.xlu0 %v3302, 64
      %v3391 = vpop.permute.xlu0 %3390
      %3392 = vrot.lane.b32.xlu0 %v3303, 64
      %v3393 = vpop.permute.xlu0 %3392
      %3394 = vrot.lane.b32.xlu0 %v3304, 64
      %v3395 = vpop.permute.xlu0 %3394
      %3396 = vrot.lane.b32.xlu0 %v3305, 64
      %v3397 = vpop.permute.xlu0 %3396
      %3398 = vrot.lane.b32.xlu0 %v3306, 64
      %v3399 = vpop.permute.xlu0 %3398
      %3400 = vrot.lane.b32.xlu0 %v3307, 64
      %v3401 = vpop.permute.xlu0 %3400
      %3402 = vrot.lane.b32.xlu0 %v3308, 64
      %v3403 = vpop.permute.xlu0 %3402
      %3404 = vrot.lane.b32.xlu0 %v3309, 64
      %v3405 = vpop.permute.xlu0 %3404
      %3438 = vst.msk [vmem:[#allocation5 + $0x8] sm:$0xff] %vm830, %v3343
      %3439 = vst.msk [vmem:[#allocation5 + $0x30] sm:$0xff] %vm830, %v3345
      %3440 = vst.msk [vmem:[#allocation5 + $0x58] sm:$0xff] %vm830, %v3347
      %3441 = vst.msk [vmem:[#allocation5 + $0x80] sm:$0xff] %vm830, %v3349
      %3442 = vst.msk [vmem:[#allocation5 + $0xa8] sm:$0xff] %vm830, %v3351
      %3443 = vst.msk [vmem:[#allocation5 + $0xd0] sm:$0xff] %vm830, %v3353
      %3444 = vst.msk [vmem:[#allocation5 + $0xf8] sm:$0xff] %vm830, %v3355
      %3445 = vst.msk [vmem:[#allocation5 + $0x120] sm:$0xff] %vm830, %v3357
      %3446 = vst.msk [vmem:[#allocation5 + $0x148] sm:$0xff] %vm830, %v3359
      %3447 = vst.msk [vmem:[#allocation5 + $0x170] sm:$0xff] %vm830, %v3361
      %3448 = vst.msk [vmem:[#allocation5 + $0x198] sm:$0xff] %vm830, %v3363
      %3449 = vst.msk [vmem:[#allocation5 + $0x1c0] sm:$0xff] %vm830, %v3365
      %3450 = vst.msk [vmem:[#allocation5 + $0x1e8] sm:$0xff] %vm830, %v3367
      %3451 = vst.msk [vmem:[#allocation5 + $0x210] sm:$0xff] %vm830, %v3369
      %3452 = vst.msk [vmem:[#allocation5 + $0x238] sm:$0xff] %vm830, %v3371
      %3453 = vst.msk [vmem:[#allocation5 + $0x260] sm:$0xff] %vm830, %v3373
      %3454 = vst.msk [vmem:[#allocation5 + $0x288] sm:$0xff] %vm830, %v3375
      %3455 = vst.msk [vmem:[#allocation5 + $0x2b0] sm:$0xff] %vm830, %v3377
      %3456 = vst.msk [vmem:[#allocation5 + $0x2d8] sm:$0xff] %vm830, %v3379
      %3457 = vst.msk [vmem:[#allocation5 + $0x300] sm:$0xff] %vm830, %v3381
      %3458 = vst.msk [vmem:[#allocation5 + $0x328] sm:$0xff] %vm830, %v3383
      %3459 = vst.msk [vmem:[#allocation5 + $0x350] sm:$0xff] %vm830, %v3385
      %3460 = vst.msk [vmem:[#allocation5 + $0x378] sm:$0xff] %vm830, %v3387
      %3461 = vst.msk [vmem:[#allocation5 + $0x3a0] sm:$0xff] %vm830, %v3389
      %3462 = vst.msk [vmem:[#allocation5 + $0x3c8] sm:$0xff] %vm830, %v3391
      %3463 = vst.msk [vmem:[#allocation5 + $0x3f0] sm:$0xff] %vm830, %v3393
      %3464 = vst.msk [vmem:[#allocation5 + $0x418] sm:$0xff] %vm830, %v3395
      %3465 = vst.msk [vmem:[#allocation5 + $0x440] sm:$0xff] %vm830, %v3397
      %3466 = vst.msk [vmem:[#allocation5 + $0x468] sm:$0xff] %vm830, %v3399
      %3467 = vst.msk [vmem:[#allocation5 + $0x490] sm:$0xff] %vm830, %v3401
      %3468 = vst.msk [vmem:[#allocation5 + $0x4b8] sm:$0xff] %vm830, %v3403
      %3469 = vst.msk [vmem:[#allocation5 + $0x4e0] sm:$0xff] %vm830, %v3405
      %v3470 = vld [vmem:[%s2925 + $0x1] sm:$0xff]
      %v3471 = vld [vmem:[%s2925 + $0x9] sm:$0xff]
      %v3472 = vld [vmem:[%s2925 + $0x19] sm:$0xff]
      %v3473 = vld [vmem:[%s2925 + $0x21] sm:$0xff]
      %v3474 = vld [vmem:[%s2925 + $0x31] sm:$0xff]
      %v3475 = vld [vmem:[%s2925 + $0x39] sm:$0xff]
      %v3476 = vld [vmem:[%s2925 + $0x49] sm:$0xff]
      %v3477 = vld [vmem:[%s2925 + $0x51] sm:$0xff]
      %v3478 = vld [vmem:[%s2925 + $0x61] sm:$0xff]
      %v3479 = vld [vmem:[%s2925 + $0x69] sm:$0xff]
      %v3480 = vld [vmem:[%s2925 + $0x79] sm:$0xff]
      %v3481 = vld [vmem:[%s2925 + $0x81] sm:$0xff]
      %v3482 = vld [vmem:[%s2925 + $0x91] sm:$0xff]
      %v3483 = vld [vmem:[%s2925 + $0x99] sm:$0xff]
      %v3484 = vld [vmem:[%s2925 + $0xa9] sm:$0xff]
      %v3485 = vld [vmem:[%s2925 + $0xb1] sm:$0xff]
      %v3486 = vld [vmem:[%s2925 + $0xc1] sm:$0xff]
      %v3487 = vld [vmem:[%s2925 + $0xc9] sm:$0xff]
      %v3488 = vld [vmem:[%s2925 + $0xd9] sm:$0xff]
      %v3489 = vld [vmem:[%s2925 + $0xe1] sm:$0xff]
      %v3490 = vld [vmem:[%s2925 + $0xf1] sm:$0xff]
      %v3491 = vld [vmem:[%s2925 + $0xf9] sm:$0xff]
      %v3492 = vld [vmem:[%s2925 + $0x109] sm:$0xff]
      %v3493 = vld [vmem:[%s2925 + $0x111] sm:$0xff]
      %v3494 = vld [vmem:[%s2925 + $0x121] sm:$0xff]
      %v3495 = vld [vmem:[%s2925 + $0x129] sm:$0xff]
      %v3496 = vld [vmem:[%s2925 + $0x139] sm:$0xff]
      %v3497 = vld [vmem:[%s2925 + $0x141] sm:$0xff]
      %v3498 = vld [vmem:[%s2925 + $0x151] sm:$0xff]
      %v3499 = vld [vmem:[%s2925 + $0x159] sm:$0xff]
      %v3500 = vld [vmem:[%s2925 + $0x169] sm:$0xff]
      %v3501 = vld [vmem:[%s2925 + $0x171] sm:$0xff]
      %3502 = vst.msk [vmem:[#allocation5 + $0x10] sm:$0xff] %vm342, %v3470
      %3503 = vst.msk [vmem:[#allocation5 + $0x38] sm:$0xff] %vm342, %v3471
      %3504 = vst.msk [vmem:[#allocation5 + $0x60] sm:$0xff] %vm342, %v3472
      %3505 = vst.msk [vmem:[#allocation5 + $0x88] sm:$0xff] %vm342, %v3473
      %3506 = vst.msk [vmem:[#allocation5 + $0xb0] sm:$0xff] %vm342, %v3474
      %3507 = vst.msk [vmem:[#allocation5 + $0xd8] sm:$0xff] %vm342, %v3475
      %3508 = vst.msk [vmem:[#allocation5 + $0x100] sm:$0xff] %vm342, %v3476
      %3509 = vst.msk [vmem:[#allocation5 + $0x128] sm:$0xff] %vm342, %v3477
      %3510 = vst.msk [vmem:[#allocation5 + $0x150] sm:$0xff] %vm342, %v3478
      %3511 = vst.msk [vmem:[#allocation5 + $0x178] sm:$0xff] %vm342, %v3479
      %3512 = vst.msk [vmem:[#allocation5 + $0x1a0] sm:$0xff] %vm342, %v3480
      %3513 = vst.msk [vmem:[#allocation5 + $0x1c8] sm:$0xff] %vm342, %v3481
      %3514 = vst.msk [vmem:[#allocation5 + $0x1f0] sm:$0xff] %vm342, %v3482
      %3515 = vst.msk [vmem:[#allocation5 + $0x218] sm:$0xff] %vm342, %v3483
      %3516 = vst.msk [vmem:[#allocation5 + $0x240] sm:$0xff] %vm342, %v3484
      %3517 = vst.msk [vmem:[#allocation5 + $0x268] sm:$0xff] %vm342, %v3485
      %3518 = vst.msk [vmem:[#allocation5 + $0x290] sm:$0xff] %vm342, %v3486
      %3519 = vst.msk [vmem:[#allocation5 + $0x2b8] sm:$0xff] %vm342, %v3487
      %3520 = vst.msk [vmem:[#allocation5 + $0x2e0] sm:$0xff] %vm342, %v3488
      %3521 = vst.msk [vmem:[#allocation5 + $0x308] sm:$0xff] %vm342, %v3489
      %3522 = vst.msk [vmem:[#allocation5 + $0x330] sm:$0xff] %vm342, %v3490
      %3523 = vst.msk [vmem:[#allocation5 + $0x358] sm:$0xff] %vm342, %v3491
      %3524 = vst.msk [vmem:[#allocation5 + $0x380] sm:$0xff] %vm342, %v3492
      %3525 = vst.msk [vmem:[#allocation5 + $0x3a8] sm:$0xff] %vm342, %v3493
      %3526 = vst.msk [vmem:[#allocation5 + $0x3d0] sm:$0xff] %vm342, %v3494
      %3527 = vst.msk [vmem:[#allocation5 + $0x3f8] sm:$0xff] %vm342, %v3495
      %3528 = vst.msk [vmem:[#allocation5 + $0x420] sm:$0xff] %vm342, %v3496
      %3529 = vst.msk [vmem:[#allocation5 + $0x448] sm:$0xff] %vm342, %v3497
      %3530 = vst.msk [vmem:[#allocation5 + $0x470] sm:$0xff] %vm342, %v3498
      %3531 = vst.msk [vmem:[#allocation5 + $0x498] sm:$0xff] %vm342, %v3499
      %3532 = vst.msk [vmem:[#allocation5 + $0x4c0] sm:$0xff] %vm342, %v3500
      %3533 = vst.msk [vmem:[#allocation5 + $0x4e8] sm:$0xff] %vm342, %v3501
      %v3534 = vld [vmem:[%s2925 + $0x2] sm:$0xff]
      %v3535 = vld [vmem:[%s2925 + $0xa] sm:$0xff]
      %v3536 = vld [vmem:[%s2925 + $0x1a] sm:$0xff]
      %v3537 = vld [vmem:[%s2925 + $0x22] sm:$0xff]
      %v3538 = vld [vmem:[%s2925 + $0x32] sm:$0xff]
      %v3539 = vld [vmem:[%s2925 + $0x3a] sm:$0xff]
      %v3540 = vld [vmem:[%s2925 + $0x4a] sm:$0xff]
      %v3541 = vld [vmem:[%s2925 + $0x52] sm:$0xff]
      %v3542 = vld [vmem:[%s2925 + $0x62] sm:$0xff]
      %v3543 = vld [vmem:[%s2925 + $0x6a] sm:$0xff]
      %v3544 = vld [vmem:[%s2925 + $0x7a] sm:$0xff]
      %v3545 = vld [vmem:[%s2925 + $0x82] sm:$0xff]
      %v3546 = vld [vmem:[%s2925 + $0x92] sm:$0xff]
      %v3547 = vld [vmem:[%s2925 + $0x9a] sm:$0xff]
      %v3548 = vld [vmem:[%s2925 + $0xaa] sm:$0xff]
      %v3549 = vld [vmem:[%s2925 + $0xb2] sm:$0xff]
      %v3550 = vld [vmem:[%s2925 + $0xc2] sm:$0xff]
      %v3551 = vld [vmem:[%s2925 + $0xca] sm:$0xff]
      %v3552 = vld [vmem:[%s2925 + $0xda] sm:$0xff]
      %v3553 = vld [vmem:[%s2925 + $0xe2] sm:$0xff]
      %v3554 = vld [vmem:[%s2925 + $0xf2] sm:$0xff]
      %v3555 = vld [vmem:[%s2925 + $0xfa] sm:$0xff]
      %v3556 = vld [vmem:[%s2925 + $0x10a] sm:$0xff]
      %v3557 = vld [vmem:[%s2925 + $0x112] sm:$0xff]
      %v3558 = vld [vmem:[%s2925 + $0x122] sm:$0xff]
      %v3559 = vld [vmem:[%s2925 + $0x12a] sm:$0xff]
      %v3560 = vld [vmem:[%s2925 + $0x13a] sm:$0xff]
      %v3561 = vld [vmem:[%s2925 + $0x142] sm:$0xff]
      %v3562 = vld [vmem:[%s2925 + $0x152] sm:$0xff]
      %v3563 = vld [vmem:[%s2925 + $0x15a] sm:$0xff]
      %v3564 = vld [vmem:[%s2925 + $0x16a] sm:$0xff]
      %v3565 = vld [vmem:[%s2925 + $0x172] sm:$0xff]
      %3598 = vrot.lane.b32.xlu0 %v3534, 64
      %v3599 = vpop.permute.xlu0 %3598
      %3600 = vrot.lane.b32.xlu0 %v3535, 64
      %v3601 = vpop.permute.xlu0 %3600
      %3602 = vrot.lane.b32.xlu0 %v3536, 64
      %v3603 = vpop.permute.xlu0 %3602
      %3604 = vrot.lane.b32.xlu0 %v3537, 64
      %v3605 = vpop.permute.xlu0 %3604
      %3606 = vrot.lane.b32.xlu0 %v3538, 64
      %v3607 = vpop.permute.xlu0 %3606
      %3608 = vrot.lane.b32.xlu0 %v3539, 64
      %v3609 = vpop.permute.xlu0 %3608
      %3610 = vrot.lane.b32.xlu0 %v3540, 64
      %v3611 = vpop.permute.xlu0 %3610
      %3612 = vrot.lane.b32.xlu0 %v3541, 64
      %v3613 = vpop.permute.xlu0 %3612
      %3614 = vrot.lane.b32.xlu0 %v3542, 64
      %v3615 = vpop.permute.xlu0 %3614
      %3616 = vrot.lane.b32.xlu0 %v3543, 64
      %v3617 = vpop.permute.xlu0 %3616
      %3618 = vrot.lane.b32.xlu0 %v3544, 64
      %v3619 = vpop.permute.xlu0 %3618
      %3620 = vrot.lane.b32.xlu0 %v3545, 64
      %v3621 = vpop.permute.xlu0 %3620
      %3622 = vrot.lane.b32.xlu0 %v3546, 64
      %v3623 = vpop.permute.xlu0 %3622
      %3624 = vrot.lane.b32.xlu0 %v3547, 64
      %v3625 = vpop.permute.xlu0 %3624
      %3626 = vrot.lane.b32.xlu0 %v3548, 64
      %v3627 = vpop.permute.xlu0 %3626
      %3628 = vrot.lane.b32.xlu0 %v3549, 64
      %v3629 = vpop.permute.xlu0 %3628
      %3630 = vrot.lane.b32.xlu0 %v3550, 64
      %v3631 = vpop.permute.xlu0 %3630
      %3632 = vrot.lane.b32.xlu0 %v3551, 64
      %v3633 = vpop.permute.xlu0 %3632
      %3634 = vrot.lane.b32.xlu0 %v3552, 64
      %v3635 = vpop.permute.xlu0 %3634
      %3636 = vrot.lane.b32.xlu0 %v3553, 64
      %v3637 = vpop.permute.xlu0 %3636
      %3638 = vrot.lane.b32.xlu0 %v3554, 64
      %v3639 = vpop.permute.xlu0 %3638
      %3640 = vrot.lane.b32.xlu0 %v3555, 64
      %v3641 = vpop.permute.xlu0 %3640
      %3642 = vrot.lane.b32.xlu0 %v3556, 64
      %v3643 = vpop.permute.xlu0 %3642
      %3644 = vrot.lane.b32.xlu0 %v3557, 64
      %v3645 = vpop.permute.xlu0 %3644
      %3646 = vrot.lane.b32.xlu0 %v3558, 64
      %v3647 = vpop.permute.xlu0 %3646
      %3648 = vrot.lane.b32.xlu0 %v3559, 64
      %v3649 = vpop.permute.xlu0 %3648
      %3650 = vrot.lane.b32.xlu0 %v3560, 64
      %v3651 = vpop.permute.xlu0 %3650
      %3652 = vrot.lane.b32.xlu0 %v3561, 64
      %v3653 = vpop.permute.xlu0 %3652
      %3654 = vrot.lane.b32.xlu0 %v3562, 64
      %v3655 = vpop.permute.xlu0 %3654
      %3656 = vrot.lane.b32.xlu0 %v3563, 64
      %v3657 = vpop.permute.xlu0 %3656
      %3658 = vrot.lane.b32.xlu0 %v3564, 64
      %v3659 = vpop.permute.xlu0 %3658
      %3660 = vrot.lane.b32.xlu0 %v3565, 64
      %v3661 = vpop.permute.xlu0 %3660
      %3694 = vst.msk [vmem:[#allocation5 + $0x10] sm:$0xff] %vm830, %v3599
      %3695 = vst.msk [vmem:[#allocation5 + $0x38] sm:$0xff] %vm830, %v3601
      %3696 = vst.msk [vmem:[#allocation5 + $0x60] sm:$0xff] %vm830, %v3603
      %3697 = vst.msk [vmem:[#allocation5 + $0x88] sm:$0xff] %vm830, %v3605
      %3698 = vst.msk [vmem:[#allocation5 + $0xb0] sm:$0xff] %vm830, %v3607
      %3699 = vst.msk [vmem:[#allocation5 + $0xd8] sm:$0xff] %vm830, %v3609
      %3700 = vst.msk [vmem:[#allocation5 + $0x100] sm:$0xff] %vm830, %v3611
      %3701 = vst.msk [vmem:[#allocation5 + $0x128] sm:$0xff] %vm830, %v3613
      %3702 = vst.msk [vmem:[#allocation5 + $0x150] sm:$0xff] %vm830, %v3615
      %3703 = vst.msk [vmem:[#allocation5 + $0x178] sm:$0xff] %vm830, %v3617
      %3704 = vst.msk [vmem:[#allocation5 + $0x1a0] sm:$0xff] %vm830, %v3619
      %3705 = vst.msk [vmem:[#allocation5 + $0x1c8] sm:$0xff] %vm830, %v3621
      %3706 = vst.msk [vmem:[#allocation5 + $0x1f0] sm:$0xff] %vm830, %v3623
      %3707 = vst.msk [vmem:[#allocation5 + $0x218] sm:$0xff] %vm830, %v3625
      %3708 = vst.msk [vmem:[#allocation5 + $0x240] sm:$0xff] %vm830, %v3627
      %3709 = vst.msk [vmem:[#allocation5 + $0x268] sm:$0xff] %vm830, %v3629
      %3710 = vst.msk [vmem:[#allocation5 + $0x290] sm:$0xff] %vm830, %v3631
      %3711 = vst.msk [vmem:[#allocation5 + $0x2b8] sm:$0xff] %vm830, %v3633
      %3712 = vst.msk [vmem:[#allocation5 + $0x2e0] sm:$0xff] %vm830, %v3635
      %3713 = vst.msk [vmem:[#allocation5 + $0x308] sm:$0xff] %vm830, %v3637
      %3714 = vst.msk [vmem:[#allocation5 + $0x330] sm:$0xff] %vm830, %v3639
      %3715 = vst.msk [vmem:[#allocation5 + $0x358] sm:$0xff] %vm830, %v3641
      %3716 = vst.msk [vmem:[#allocation5 + $0x380] sm:$0xff] %vm830, %v3643
      %3717 = vst.msk [vmem:[#allocation5 + $0x3a8] sm:$0xff] %vm830, %v3645
      %3718 = vst.msk [vmem:[#allocation5 + $0x3d0] sm:$0xff] %vm830, %v3647
      %3719 = vst.msk [vmem:[#allocation5 + $0x3f8] sm:$0xff] %vm830, %v3649
      %3720 = vst.msk [vmem:[#allocation5 + $0x420] sm:$0xff] %vm830, %v3651
      %3721 = vst.msk [vmem:[#allocation5 + $0x448] sm:$0xff] %vm830, %v3653
      %3722 = vst.msk [vmem:[#allocation5 + $0x470] sm:$0xff] %vm830, %v3655
      %3723 = vst.msk [vmem:[#allocation5 + $0x498] sm:$0xff] %vm830, %v3657
      %3724 = vst.msk [vmem:[#allocation5 + $0x4c0] sm:$0xff] %vm830, %v3659
      %3725 = vst.msk [vmem:[#allocation5 + $0x4e8] sm:$0xff] %vm830, %v3661
      %s3726 = scalar_lea.vmem [#allocation4], 48
      %v3727 = vld [vmem:[%s3726] sm:$0xff]
      %v3728 = vld [vmem:[%s3726 + $0x8] sm:$0xff]
      %v3729 = vld [vmem:[%s3726 + $0x18] sm:$0xff]
      %v3730 = vld [vmem:[%s3726 + $0x20] sm:$0xff]
      %v3731 = vld [vmem:[%s3726 + $0x30] sm:$0xff]
      %v3732 = vld [vmem:[%s3726 + $0x38] sm:$0xff]
      %v3733 = vld [vmem:[%s3726 + $0x48] sm:$0xff]
      %v3734 = vld [vmem:[%s3726 + $0x50] sm:$0xff]
      %v3735 = vld [vmem:[%s3726 + $0x60] sm:$0xff]
      %v3736 = vld [vmem:[%s3726 + $0x68] sm:$0xff]
      %v3737 = vld [vmem:[%s3726 + $0x78] sm:$0xff]
      %v3738 = vld [vmem:[%s3726 + $0x80] sm:$0xff]
      %v3739 = vld [vmem:[%s3726 + $0x90] sm:$0xff]
      %v3740 = vld [vmem:[%s3726 + $0x98] sm:$0xff]
      %v3741 = vld [vmem:[%s3726 + $0xa8] sm:$0xff]
      %v3742 = vld [vmem:[%s3726 + $0xb0] sm:$0xff]
      %v3743 = vld [vmem:[%s3726 + $0xc0] sm:$0xff]
      %v3744 = vld [vmem:[%s3726 + $0xc8] sm:$0xff]
      %v3745 = vld [vmem:[%s3726 + $0xd8] sm:$0xff]
      %v3746 = vld [vmem:[%s3726 + $0xe0] sm:$0xff]
      %v3747 = vld [vmem:[%s3726 + $0xf0] sm:$0xff]
      %v3748 = vld [vmem:[%s3726 + $0xf8] sm:$0xff]
      %v3749 = vld [vmem:[%s3726 + $0x108] sm:$0xff]
      %v3750 = vld [vmem:[%s3726 + $0x110] sm:$0xff]
      %v3751 = vld [vmem:[%s3726 + $0x120] sm:$0xff]
      %v3752 = vld [vmem:[%s3726 + $0x128] sm:$0xff]
      %v3753 = vld [vmem:[%s3726 + $0x138] sm:$0xff]
      %v3754 = vld [vmem:[%s3726 + $0x140] sm:$0xff]
      %v3755 = vld [vmem:[%s3726 + $0x150] sm:$0xff]
      %v3756 = vld [vmem:[%s3726 + $0x158] sm:$0xff]
      %v3757 = vld [vmem:[%s3726 + $0x168] sm:$0xff]
      %v3758 = vld [vmem:[%s3726 + $0x170] sm:$0xff]
      %3759 = vst.msk [vmem:[#allocation5 + $0x18] sm:$0xff] %vm342, %v3727
      %3760 = vst.msk [vmem:[#allocation5 + $0x40] sm:$0xff] %vm342, %v3728
      %3761 = vst.msk [vmem:[#allocation5 + $0x68] sm:$0xff] %vm342, %v3729
      %3762 = vst.msk [vmem:[#allocation5 + $0x90] sm:$0xff] %vm342, %v3730
      %3763 = vst.msk [vmem:[#allocation5 + $0xb8] sm:$0xff] %vm342, %v3731
      %3764 = vst.msk [vmem:[#allocation5 + $0xe0] sm:$0xff] %vm342, %v3732
      %3765 = vst.msk [vmem:[#allocation5 + $0x108] sm:$0xff] %vm342, %v3733
      %3766 = vst.msk [vmem:[#allocation5 + $0x130] sm:$0xff] %vm342, %v3734
      %3767 = vst.msk [vmem:[#allocation5 + $0x158] sm:$0xff] %vm342, %v3735
      %3768 = vst.msk [vmem:[#allocation5 + $0x180] sm:$0xff] %vm342, %v3736
      %3769 = vst.msk [vmem:[#allocation5 + $0x1a8] sm:$0xff] %vm342, %v3737
      %3770 = vst.msk [vmem:[#allocation5 + $0x1d0] sm:$0xff] %vm342, %v3738
      %3771 = vst.msk [vmem:[#allocation5 + $0x1f8] sm:$0xff] %vm342, %v3739
      %3772 = vst.msk [vmem:[#allocation5 + $0x220] sm:$0xff] %vm342, %v3740
      %3773 = vst.msk [vmem:[#allocation5 + $0x248] sm:$0xff] %vm342, %v3741
      %3774 = vst.msk [vmem:[#allocation5 + $0x270] sm:$0xff] %vm342, %v3742
      %3775 = vst.msk [vmem:[#allocation5 + $0x298] sm:$0xff] %vm342, %v3743
      %3776 = vst.msk [vmem:[#allocation5 + $0x2c0] sm:$0xff] %vm342, %v3744
      %3777 = vst.msk [vmem:[#allocation5 + $0x2e8] sm:$0xff] %vm342, %v3745
      %3778 = vst.msk [vmem:[#allocation5 + $0x310] sm:$0xff] %vm342, %v3746
      %3779 = vst.msk [vmem:[#allocation5 + $0x338] sm:$0xff] %vm342, %v3747
      %3780 = vst.msk [vmem:[#allocation5 + $0x360] sm:$0xff] %vm342, %v3748
      %3781 = vst.msk [vmem:[#allocation5 + $0x388] sm:$0xff] %vm342, %v3749
      %3782 = vst.msk [vmem:[#allocation5 + $0x3b0] sm:$0xff] %vm342, %v3750
      %3783 = vst.msk [vmem:[#allocation5 + $0x3d8] sm:$0xff] %vm342, %v3751
      %3784 = vst.msk [vmem:[#allocation5 + $0x400] sm:$0xff] %vm342, %v3752
      %3785 = vst.msk [vmem:[#allocation5 + $0x428] sm:$0xff] %vm342, %v3753
      %3786 = vst.msk [vmem:[#allocation5 + $0x450] sm:$0xff] %vm342, %v3754
      %3787 = vst.msk [vmem:[#allocation5 + $0x478] sm:$0xff] %vm342, %v3755
      %3788 = vst.msk [vmem:[#allocation5 + $0x4a0] sm:$0xff] %vm342, %v3756
      %3789 = vst.msk [vmem:[#allocation5 + $0x4c8] sm:$0xff] %vm342, %v3757
      %3790 = vst.msk [vmem:[#allocation5 + $0x4f0] sm:$0xff] %vm342, %v3758
      %v3791 = vld [vmem:[%s3726 + $0x1] sm:$0xff]
      %v3792 = vld [vmem:[%s3726 + $0x9] sm:$0xff]
      %v3793 = vld [vmem:[%s3726 + $0x19] sm:$0xff]
      %v3794 = vld [vmem:[%s3726 + $0x21] sm:$0xff]
      %v3795 = vld [vmem:[%s3726 + $0x31] sm:$0xff]
      %v3796 = vld [vmem:[%s3726 + $0x39] sm:$0xff]
      %v3797 = vld [vmem:[%s3726 + $0x49] sm:$0xff]
      %v3798 = vld [vmem:[%s3726 + $0x51] sm:$0xff]
      %v3799 = vld [vmem:[%s3726 + $0x61] sm:$0xff]
      %v3800 = vld [vmem:[%s3726 + $0x69] sm:$0xff]
      %v3801 = vld [vmem:[%s3726 + $0x79] sm:$0xff]
      %v3802 = vld [vmem:[%s3726 + $0x81] sm:$0xff]
      %v3803 = vld [vmem:[%s3726 + $0x91] sm:$0xff]
      %v3804 = vld [vmem:[%s3726 + $0x99] sm:$0xff]
      %v3805 = vld [vmem:[%s3726 + $0xa9] sm:$0xff]
      %v3806 = vld [vmem:[%s3726 + $0xb1] sm:$0xff]
      %v3807 = vld [vmem:[%s3726 + $0xc1] sm:$0xff]
      %v3808 = vld [vmem:[%s3726 + $0xc9] sm:$0xff]
      %v3809 = vld [vmem:[%s3726 + $0xd9] sm:$0xff]
      %v3810 = vld [vmem:[%s3726 + $0xe1] sm:$0xff]
      %v3811 = vld [vmem:[%s3726 + $0xf1] sm:$0xff]
      %v3812 = vld [vmem:[%s3726 + $0xf9] sm:$0xff]
      %v3813 = vld [vmem:[%s3726 + $0x109] sm:$0xff]
      %v3814 = vld [vmem:[%s3726 + $0x111] sm:$0xff]
      %v3815 = vld [vmem:[%s3726 + $0x121] sm:$0xff]
      %v3816 = vld [vmem:[%s3726 + $0x129] sm:$0xff]
      %v3817 = vld [vmem:[%s3726 + $0x139] sm:$0xff]
      %v3818 = vld [vmem:[%s3726 + $0x141] sm:$0xff]
      %v3819 = vld [vmem:[%s3726 + $0x151] sm:$0xff]
      %v3820 = vld [vmem:[%s3726 + $0x159] sm:$0xff]
      %v3821 = vld [vmem:[%s3726 + $0x169] sm:$0xff]
      %v3822 = vld [vmem:[%s3726 + $0x171] sm:$0xff]
      %3855 = vrot.lane.b32.xlu0 %v3791, 64
      %v3856 = vpop.permute.xlu0 %3855
      %3857 = vrot.lane.b32.xlu0 %v3792, 64
      %v3858 = vpop.permute.xlu0 %3857
      %3859 = vrot.lane.b32.xlu0 %v3793, 64
      %v3860 = vpop.permute.xlu0 %3859
      %3861 = vrot.lane.b32.xlu0 %v3794, 64
      %v3862 = vpop.permute.xlu0 %3861
      %3863 = vrot.lane.b32.xlu0 %v3795, 64
      %v3864 = vpop.permute.xlu0 %3863
      %3865 = vrot.lane.b32.xlu0 %v3796, 64
      %v3866 = vpop.permute.xlu0 %3865
      %3867 = vrot.lane.b32.xlu0 %v3797, 64
      %v3868 = vpop.permute.xlu0 %3867
      %3869 = vrot.lane.b32.xlu0 %v3798, 64
      %v3870 = vpop.permute.xlu0 %3869
      %3871 = vrot.lane.b32.xlu0 %v3799, 64
      %v3872 = vpop.permute.xlu0 %3871
      %3873 = vrot.lane.b32.xlu0 %v3800, 64
      %v3874 = vpop.permute.xlu0 %3873
      %3875 = vrot.lane.b32.xlu0 %v3801, 64
      %v3876 = vpop.permute.xlu0 %3875
      %3877 = vrot.lane.b32.xlu0 %v3802, 64
      %v3878 = vpop.permute.xlu0 %3877
      %3879 = vrot.lane.b32.xlu0 %v3803, 64
      %v3880 = vpop.permute.xlu0 %3879
      %3881 = vrot.lane.b32.xlu0 %v3804, 64
      %v3882 = vpop.permute.xlu0 %3881
      %3883 = vrot.lane.b32.xlu0 %v3805, 64
      %v3884 = vpop.permute.xlu0 %3883
      %3885 = vrot.lane.b32.xlu0 %v3806, 64
      %v3886 = vpop.permute.xlu0 %3885
      %3887 = vrot.lane.b32.xlu0 %v3807, 64
      %v3888 = vpop.permute.xlu0 %3887
      %3889 = vrot.lane.b32.xlu0 %v3808, 64
      %v3890 = vpop.permute.xlu0 %3889
      %3891 = vrot.lane.b32.xlu0 %v3809, 64
      %v3892 = vpop.permute.xlu0 %3891
      %3893 = vrot.lane.b32.xlu0 %v3810, 64
      %v3894 = vpop.permute.xlu0 %3893
      %3895 = vrot.lane.b32.xlu0 %v3811, 64
      %v3896 = vpop.permute.xlu0 %3895
      %3897 = vrot.lane.b32.xlu0 %v3812, 64
      %v3898 = vpop.permute.xlu0 %3897
      %3899 = vrot.lane.b32.xlu0 %v3813, 64
      %v3900 = vpop.permute.xlu0 %3899
      %3901 = vrot.lane.b32.xlu0 %v3814, 64
      %v3902 = vpop.permute.xlu0 %3901
      %3903 = vrot.lane.b32.xlu0 %v3815, 64
      %v3904 = vpop.permute.xlu0 %3903
      %3905 = vrot.lane.b32.xlu0 %v3816, 64
      %v3906 = vpop.permute.xlu0 %3905
      %3907 = vrot.lane.b32.xlu0 %v3817, 64
      %v3908 = vpop.permute.xlu0 %3907
      %3909 = vrot.lane.b32.xlu0 %v3818, 64
      %v3910 = vpop.permute.xlu0 %3909
      %3911 = vrot.lane.b32.xlu0 %v3819, 64
      %v3912 = vpop.permute.xlu0 %3911
      %3913 = vrot.lane.b32.xlu0 %v3820, 64
      %v3914 = vpop.permute.xlu0 %3913
      %3915 = vrot.lane.b32.xlu0 %v3821, 64
      %v3916 = vpop.permute.xlu0 %3915
      %3917 = vrot.lane.b32.xlu0 %v3822, 64
      %v3918 = vpop.permute.xlu0 %3917
      %3951 = vst.msk [vmem:[#allocation5 + $0x18] sm:$0xff] %vm830, %v3856
      %3952 = vst.msk [vmem:[#allocation5 + $0x40] sm:$0xff] %vm830, %v3858
      %3953 = vst.msk [vmem:[#allocation5 + $0x68] sm:$0xff] %vm830, %v3860
      %3954 = vst.msk [vmem:[#allocation5 + $0x90] sm:$0xff] %vm830, %v3862
      %3955 = vst.msk [vmem:[#allocation5 + $0xb8] sm:$0xff] %vm830, %v3864
      %3956 = vst.msk [vmem:[#allocation5 + $0xe0] sm:$0xff] %vm830, %v3866
      %3957 = vst.msk [vmem:[#allocation5 + $0x108] sm:$0xff] %vm830, %v3868
      %3958 = vst.msk [vmem:[#allocation5 + $0x130] sm:$0xff] %vm830, %v3870
      %3959 = vst.msk [vmem:[#allocation5 + $0x158] sm:$0xff] %vm830, %v3872
      %3960 = vst.msk [vmem:[#allocation5 + $0x180] sm:$0xff] %vm830, %v3874
      %3961 = vst.msk [vmem:[#allocation5 + $0x1a8] sm:$0xff] %vm830, %v3876
      %3962 = vst.msk [vmem:[#allocation5 + $0x1d0] sm:$0xff] %vm830, %v3878
      %3963 = vst.msk [vmem:[#allocation5 + $0x1f8] sm:$0xff] %vm830, %v3880
      %3964 = vst.msk [vmem:[#allocation5 + $0x220] sm:$0xff] %vm830, %v3882
      %3965 = vst.msk [vmem:[#allocation5 + $0x248] sm:$0xff] %vm830, %v3884
      %3966 = vst.msk [vmem:[#allocation5 + $0x270] sm:$0xff] %vm830, %v3886
      %3967 = vst.msk [vmem:[#allocation5 + $0x298] sm:$0xff] %vm830, %v3888
      %3968 = vst.msk [vmem:[#allocation5 + $0x2c0] sm:$0xff] %vm830, %v3890
      %3969 = vst.msk [vmem:[#allocation5 + $0x2e8] sm:$0xff] %vm830, %v3892
      %3970 = vst.msk [vmem:[#allocation5 + $0x310] sm:$0xff] %vm830, %v3894
      %3971 = vst.msk [vmem:[#allocation5 + $0x338] sm:$0xff] %vm830, %v3896
      %3972 = vst.msk [vmem:[#allocation5 + $0x360] sm:$0xff] %vm830, %v3898
      %3973 = vst.msk [vmem:[#allocation5 + $0x388] sm:$0xff] %vm830, %v3900
      %3974 = vst.msk [vmem:[#allocation5 + $0x3b0] sm:$0xff] %vm830, %v3902
      %3975 = vst.msk [vmem:[#allocation5 + $0x3d8] sm:$0xff] %vm830, %v3904
      %3976 = vst.msk [vmem:[#allocation5 + $0x400] sm:$0xff] %vm830, %v3906
      %3977 = vst.msk [vmem:[#allocation5 + $0x428] sm:$0xff] %vm830, %v3908
      %3978 = vst.msk [vmem:[#allocation5 + $0x450] sm:$0xff] %vm830, %v3910
      %3979 = vst.msk [vmem:[#allocation5 + $0x478] sm:$0xff] %vm830, %v3912
      %3980 = vst.msk [vmem:[#allocation5 + $0x4a0] sm:$0xff] %vm830, %v3914
      %3981 = vst.msk [vmem:[#allocation5 + $0x4c8] sm:$0xff] %vm830, %v3916
      %3982 = vst.msk [vmem:[#allocation5 + $0x4f0] sm:$0xff] %vm830, %v3918
      %v3983 = vld [vmem:[%s3726 + $0x2] sm:$0xff]
      %v3984 = vld [vmem:[%s3726 + $0xa] sm:$0xff]
      %v3985 = vld [vmem:[%s3726 + $0x1a] sm:$0xff]
      %v3986 = vld [vmem:[%s3726 + $0x22] sm:$0xff]
      %v3987 = vld [vmem:[%s3726 + $0x32] sm:$0xff]
      %v3988 = vld [vmem:[%s3726 + $0x3a] sm:$0xff]
      %v3989 = vld [vmem:[%s3726 + $0x4a] sm:$0xff]
      %v3990 = vld [vmem:[%s3726 + $0x52] sm:$0xff]
      %v3991 = vld [vmem:[%s3726 + $0x62] sm:$0xff]
      %v3992 = vld [vmem:[%s3726 + $0x6a] sm:$0xff]
      %v3993 = vld [vmem:[%s3726 + $0x7a] sm:$0xff]
      %v3994 = vld [vmem:[%s3726 + $0x82] sm:$0xff]
      %v3995 = vld [vmem:[%s3726 + $0x92] sm:$0xff]
      %v3996 = vld [vmem:[%s3726 + $0x9a] sm:$0xff]
      %v3997 = vld [vmem:[%s3726 + $0xaa] sm:$0xff]
      %v3998 = vld [vmem:[%s3726 + $0xb2] sm:$0xff]
      %v3999 = vld [vmem:[%s3726 + $0xc2] sm:$0xff]
      %v4000 = vld [vmem:[%s3726 + $0xca] sm:$0xff]
      %v4001 = vld [vmem:[%s3726 + $0xda] sm:$0xff]
      %v4002 = vld [vmem:[%s3726 + $0xe2] sm:$0xff]
      %v4003 = vld [vmem:[%s3726 + $0xf2] sm:$0xff]
      %v4004 = vld [vmem:[%s3726 + $0xfa] sm:$0xff]
      %v4005 = vld [vmem:[%s3726 + $0x10a] sm:$0xff]
      %v4006 = vld [vmem:[%s3726 + $0x112] sm:$0xff]
      %v4007 = vld [vmem:[%s3726 + $0x122] sm:$0xff]
      %v4008 = vld [vmem:[%s3726 + $0x12a] sm:$0xff]
      %v4009 = vld [vmem:[%s3726 + $0x13a] sm:$0xff]
      %v4010 = vld [vmem:[%s3726 + $0x142] sm:$0xff]
      %v4011 = vld [vmem:[%s3726 + $0x152] sm:$0xff]
      %v4012 = vld [vmem:[%s3726 + $0x15a] sm:$0xff]
      %v4013 = vld [vmem:[%s3726 + $0x16a] sm:$0xff]
      %v4014 = vld [vmem:[%s3726 + $0x172] sm:$0xff]
      %4015 = vst.msk [vmem:[#allocation5 + $0x20] sm:$0xff] %vm342, %v3983
      %4016 = vst.msk [vmem:[#allocation5 + $0x48] sm:$0xff] %vm342, %v3984
      %4017 = vst.msk [vmem:[#allocation5 + $0x70] sm:$0xff] %vm342, %v3985
      %4018 = vst.msk [vmem:[#allocation5 + $0x98] sm:$0xff] %vm342, %v3986
      %4019 = vst.msk [vmem:[#allocation5 + $0xc0] sm:$0xff] %vm342, %v3987
      %4020 = vst.msk [vmem:[#allocation5 + $0xe8] sm:$0xff] %vm342, %v3988
      %4021 = vst.msk [vmem:[#allocation5 + $0x110] sm:$0xff] %vm342, %v3989
      %4022 = vst.msk [vmem:[#allocation5 + $0x138] sm:$0xff] %vm342, %v3990
      %4023 = vst.msk [vmem:[#allocation5 + $0x160] sm:$0xff] %vm342, %v3991
      %4024 = vst.msk [vmem:[#allocation5 + $0x188] sm:$0xff] %vm342, %v3992
      %4025 = vst.msk [vmem:[#allocation5 + $0x1b0] sm:$0xff] %vm342, %v3993
      %4026 = vst.msk [vmem:[#allocation5 + $0x1d8] sm:$0xff] %vm342, %v3994
      %4027 = vst.msk [vmem:[#allocation5 + $0x200] sm:$0xff] %vm342, %v3995
      %4028 = vst.msk [vmem:[#allocation5 + $0x228] sm:$0xff] %vm342, %v3996
      %4029 = vst.msk [vmem:[#allocation5 + $0x250] sm:$0xff] %vm342, %v3997
      %4030 = vst.msk [vmem:[#allocation5 + $0x278] sm:$0xff] %vm342, %v3998
      %4031 = vst.msk [vmem:[#allocation5 + $0x2a0] sm:$0xff] %vm342, %v3999
      %4032 = vst.msk [vmem:[#allocation5 + $0x2c8] sm:$0xff] %vm342, %v4000
      %4033 = vst.msk [vmem:[#allocation5 + $0x2f0] sm:$0xff] %vm342, %v4001
      %4034 = vst.msk [vmem:[#allocation5 + $0x318] sm:$0xff] %vm342, %v4002
      %4035 = vst.msk [vmem:[#allocation5 + $0x340] sm:$0xff] %vm342, %v4003
      %4036 = vst.msk [vmem:[#allocation5 + $0x368] sm:$0xff] %vm342, %v4004
      %4037 = vst.msk [vmem:[#allocation5 + $0x390] sm:$0xff] %vm342, %v4005
      %4038 = vst.msk [vmem:[#allocation5 + $0x3b8] sm:$0xff] %vm342, %v4006
      %4039 = vst.msk [vmem:[#allocation5 + $0x3e0] sm:$0xff] %vm342, %v4007
      %4040 = vst.msk [vmem:[#allocation5 + $0x408] sm:$0xff] %vm342, %v4008
      %4041 = vst.msk [vmem:[#allocation5 + $0x430] sm:$0xff] %vm342, %v4009
      %4042 = vst.msk [vmem:[#allocation5 + $0x458] sm:$0xff] %vm342, %v4010
      %4043 = vst.msk [vmem:[#allocation5 + $0x480] sm:$0xff] %vm342, %v4011
      %4044 = vst.msk [vmem:[#allocation5 + $0x4a8] sm:$0xff] %vm342, %v4012
      %4045 = vst.msk [vmem:[#allocation5 + $0x4d0] sm:$0xff] %vm342, %v4013
      %4046 = vst.msk [vmem:[#allocation5 + $0x4f8] sm:$0xff] %vm342, %v4014
      %v4047 = vld [vmem:[#allocation5] sm:$0xff]
      %v4048 = vld [vmem:[#allocation5 + $0x8] sm:$0xff]
      %v4049 = vld [vmem:[#allocation5 + $0x10] sm:$0xff]
      %v4050 = vld [vmem:[#allocation5 + $0x18] sm:$0xff]
      %v4051 = vld [vmem:[#allocation5 + $0x20] sm:$0xff]
      %v4052 = vld [vmem:[#allocation5 + $0x28] sm:$0xff]
      %v4053 = vld [vmem:[#allocation5 + $0x30] sm:$0xff]
      %v4054 = vld [vmem:[#allocation5 + $0x38] sm:$0xff]
      %v4055 = vld [vmem:[#allocation5 + $0x40] sm:$0xff]
      %v4056 = vld [vmem:[#allocation5 + $0x48] sm:$0xff]
      %v4057 = vld [vmem:[#allocation5 + $0x50] sm:$0xff]
      %v4058 = vld [vmem:[#allocation5 + $0x58] sm:$0xff]
      %v4059 = vld [vmem:[#allocation5 + $0x60] sm:$0xff]
      %v4060 = vld [vmem:[#allocation5 + $0x68] sm:$0xff]
      %v4061 = vld [vmem:[#allocation5 + $0x70] sm:$0xff]
      %v4062 = vld [vmem:[#allocation5 + $0x78] sm:$0xff]
      %v4063 = vld [vmem:[#allocation5 + $0x80] sm:$0xff]
      %v4064 = vld [vmem:[#allocation5 + $0x88] sm:$0xff]
      %v4065 = vld [vmem:[#allocation5 + $0x90] sm:$0xff]
      %v4066 = vld [vmem:[#allocation5 + $0x98] sm:$0xff]
      %v4067 = vld [vmem:[#allocation5 + $0xa0] sm:$0xff]
      %v4068 = vld [vmem:[#allocation5 + $0xa8] sm:$0xff]
      %v4069 = vld [vmem:[#allocation5 + $0xb0] sm:$0xff]
      %v4070 = vld [vmem:[#allocation5 + $0xb8] sm:$0xff]
      %v4071 = vld [vmem:[#allocation5 + $0xc0] sm:$0xff]
      %v4072 = vld [vmem:[#allocation5 + $0xc8] sm:$0xff]
      %v4073 = vld [vmem:[#allocation5 + $0xd0] sm:$0xff]
      %v4074 = vld [vmem:[#allocation5 + $0xd8] sm:$0xff]
      %v4075 = vld [vmem:[#allocation5 + $0xe0] sm:$0xff]
      %v4076 = vld [vmem:[#allocation5 + $0xe8] sm:$0xff]
      %v4077 = vld [vmem:[#allocation5 + $0xf0] sm:$0xff]
      %v4078 = vld [vmem:[#allocation5 + $0xf8] sm:$0xff]
      %v4079 = vld [vmem:[#allocation5 + $0x100] sm:$0xff]
      %v4080 = vld [vmem:[#allocation5 + $0x108] sm:$0xff]
      %v4081 = vld [vmem:[#allocation5 + $0x110] sm:$0xff]
      %v4082 = vld [vmem:[#allocation5 + $0x118] sm:$0xff]
      %v4083 = vld [vmem:[#allocation5 + $0x120] sm:$0xff]
      %v4084 = vld [vmem:[#allocation5 + $0x128] sm:$0xff]
      %v4085 = vld [vmem:[#allocation5 + $0x130] sm:$0xff]
      %v4086 = vld [vmem:[#allocation5 + $0x138] sm:$0xff]
      %v4087 = vld [vmem:[#allocation5 + $0x140] sm:$0xff]
      %v4088 = vld [vmem:[#allocation5 + $0x148] sm:$0xff]
      %v4089 = vld [vmem:[#allocation5 + $0x150] sm:$0xff]
      %v4090 = vld [vmem:[#allocation5 + $0x158] sm:$0xff]
      %v4091 = vld [vmem:[#allocation5 + $0x160] sm:$0xff]
      %v4092 = vld [vmem:[#allocation5 + $0x168] sm:$0xff]
      %v4093 = vld [vmem:[#allocation5 + $0x170] sm:$0xff]
      %v4094 = vld [vmem:[#allocation5 + $0x178] sm:$0xff]
      %v4095 = vld [vmem:[#allocation5 + $0x180] sm:$0xff]
      %v4096 = vld [vmem:[#allocation5 + $0x188] sm:$0xff]
      %v4097 = vld [vmem:[#allocation5 + $0x190] sm:$0xff]
      %v4098 = vld [vmem:[#allocation5 + $0x198] sm:$0xff]
      %v4099 = vld [vmem:[#allocation5 + $0x1a0] sm:$0xff]
      %v4100 = vld [vmem:[#allocation5 + $0x1a8] sm:$0xff]
      %v4101 = vld [vmem:[#allocation5 + $0x1b0] sm:$0xff]
      %v4102 = vld [vmem:[#allocation5 + $0x1b8] sm:$0xff]
      %v4103 = vld [vmem:[#allocation5 + $0x1c0] sm:$0xff]
      %v4104 = vld [vmem:[#allocation5 + $0x1c8] sm:$0xff]
      %v4105 = vld [vmem:[#allocation5 + $0x1d0] sm:$0xff]
      %v4106 = vld [vmem:[#allocation5 + $0x1d8] sm:$0xff]
      %v4107 = vld [vmem:[#allocation5 + $0x1e0] sm:$0xff]
      %v4108 = vld [vmem:[#allocation5 + $0x1e8] sm:$0xff]
      %v4109 = vld [vmem:[#allocation5 + $0x1f0] sm:$0xff]
      %v4110 = vld [vmem:[#allocation5 + $0x1f8] sm:$0xff]
      %v4111 = vld [vmem:[#allocation5 + $0x200] sm:$0xff]
      %v4112 = vld [vmem:[#allocation5 + $0x208] sm:$0xff]
      %v4113 = vld [vmem:[#allocation5 + $0x210] sm:$0xff]
      %v4114 = vld [vmem:[#allocation5 + $0x218] sm:$0xff]
      %v4115 = vld [vmem:[#allocation5 + $0x220] sm:$0xff]
      %v4116 = vld [vmem:[#allocation5 + $0x228] sm:$0xff]
      %v4117 = vld [vmem:[#allocation5 + $0x230] sm:$0xff]
      %v4118 = vld [vmem:[#allocation5 + $0x238] sm:$0xff]
      %v4119 = vld [vmem:[#allocation5 + $0x240] sm:$0xff]
      %v4120 = vld [vmem:[#allocation5 + $0x248] sm:$0xff]
      %v4121 = vld [vmem:[#allocation5 + $0x250] sm:$0xff]
      %v4122 = vld [vmem:[#allocation5 + $0x258] sm:$0xff]
      %v4123 = vld [vmem:[#allocation5 + $0x260] sm:$0xff]
      %v4124 = vld [vmem:[#allocation5 + $0x268] sm:$0xff]
      %v4125 = vld [vmem:[#allocation5 + $0x270] sm:$0xff]
      %v4126 = vld [vmem:[#allocation5 + $0x278] sm:$0xff]
      %v4127 = vld [vmem:[#allocation5 + $0x280] sm:$0xff]
      %v4128 = vld [vmem:[#allocation5 + $0x288] sm:$0xff]
      %v4129 = vld [vmem:[#allocation5 + $0x290] sm:$0xff]
      %v4130 = vld [vmem:[#allocation5 + $0x298] sm:$0xff]
      %v4131 = vld [vmem:[#allocation5 + $0x2a0] sm:$0xff]
      %v4132 = vld [vmem:[#allocation5 + $0x2a8] sm:$0xff]
      %v4133 = vld [vmem:[#allocation5 + $0x2b0] sm:$0xff]
      %v4134 = vld [vmem:[#allocation5 + $0x2b8] sm:$0xff]
      %v4135 = vld [vmem:[#allocation5 + $0x2c0] sm:$0xff]
      %v4136 = vld [vmem:[#allocation5 + $0x2c8] sm:$0xff]
      %v4137 = vld [vmem:[#allocation5 + $0x2d0] sm:$0xff]
      %v4138 = vld [vmem:[#allocation5 + $0x2d8] sm:$0xff]
      %v4139 = vld [vmem:[#allocation5 + $0x2e0] sm:$0xff]
      %v4140 = vld [vmem:[#allocation5 + $0x2e8] sm:$0xff]
      %v4141 = vld [vmem:[#allocation5 + $0x2f0] sm:$0xff]
      %v4142 = vld [vmem:[#allocation5 + $0x2f8] sm:$0xff]
      %v4143 = vld [vmem:[#allocation5 + $0x300] sm:$0xff]
      %v4144 = vld [vmem:[#allocation5 + $0x308] sm:$0xff]
      %v4145 = vld [vmem:[#allocation5 + $0x310] sm:$0xff]
      %v4146 = vld [vmem:[#allocation5 + $0x318] sm:$0xff]
      %v4147 = vld [vmem:[#allocation5 + $0x320] sm:$0xff]
      %v4148 = vld [vmem:[#allocation5 + $0x328] sm:$0xff]
      %v4149 = vld [vmem:[#allocation5 + $0x330] sm:$0xff]
      %v4150 = vld [vmem:[#allocation5 + $0x338] sm:$0xff]
      %v4151 = vld [vmem:[#allocation5 + $0x340] sm:$0xff]
      %v4152 = vld [vmem:[#allocation5 + $0x348] sm:$0xff]
      %v4153 = vld [vmem:[#allocation5 + $0x350] sm:$0xff]
      %v4154 = vld [vmem:[#allocation5 + $0x358] sm:$0xff]
      %v4155 = vld [vmem:[#allocation5 + $0x360] sm:$0xff]
      %v4156 = vld [vmem:[#allocation5 + $0x368] sm:$0xff]
      %v4157 = vld [vmem:[#allocation5 + $0x370] sm:$0xff]
      %v4158 = vld [vmem:[#allocation5 + $0x378] sm:$0xff]
      %v4159 = vld [vmem:[#allocation5 + $0x380] sm:$0xff]
      %v4160 = vld [vmem:[#allocation5 + $0x388] sm:$0xff]
      %v4161 = vld [vmem:[#allocation5 + $0x390] sm:$0xff]
      %v4162 = vld [vmem:[#allocation5 + $0x398] sm:$0xff]
      %v4163 = vld [vmem:[#allocation5 + $0x3a0] sm:$0xff]
      %v4164 = vld [vmem:[#allocation5 + $0x3a8] sm:$0xff]
      %v4165 = vld [vmem:[#allocation5 + $0x3b0] sm:$0xff]
      %v4166 = vld [vmem:[#allocation5 + $0x3b8] sm:$0xff]
      %v4167 = vld [vmem:[#allocation5 + $0x3c0] sm:$0xff]
      %v4168 = vld [vmem:[#allocation5 + $0x3c8] sm:$0xff]
      %v4169 = vld [vmem:[#allocation5 + $0x3d0] sm:$0xff]
      %v4170 = vld [vmem:[#allocation5 + $0x3d8] sm:$0xff]
      %v4171 = vld [vmem:[#allocation5 + $0x3e0] sm:$0xff]
      %v4172 = vld [vmem:[#allocation5 + $0x3e8] sm:$0xff]
      %v4173 = vld [vmem:[#allocation5 + $0x3f0] sm:$0xff]
      %v4174 = vld [vmem:[#allocation5 + $0x3f8] sm:$0xff]
      %v4175 = vld [vmem:[#allocation5 + $0x400] sm:$0xff]
      %v4176 = vld [vmem:[#allocation5 + $0x408] sm:$0xff]
      %v4177 = vld [vmem:[#allocation5 + $0x410] sm:$0xff]
      %v4178 = vld [vmem:[#allocation5 + $0x418] sm:$0xff]
      %v4179 = vld [vmem:[#allocation5 + $0x420] sm:$0xff]
      %v4180 = vld [vmem:[#allocation5 + $0x428] sm:$0xff]
      %v4181 = vld [vmem:[#allocation5 + $0x430] sm:$0xff]
      %v4182 = vld [vmem:[#allocation5 + $0x438] sm:$0xff]
      %v4183 = vld [vmem:[#allocation5 + $0x440] sm:$0xff]
      %v4184 = vld [vmem:[#allocation5 + $0x448] sm:$0xff]
      %v4185 = vld [vmem:[#allocation5 + $0x450] sm:$0xff]
      %v4186 = vld [vmem:[#allocation5 + $0x458] sm:$0xff]
      %v4187 = vld [vmem:[#allocation5 + $0x460] sm:$0xff]
      %v4188 = vld [vmem:[#allocation5 + $0x468] sm:$0xff]
      %v4189 = vld [vmem:[#allocation5 + $0x470] sm:$0xff]
      %v4190 = vld [vmem:[#allocation5 + $0x478] sm:$0xff]
      %v4191 = vld [vmem:[#allocation5 + $0x480] sm:$0xff]
      %v4192 = vld [vmem:[#allocation5 + $0x488] sm:$0xff]
      %v4193 = vld [vmem:[#allocation5 + $0x490] sm:$0xff]
      %v4194 = vld [vmem:[#allocation5 + $0x498] sm:$0xff]
      %v4195 = vld [vmem:[#allocation5 + $0x4a0] sm:$0xff]
      %v4196 = vld [vmem:[#allocation5 + $0x4a8] sm:$0xff]
      %v4197 = vld [vmem:[#allocation5 + $0x4b0] sm:$0xff]
      %v4198 = vld [vmem:[#allocation5 + $0x4b8] sm:$0xff]
      %v4199 = vld [vmem:[#allocation5 + $0x4c0] sm:$0xff]
      %v4200 = vld [vmem:[#allocation5 + $0x4c8] sm:$0xff]
      %v4201 = vld [vmem:[#allocation5 + $0x4d0] sm:$0xff]
      %v4202 = vld [vmem:[#allocation5 + $0x4d8] sm:$0xff]
      %v4203 = vld [vmem:[#allocation5 + $0x4e0] sm:$0xff]
      %v4204 = vld [vmem:[#allocation5 + $0x4e8] sm:$0xff]
      %v4205 = vld [vmem:[#allocation5 + $0x4f0] sm:$0xff]
      %v4206 = vld [vmem:[#allocation5 + $0x4f8] sm:$0xff]
      %v4207 = vld [vmem:[%s5] sm:$0xff]
      %v4208 = vld [vmem:[%s5 + $0x8] sm:$0xff]
      %v4209 = vld [vmem:[%s5 + $0x10] sm:$0xff]
      %v4210 = vld [vmem:[%s5 + $0x18] sm:$0xff]
      %v4211 = vld [vmem:[%s5 + $0x20] sm:$0xff]
      %v4212 = vld [vmem:[%s5 + $0x28] sm:$0xff]
      %v4213 = vld [vmem:[%s5 + $0x30] sm:$0xff]
      %v4214 = vld [vmem:[%s5 + $0x38] sm:$0xff]
      %v4215 = vld [vmem:[%s5 + $0x40] sm:$0xff]
      %v4216 = vld [vmem:[%s5 + $0x48] sm:$0xff]
      %v4217 = vld [vmem:[%s5 + $0x50] sm:$0xff]
      %v4218 = vld [vmem:[%s5 + $0x58] sm:$0xff]
      %v4219 = vld [vmem:[%s5 + $0x60] sm:$0xff]
      %v4220 = vld [vmem:[%s5 + $0x68] sm:$0xff]
      %v4221 = vld [vmem:[%s5 + $0x70] sm:$0xff]
      %v4222 = vld [vmem:[%s5 + $0x78] sm:$0xff]
      %v4223 = vld [vmem:[%s5 + $0x80] sm:$0xff]
      %v4224 = vld [vmem:[%s5 + $0x88] sm:$0xff]
      %v4225 = vld [vmem:[%s5 + $0x90] sm:$0xff]
      %v4226 = vld [vmem:[%s5 + $0x98] sm:$0xff]
      %v4227 = vld [vmem:[%s5 + $0xa0] sm:$0xff]
      %v4228 = vld [vmem:[%s5 + $0xa8] sm:$0xff]
      %v4229 = vld [vmem:[%s5 + $0xb0] sm:$0xff]
      %v4230 = vld [vmem:[%s5 + $0xb8] sm:$0xff]
      %v4231 = vld [vmem:[%s5 + $0xc0] sm:$0xff]
      %v4232 = vld [vmem:[%s5 + $0xc8] sm:$0xff]
      %v4233 = vld [vmem:[%s5 + $0xd0] sm:$0xff]
      %v4234 = vld [vmem:[%s5 + $0xd8] sm:$0xff]
      %v4235 = vld [vmem:[%s5 + $0xe0] sm:$0xff]
      %v4236 = vld [vmem:[%s5 + $0xe8] sm:$0xff]
      %v4237 = vld [vmem:[%s5 + $0xf0] sm:$0xff]
      %v4238 = vld [vmem:[%s5 + $0xf8] sm:$0xff]
      %v4239 = vld [vmem:[%s5 + $0x100] sm:$0xff]
      %v4240 = vld [vmem:[%s5 + $0x108] sm:$0xff]
      %v4241 = vld [vmem:[%s5 + $0x110] sm:$0xff]
      %v4242 = vld [vmem:[%s5 + $0x118] sm:$0xff]
      %v4243 = vld [vmem:[%s5 + $0x120] sm:$0xff]
      %v4244 = vld [vmem:[%s5 + $0x128] sm:$0xff]
      %v4245 = vld [vmem:[%s5 + $0x130] sm:$0xff]
      %v4246 = vld [vmem:[%s5 + $0x138] sm:$0xff]
      %v4247 = vld [vmem:[%s5 + $0x140] sm:$0xff]
      %v4248 = vld [vmem:[%s5 + $0x148] sm:$0xff]
      %v4249 = vld [vmem:[%s5 + $0x150] sm:$0xff]
      %v4250 = vld [vmem:[%s5 + $0x158] sm:$0xff]
      %v4251 = vld [vmem:[%s5 + $0x160] sm:$0xff]
      %v4252 = vld [vmem:[%s5 + $0x168] sm:$0xff]
      %v4253 = vld [vmem:[%s5 + $0x170] sm:$0xff]
      %v4254 = vld [vmem:[%s5 + $0x178] sm:$0xff]
      %v4255 = vld [vmem:[%s5 + $0x180] sm:$0xff]
      %v4256 = vld [vmem:[%s5 + $0x188] sm:$0xff]
      %v4257 = vld [vmem:[%s5 + $0x190] sm:$0xff]
      %v4258 = vld [vmem:[%s5 + $0x198] sm:$0xff]
      %v4259 = vld [vmem:[%s5 + $0x1a0] sm:$0xff]
      %v4260 = vld [vmem:[%s5 + $0x1a8] sm:$0xff]
      %v4261 = vld [vmem:[%s5 + $0x1b0] sm:$0xff]
      %v4262 = vld [vmem:[%s5 + $0x1b8] sm:$0xff]
      %v4263 = vld [vmem:[%s5 + $0x1c0] sm:$0xff]
      %v4264 = vld [vmem:[%s5 + $0x1c8] sm:$0xff]
      %v4265 = vld [vmem:[%s5 + $0x1d0] sm:$0xff]
      %v4266 = vld [vmem:[%s5 + $0x1d8] sm:$0xff]
      %v4267 = vld [vmem:[%s5 + $0x1e0] sm:$0xff]
      %v4268 = vld [vmem:[%s5 + $0x1e8] sm:$0xff]
      %v4269 = vld [vmem:[%s5 + $0x1f0] sm:$0xff]
      %v4270 = vld [vmem:[%s5 + $0x1f8] sm:$0xff]
      %v4271 = vld [vmem:[%s5 + $0x200] sm:$0xff]
      %v4272 = vld [vmem:[%s5 + $0x208] sm:$0xff]
      %v4273 = vld [vmem:[%s5 + $0x210] sm:$0xff]
      %v4274 = vld [vmem:[%s5 + $0x218] sm:$0xff]
      %v4275 = vld [vmem:[%s5 + $0x220] sm:$0xff]
      %v4276 = vld [vmem:[%s5 + $0x228] sm:$0xff]
      %v4277 = vld [vmem:[%s5 + $0x230] sm:$0xff]
      %v4278 = vld [vmem:[%s5 + $0x238] sm:$0xff]
      %v4279 = vld [vmem:[%s6] sm:$0x1]
      %v4281 = vperm.slane %v4279, 0
      %v4284 = vsel %vm342, %v4051, 0
      %v4287 = vsel %vm342, %v4056, 0
      %v4290 = vsel %vm342, %v4061, 0
      %v4293 = vsel %vm342, %v4066, 0
      %v4296 = vsel %vm342, %v4071, 0
      %v4299 = vsel %vm342, %v4076, 0
      %v4302 = vsel %vm342, %v4081, 0
      %v4305 = vsel %vm342, %v4086, 0
      %v4308 = vsel %vm342, %v4091, 0
      %v4311 = vsel %vm342, %v4096, 0
      %v4314 = vsel %vm342, %v4101, 0
      %v4317 = vsel %vm342, %v4106, 0
      %v4320 = vsel %vm342, %v4111, 0
      %v4323 = vsel %vm342, %v4116, 0
      %v4326 = vsel %vm342, %v4121, 0
      %v4329 = vsel %vm342, %v4126, 0
      %v4332 = vsel %vm342, %v4131, 0
      %v4335 = vsel %vm342, %v4136, 0
      %v4338 = vsel %vm342, %v4141, 0
      %v4341 = vsel %vm342, %v4146, 0
      %v4344 = vsel %vm342, %v4151, 0
      %v4347 = vsel %vm342, %v4156, 0
      %v4350 = vsel %vm342, %v4161, 0
      %v4353 = vsel %vm342, %v4166, 0
      %v4356 = vsel %vm342, %v4171, 0
      %v4359 = vsel %vm342, %v4176, 0
      %v4362 = vsel %vm342, %v4181, 0
      %v4365 = vsel %vm342, %v4186, 0
      %v4368 = vsel %vm342, %v4191, 0
      %v4371 = vsel %vm342, %v4196, 0
      %v4374 = vsel %vm342, %v4201, 0
      %v4377 = vsel %vm342, %v4206, 0
      %4379 = vmatpush.msra.mxu0 %v4222
      %4380 = vmatpush.msra.mxu0 %v4221
      %4381 = vmatpush.msra.mxu0 %v4220
      %4382 = vmatpush.msra.mxu0 %v4219
      %4383 = vmatpush.msra.mxu0 %v4218
      %4384 = vmatpush.msra.mxu0 %v4217
      %4385 = vmatpush.msra.mxu0 %v4216
      %4386 = vmatpush.msra.mxu0 %v4215
      %4387 = vmatpush.msra.mxu0 %v4214
      %4388 = vmatpush.msra.mxu0 %v4213
      %4389 = vmatpush.msra.mxu0 %v4212
      %4390 = vmatpush.msra.mxu0 %v4211
      %4391 = vmatpush.msra.mxu0 %v4210
      %4392 = vmatpush.msra.mxu0 %v4209
      %4393 = vmatpush.msra.mxu0 %v4208
      %4394 = vmatpush.msra.mxu0 %v4207
      %4395 = vmatmul.f32.gmra.mxu0 %v4047
      %v4396 = vpop.f32.mrf.mxu0
      %v4397 = vadd.f32 %v4281, %v4396
      %4398 = vmatmul.f32.gmra.mxu0 %v4052
      %v4399 = vpop.f32.mrf.mxu0
      %v4400 = vadd.f32 %v4281, %v4399
      %4401 = vmatmul.f32.gmra.mxu0 %v4057
      %v4402 = vpop.f32.mrf.mxu0
      %v4403 = vadd.f32 %v4281, %v4402
      %4404 = vmatmul.f32.gmra.mxu0 %v4062
      %v4405 = vpop.f32.mrf.mxu0
      %v4406 = vadd.f32 %v4281, %v4405
      %4407 = vmatmul.f32.gmra.mxu0 %v4067
      %v4408 = vpop.f32.mrf.mxu0
      %v4409 = vadd.f32 %v4281, %v4408
      %4410 = vmatmul.f32.gmra.mxu0 %v4072
      %v4411 = vpop.f32.mrf.mxu0
      %v4412 = vadd.f32 %v4281, %v4411
      %4413 = vmatmul.f32.gmra.mxu0 %v4077
      %v4414 = vpop.f32.mrf.mxu0
      %v4415 = vadd.f32 %v4281, %v4414
      %4416 = vmatmul.f32.gmra.mxu0 %v4082
      %v4417 = vpop.f32.mrf.mxu0
      %v4418 = vadd.f32 %v4281, %v4417
      %4419 = vmatmul.f32.gmra.mxu0 %v4087
      %v4420 = vpop.f32.mrf.mxu0
      %v4421 = vadd.f32 %v4281, %v4420
      %4422 = vmatmul.f32.gmra.mxu0 %v4092
      %v4423 = vpop.f32.mrf.mxu0
      %v4424 = vadd.f32 %v4281, %v4423
      %4425 = vmatmul.f32.gmra.mxu0 %v4097
      %v4426 = vpop.f32.mrf.mxu0
      %v4427 = vadd.f32 %v4281, %v4426
      %4428 = vmatmul.f32.gmra.mxu0 %v4102
      %v4429 = vpop.f32.mrf.mxu0
      %v4430 = vadd.f32 %v4281, %v4429
      %4431 = vmatmul.f32.gmra.mxu0 %v4107
      %v4432 = vpop.f32.mrf.mxu0
      %v4433 = vadd.f32 %v4281, %v4432
      %4434 = vmatmul.f32.gmra.mxu0 %v4112
      %v4435 = vpop.f32.mrf.mxu0
      %v4436 = vadd.f32 %v4281, %v4435
      %4437 = vmatmul.f32.gmra.mxu0 %v4117
      %v4438 = vpop.f32.mrf.mxu0
      %v4439 = vadd.f32 %v4281, %v4438
      %4440 = vmatmul.f32.gmra.mxu0 %v4122
      %v4441 = vpop.f32.mrf.mxu0
      %v4442 = vadd.f32 %v4281, %v4441
      %4443 = vmatmul.f32.gmra.mxu0 %v4127
      %v4444 = vpop.f32.mrf.mxu0
      %v4445 = vadd.f32 %v4281, %v4444
      %4446 = vmatmul.f32.gmra.mxu0 %v4132
      %v4447 = vpop.f32.mrf.mxu0
      %v4448 = vadd.f32 %v4281, %v4447
      %4449 = vmatmul.f32.gmra.mxu0 %v4137
      %v4450 = vpop.f32.mrf.mxu0
      %v4451 = vadd.f32 %v4281, %v4450
      %4452 = vmatmul.f32.gmra.mxu0 %v4142
      %v4453 = vpop.f32.mrf.mxu0
      %v4454 = vadd.f32 %v4281, %v4453
      %4455 = vmatmul.f32.gmra.mxu0 %v4147
      %v4456 = vpop.f32.mrf.mxu0
      %v4457 = vadd.f32 %v4281, %v4456
      %4458 = vmatmul.f32.gmra.mxu0 %v4152
      %v4459 = vpop.f32.mrf.mxu0
      %v4460 = vadd.f32 %v4281, %v4459
      %4461 = vmatmul.f32.gmra.mxu0 %v4157
      %v4462 = vpop.f32.mrf.mxu0
      %v4463 = vadd.f32 %v4281, %v4462
      %4464 = vmatmul.f32.gmra.mxu0 %v4162
      %v4465 = vpop.f32.mrf.mxu0
      %v4466 = vadd.f32 %v4281, %v4465
      %4467 = vmatmul.f32.gmra.mxu0 %v4167
      %v4468 = vpop.f32.mrf.mxu0
      %v4469 = vadd.f32 %v4281, %v4468
      %4470 = vmatmul.f32.gmra.mxu0 %v4172
      %v4471 = vpop.f32.mrf.mxu0
      %v4472 = vadd.f32 %v4281, %v4471
      %4473 = vmatmul.f32.gmra.mxu0 %v4177
      %v4474 = vpop.f32.mrf.mxu0
      %v4475 = vadd.f32 %v4281, %v4474
      %4476 = vmatmul.f32.gmra.mxu0 %v4182
      %v4477 = vpop.f32.mrf.mxu0
      %v4478 = vadd.f32 %v4281, %v4477
      %4479 = vmatmul.f32.gmra.mxu0 %v4187
      %v4480 = vpop.f32.mrf.mxu0
      %v4481 = vadd.f32 %v4281, %v4480
      %4482 = vmatmul.f32.gmra.mxu0 %v4192
      %v4483 = vpop.f32.mrf.mxu0
      %v4484 = vadd.f32 %v4281, %v4483
      %4485 = vmatmul.f32.gmra.mxu0 %v4197
      %v4486 = vpop.f32.mrf.mxu0
      %v4487 = vadd.f32 %v4281, %v4486
      %4488 = vmatmul.f32.gmra.mxu0 %v4202
      %v4489 = vpop.f32.mrf.mxu0
      %v4490 = vadd.f32 %v4281, %v4489
      %4491 = vdwg.mxu0
      %4492 = vmatpush.msra.mxu0 %v4238
      %4493 = vmatpush.msra.mxu0 %v4237
      %4494 = vmatpush.msra.mxu0 %v4236
      %4495 = vmatpush.msra.mxu0 %v4235
      %4496 = vmatpush.msra.mxu0 %v4234
      %4497 = vmatpush.msra.mxu0 %v4233
      %4498 = vmatpush.msra.mxu0 %v4232
      %4499 = vmatpush.msra.mxu0 %v4231
      %4500 = vmatpush.msra.mxu0 %v4230
      %4501 = vmatpush.msra.mxu0 %v4229
      %4502 = vmatpush.msra.mxu0 %v4228
      %4503 = vmatpush.msra.mxu0 %v4227
      %4504 = vmatpush.msra.mxu0 %v4226
      %4505 = vmatpush.msra.mxu0 %v4225
      %4506 = vmatpush.msra.mxu0 %v4224
      %4507 = vmatpush.msra.mxu0 %v4223
      %4508 = vmatmul.f32.gmra.mxu0 %v4048
      %v4509 = vpop.f32.mrf.mxu0
      %v4510 = vadd.f32 %v4397, %v4509
      %4511 = vmatmul.f32.gmra.mxu0 %v4053
      %v4512 = vpop.f32.mrf.mxu0
      %v4513 = vadd.f32 %v4400, %v4512
      %4514 = vmatmul.f32.gmra.mxu0 %v4058
      %v4515 = vpop.f32.mrf.mxu0
      %v4516 = vadd.f32 %v4403, %v4515
      %4517 = vmatmul.f32.gmra.mxu0 %v4063
      %v4518 = vpop.f32.mrf.mxu0
      %v4519 = vadd.f32 %v4406, %v4518
      %4520 = vmatmul.f32.gmra.mxu0 %v4068
      %v4521 = vpop.f32.mrf.mxu0
      %v4522 = vadd.f32 %v4409, %v4521
      %4523 = vmatmul.f32.gmra.mxu0 %v4073
      %v4524 = vpop.f32.mrf.mxu0
      %v4525 = vadd.f32 %v4412, %v4524
      %4526 = vmatmul.f32.gmra.mxu0 %v4078
      %v4527 = vpop.f32.mrf.mxu0
      %v4528 = vadd.f32 %v4415, %v4527
      %4529 = vmatmul.f32.gmra.mxu0 %v4083
      %v4530 = vpop.f32.mrf.mxu0
      %v4531 = vadd.f32 %v4418, %v4530
      %4532 = vmatmul.f32.gmra.mxu0 %v4088
      %v4533 = vpop.f32.mrf.mxu0
      %v4534 = vadd.f32 %v4421, %v4533
      %4535 = vmatmul.f32.gmra.mxu0 %v4093
      %v4536 = vpop.f32.mrf.mxu0
      %v4537 = vadd.f32 %v4424, %v4536
      %4538 = vmatmul.f32.gmra.mxu0 %v4098
      %v4539 = vpop.f32.mrf.mxu0
      %v4540 = vadd.f32 %v4427, %v4539
      %4541 = vmatmul.f32.gmra.mxu0 %v4103
      %v4542 = vpop.f32.mrf.mxu0
      %v4543 = vadd.f32 %v4430, %v4542
      %4544 = vmatmul.f32.gmra.mxu0 %v4108
      %v4545 = vpop.f32.mrf.mxu0
      %v4546 = vadd.f32 %v4433, %v4545
      %4547 = vmatmul.f32.gmra.mxu0 %v4113
      %v4548 = vpop.f32.mrf.mxu0
      %v4549 = vadd.f32 %v4436, %v4548
      %4550 = vmatmul.f32.gmra.mxu0 %v4118
      %v4551 = vpop.f32.mrf.mxu0
      %v4552 = vadd.f32 %v4439, %v4551
      %4553 = vmatmul.f32.gmra.mxu0 %v4123
      %v4554 = vpop.f32.mrf.mxu0
      %v4555 = vadd.f32 %v4442, %v4554
      %4556 = vmatmul.f32.gmra.mxu0 %v4128
      %v4557 = vpop.f32.mrf.mxu0
      %v4558 = vadd.f32 %v4445, %v4557
      %4559 = vmatmul.f32.gmra.mxu0 %v4133
      %v4560 = vpop.f32.mrf.mxu0
      %v4561 = vadd.f32 %v4448, %v4560
      %4562 = vmatmul.f32.gmra.mxu0 %v4138
      %v4563 = vpop.f32.mrf.mxu0
      %v4564 = vadd.f32 %v4451, %v4563
      %4565 = vmatmul.f32.gmra.mxu0 %v4143
      %v4566 = vpop.f32.mrf.mxu0
      %v4567 = vadd.f32 %v4454, %v4566
      %4568 = vmatmul.f32.gmra.mxu0 %v4148
      %v4569 = vpop.f32.mrf.mxu0
      %v4570 = vadd.f32 %v4457, %v4569
      %4571 = vmatmul.f32.gmra.mxu0 %v4153
      %v4572 = vpop.f32.mrf.mxu0
      %v4573 = vadd.f32 %v4460, %v4572
      %4574 = vmatmul.f32.gmra.mxu0 %v4158
      %v4575 = vpop.f32.mrf.mxu0
      %v4576 = vadd.f32 %v4463, %v4575
      %4577 = vmatmul.f32.gmra.mxu0 %v4163
      %v4578 = vpop.f32.mrf.mxu0
      %v4579 = vadd.f32 %v4466, %v4578
      %4580 = vmatmul.f32.gmra.mxu0 %v4168
      %v4581 = vpop.f32.mrf.mxu0
      %v4582 = vadd.f32 %v4469, %v4581
      %4583 = vmatmul.f32.gmra.mxu0 %v4173
      %v4584 = vpop.f32.mrf.mxu0
      %v4585 = vadd.f32 %v4472, %v4584
      %4586 = vmatmul.f32.gmra.mxu0 %v4178
      %v4587 = vpop.f32.mrf.mxu0
      %v4588 = vadd.f32 %v4475, %v4587
      %4589 = vmatmul.f32.gmra.mxu0 %v4183
      %v4590 = vpop.f32.mrf.mxu0
      %v4591 = vadd.f32 %v4478, %v4590
      %4592 = vmatmul.f32.gmra.mxu0 %v4188
      %v4593 = vpop.f32.mrf.mxu0
      %v4594 = vadd.f32 %v4481, %v4593
      %4595 = vmatmul.f32.gmra.mxu0 %v4193
      %v4596 = vpop.f32.mrf.mxu0
      %v4597 = vadd.f32 %v4484, %v4596
      %4598 = vmatmul.f32.gmra.mxu0 %v4198
      %v4599 = vpop.f32.mrf.mxu0
      %v4600 = vadd.f32 %v4487, %v4599
      %4601 = vmatmul.f32.gmra.mxu0 %v4203
      %v4602 = vpop.f32.mrf.mxu0
      %v4603 = vadd.f32 %v4490, %v4602
      %4604 = vdwg.mxu0
      %4605 = vmatpush.msra.mxu0 %v4254
      %4606 = vmatpush.msra.mxu0 %v4253
      %4607 = vmatpush.msra.mxu0 %v4252
      %4608 = vmatpush.msra.mxu0 %v4251
      %4609 = vmatpush.msra.mxu0 %v4250
      %4610 = vmatpush.msra.mxu0 %v4249
      %4611 = vmatpush.msra.mxu0 %v4248
      %4612 = vmatpush.msra.mxu0 %v4247
      %4613 = vmatpush.msra.mxu0 %v4246
      %4614 = vmatpush.msra.mxu0 %v4245
      %4615 = vmatpush.msra.mxu0 %v4244
      %4616 = vmatpush.msra.mxu0 %v4243
      %4617 = vmatpush.msra.mxu0 %v4242
      %4618 = vmatpush.msra.mxu0 %v4241
      %4619 = vmatpush.msra.mxu0 %v4240
      %4620 = vmatpush.msra.mxu0 %v4239
      %4621 = vmatmul.f32.gmra.mxu0 %v4049
      %v4622 = vpop.f32.mrf.mxu0
      %v4623 = vadd.f32 %v4510, %v4622
      %4624 = vmatmul.f32.gmra.mxu0 %v4054
      %v4625 = vpop.f32.mrf.mxu0
      %v4626 = vadd.f32 %v4513, %v4625
      %4627 = vmatmul.f32.gmra.mxu0 %v4059
      %v4628 = vpop.f32.mrf.mxu0
      %v4629 = vadd.f32 %v4516, %v4628
      %4630 = vmatmul.f32.gmra.mxu0 %v4064
      %v4631 = vpop.f32.mrf.mxu0
      %v4632 = vadd.f32 %v4519, %v4631
      %4633 = vmatmul.f32.gmra.mxu0 %v4069
      %v4634 = vpop.f32.mrf.mxu0
      %v4635 = vadd.f32 %v4522, %v4634
      %4636 = vmatmul.f32.gmra.mxu0 %v4074
      %v4637 = vpop.f32.mrf.mxu0
      %v4638 = vadd.f32 %v4525, %v4637
      %4639 = vmatmul.f32.gmra.mxu0 %v4079
      %v4640 = vpop.f32.mrf.mxu0
      %v4641 = vadd.f32 %v4528, %v4640
      %4642 = vmatmul.f32.gmra.mxu0 %v4084
      %v4643 = vpop.f32.mrf.mxu0
      %v4644 = vadd.f32 %v4531, %v4643
      %4645 = vmatmul.f32.gmra.mxu0 %v4089
      %v4646 = vpop.f32.mrf.mxu0
      %v4647 = vadd.f32 %v4534, %v4646
      %4648 = vmatmul.f32.gmra.mxu0 %v4094
      %v4649 = vpop.f32.mrf.mxu0
      %v4650 = vadd.f32 %v4537, %v4649
      %4651 = vmatmul.f32.gmra.mxu0 %v4099
      %v4652 = vpop.f32.mrf.mxu0
      %v4653 = vadd.f32 %v4540, %v4652
      %4654 = vmatmul.f32.gmra.mxu0 %v4104
      %v4655 = vpop.f32.mrf.mxu0
      %v4656 = vadd.f32 %v4543, %v4655
      %4657 = vmatmul.f32.gmra.mxu0 %v4109
      %v4658 = vpop.f32.mrf.mxu0
      %v4659 = vadd.f32 %v4546, %v4658
      %4660 = vmatmul.f32.gmra.mxu0 %v4114
      %v4661 = vpop.f32.mrf.mxu0
      %v4662 = vadd.f32 %v4549, %v4661
      %4663 = vmatmul.f32.gmra.mxu0 %v4119
      %v4664 = vpop.f32.mrf.mxu0
      %v4665 = vadd.f32 %v4552, %v4664
      %4666 = vmatmul.f32.gmra.mxu0 %v4124
      %v4667 = vpop.f32.mrf.mxu0
      %v4668 = vadd.f32 %v4555, %v4667
      %4669 = vmatmul.f32.gmra.mxu0 %v4129
      %v4670 = vpop.f32.mrf.mxu0
      %v4671 = vadd.f32 %v4558, %v4670
      %4672 = vmatmul.f32.gmra.mxu0 %v4134
      %v4673 = vpop.f32.mrf.mxu0
      %v4674 = vadd.f32 %v4561, %v4673
      %4675 = vmatmul.f32.gmra.mxu0 %v4139
      %v4676 = vpop.f32.mrf.mxu0
      %v4677 = vadd.f32 %v4564, %v4676
      %4678 = vmatmul.f32.gmra.mxu0 %v4144
      %v4679 = vpop.f32.mrf.mxu0
      %v4680 = vadd.f32 %v4567, %v4679
      %4681 = vmatmul.f32.gmra.mxu0 %v4149
      %v4682 = vpop.f32.mrf.mxu0
      %v4683 = vadd.f32 %v4570, %v4682
      %4684 = vmatmul.f32.gmra.mxu0 %v4154
      %v4685 = vpop.f32.mrf.mxu0
      %v4686 = vadd.f32 %v4573, %v4685
      %4687 = vmatmul.f32.gmra.mxu0 %v4159
      %v4688 = vpop.f32.mrf.mxu0
      %v4689 = vadd.f32 %v4576, %v4688
      %4690 = vmatmul.f32.gmra.mxu0 %v4164
      %v4691 = vpop.f32.mrf.mxu0
      %v4692 = vadd.f32 %v4579, %v4691
      %4693 = vmatmul.f32.gmra.mxu0 %v4169
      %v4694 = vpop.f32.mrf.mxu0
      %v4695 = vadd.f32 %v4582, %v4694
      %4696 = vmatmul.f32.gmra.mxu0 %v4174
      %v4697 = vpop.f32.mrf.mxu0
      %v4698 = vadd.f32 %v4585, %v4697
      %4699 = vmatmul.f32.gmra.mxu0 %v4179
      %v4700 = vpop.f32.mrf.mxu0
      %v4701 = vadd.f32 %v4588, %v4700
      %4702 = vmatmul.f32.gmra.mxu0 %v4184
      %v4703 = vpop.f32.mrf.mxu0
      %v4704 = vadd.f32 %v4591, %v4703
      %4705 = vmatmul.f32.gmra.mxu0 %v4189
      %v4706 = vpop.f32.mrf.mxu0
      %v4707 = vadd.f32 %v4594, %v4706
      %4708 = vmatmul.f32.gmra.mxu0 %v4194
      %v4709 = vpop.f32.mrf.mxu0
      %v4710 = vadd.f32 %v4597, %v4709
      %4711 = vmatmul.f32.gmra.mxu0 %v4199
      %v4712 = vpop.f32.mrf.mxu0
      %v4713 = vadd.f32 %v4600, %v4712
      %4714 = vmatmul.f32.gmra.mxu0 %v4204
      %v4715 = vpop.f32.mrf.mxu0
      %v4716 = vadd.f32 %v4603, %v4715
      %4717 = vdwg.mxu0
      %4718 = vmatpush.msra.mxu0 %v4270
      %4719 = vmatpush.msra.mxu0 %v4269
      %4720 = vmatpush.msra.mxu0 %v4268
      %4721 = vmatpush.msra.mxu0 %v4267
      %4722 = vmatpush.msra.mxu0 %v4266
      %4723 = vmatpush.msra.mxu0 %v4265
      %4724 = vmatpush.msra.mxu0 %v4264
      %4725 = vmatpush.msra.mxu0 %v4263
      %4726 = vmatpush.msra.mxu0 %v4262
      %4727 = vmatpush.msra.mxu0 %v4261
      %4728 = vmatpush.msra.mxu0 %v4260
      %4729 = vmatpush.msra.mxu0 %v4259
      %4730 = vmatpush.msra.mxu0 %v4258
      %4731 = vmatpush.msra.mxu0 %v4257
      %4732 = vmatpush.msra.mxu0 %v4256
      %4733 = vmatpush.msra.mxu0 %v4255
      %4734 = vmatmul.f32.gmra.mxu0 %v4050
      %v4735 = vpop.f32.mrf.mxu0
      %v4736 = vadd.f32 %v4623, %v4735
      %4737 = vmatmul.f32.gmra.mxu0 %v4055
      %v4738 = vpop.f32.mrf.mxu0
      %v4739 = vadd.f32 %v4626, %v4738
      %4740 = vmatmul.f32.gmra.mxu0 %v4060
      %v4741 = vpop.f32.mrf.mxu0
      %v4742 = vadd.f32 %v4629, %v4741
      %4743 = vmatmul.f32.gmra.mxu0 %v4065
      %v4744 = vpop.f32.mrf.mxu0
      %v4745 = vadd.f32 %v4632, %v4744
      %4746 = vmatmul.f32.gmra.mxu0 %v4070
      %v4747 = vpop.f32.mrf.mxu0
      %v4748 = vadd.f32 %v4635, %v4747
      %4749 = vmatmul.f32.gmra.mxu0 %v4075
      %v4750 = vpop.f32.mrf.mxu0
      %v4751 = vadd.f32 %v4638, %v4750
      %4752 = vmatmul.f32.gmra.mxu0 %v4080
      %v4753 = vpop.f32.mrf.mxu0
      %v4754 = vadd.f32 %v4641, %v4753
      %4755 = vmatmul.f32.gmra.mxu0 %v4085
      %v4756 = vpop.f32.mrf.mxu0
      %v4757 = vadd.f32 %v4644, %v4756
      %4758 = vmatmul.f32.gmra.mxu0 %v4090
      %v4759 = vpop.f32.mrf.mxu0
      %v4760 = vadd.f32 %v4647, %v4759
      %4761 = vmatmul.f32.gmra.mxu0 %v4095
      %v4762 = vpop.f32.mrf.mxu0
      %v4763 = vadd.f32 %v4650, %v4762
      %4764 = vmatmul.f32.gmra.mxu0 %v4100
      %v4765 = vpop.f32.mrf.mxu0
      %v4766 = vadd.f32 %v4653, %v4765
      %4767 = vmatmul.f32.gmra.mxu0 %v4105
      %v4768 = vpop.f32.mrf.mxu0
      %v4769 = vadd.f32 %v4656, %v4768
      %4770 = vmatmul.f32.gmra.mxu0 %v4110
      %v4771 = vpop.f32.mrf.mxu0
      %v4772 = vadd.f32 %v4659, %v4771
      %4773 = vmatmul.f32.gmra.mxu0 %v4115
      %v4774 = vpop.f32.mrf.mxu0
      %v4775 = vadd.f32 %v4662, %v4774
      %4776 = vmatmul.f32.gmra.mxu0 %v4120
      %v4777 = vpop.f32.mrf.mxu0
      %v4778 = vadd.f32 %v4665, %v4777
      %4779 = vmatmul.f32.gmra.mxu0 %v4125
      %v4780 = vpop.f32.mrf.mxu0
      %v4781 = vadd.f32 %v4668, %v4780
      %4782 = vmatmul.f32.gmra.mxu0 %v4130
      %v4783 = vpop.f32.mrf.mxu0
      %v4784 = vadd.f32 %v4671, %v4783
      %4785 = vmatmul.f32.gmra.mxu0 %v4135
      %v4786 = vpop.f32.mrf.mxu0
      %v4787 = vadd.f32 %v4674, %v4786
      %4788 = vmatmul.f32.gmra.mxu0 %v4140
      %v4789 = vpop.f32.mrf.mxu0
      %v4790 = vadd.f32 %v4677, %v4789
      %4791 = vmatmul.f32.gmra.mxu0 %v4145
      %v4792 = vpop.f32.mrf.mxu0
      %v4793 = vadd.f32 %v4680, %v4792
      %4794 = vmatmul.f32.gmra.mxu0 %v4150
      %v4795 = vpop.f32.mrf.mxu0
      %v4796 = vadd.f32 %v4683, %v4795
      %4797 = vmatmul.f32.gmra.mxu0 %v4155
      %v4798 = vpop.f32.mrf.mxu0
      %v4799 = vadd.f32 %v4686, %v4798
      %4800 = vmatmul.f32.gmra.mxu0 %v4160
      %v4801 = vpop.f32.mrf.mxu0
      %v4802 = vadd.f32 %v4689, %v4801
      %4803 = vmatmul.f32.gmra.mxu0 %v4165
      %v4804 = vpop.f32.mrf.mxu0
      %v4805 = vadd.f32 %v4692, %v4804
      %4806 = vmatmul.f32.gmra.mxu0 %v4170
      %v4807 = vpop.f32.mrf.mxu0
      %v4808 = vadd.f32 %v4695, %v4807
      %4809 = vmatmul.f32.gmra.mxu0 %v4175
      %v4810 = vpop.f32.mrf.mxu0
      %v4811 = vadd.f32 %v4698, %v4810
      %4812 = vmatmul.f32.gmra.mxu0 %v4180
      %v4813 = vpop.f32.mrf.mxu0
      %v4814 = vadd.f32 %v4701, %v4813
      %4815 = vmatmul.f32.gmra.mxu0 %v4185
      %v4816 = vpop.f32.mrf.mxu0
      %v4817 = vadd.f32 %v4704, %v4816
      %4818 = vmatmul.f32.gmra.mxu0 %v4190
      %v4819 = vpop.f32.mrf.mxu0
      %v4820 = vadd.f32 %v4707, %v4819
      %4821 = vmatmul.f32.gmra.mxu0 %v4195
      %v4822 = vpop.f32.mrf.mxu0
      %v4823 = vadd.f32 %v4710, %v4822
      %4824 = vmatmul.f32.gmra.mxu0 %v4200
      %v4825 = vpop.f32.mrf.mxu0
      %v4826 = vadd.f32 %v4713, %v4825
      %4827 = vmatmul.f32.gmra.mxu0 %v4205
      %v4828 = vpop.f32.mrf.mxu0
      %v4829 = vadd.f32 %v4716, %v4828
      %4830 = vdwg.mxu0
      %4831 = vmatpush.msra.mxu0 0.0
      %4832 = vmatpush.msra.mxu0 0.0
      %4833 = vmatpush.msra.mxu0 0.0
      %4834 = vmatpush.msra.mxu0 0.0
      %4835 = vmatpush.msra.mxu0 0.0
      %4836 = vmatpush.msra.mxu0 0.0
      %4837 = vmatpush.msra.mxu0 0.0
      %4838 = vmatpush.msra.mxu0 0.0
      %4839 = vmatpush.msra.mxu0 %v4278
      %4840 = vmatpush.msra.mxu0 %v4277
      %4841 = vmatpush.msra.mxu0 %v4276
      %4842 = vmatpush.msra.mxu0 %v4275
      %4843 = vmatpush.msra.mxu0 %v4274
      %4844 = vmatpush.msra.mxu0 %v4273
      %4845 = vmatpush.msra.mxu0 %v4272
      %4846 = vmatpush.msra.mxu0 %v4271
      %4847 = vmatmul.f32.gmra.mxu0 %v4284
      %v4848 = vpop.f32.mrf.mxu0
      %v4849 = vadd.f32 %v4736, %v4848
      %4850 = vmatmul.f32.gmra.mxu0 %v4287
      %v4851 = vpop.f32.mrf.mxu0
      %v4852 = vadd.f32 %v4739, %v4851
      %4853 = vmatmul.f32.gmra.mxu0 %v4290
      %v4854 = vpop.f32.mrf.mxu0
      %v4855 = vadd.f32 %v4742, %v4854
      %4856 = vmatmul.f32.gmra.mxu0 %v4293
      %v4857 = vpop.f32.mrf.mxu0
      %v4858 = vadd.f32 %v4745, %v4857
      %4859 = vmatmul.f32.gmra.mxu0 %v4296
      %v4860 = vpop.f32.mrf.mxu0
      %v4861 = vadd.f32 %v4748, %v4860
      %4862 = vmatmul.f32.gmra.mxu0 %v4299
      %v4863 = vpop.f32.mrf.mxu0
      %v4864 = vadd.f32 %v4751, %v4863
      %4865 = vmatmul.f32.gmra.mxu0 %v4302
      %v4866 = vpop.f32.mrf.mxu0
      %v4867 = vadd.f32 %v4754, %v4866
      %4868 = vmatmul.f32.gmra.mxu0 %v4305
      %v4869 = vpop.f32.mrf.mxu0
      %v4870 = vadd.f32 %v4757, %v4869
      %4871 = vmatmul.f32.gmra.mxu0 %v4308
      %v4872 = vpop.f32.mrf.mxu0
      %v4873 = vadd.f32 %v4760, %v4872
      %4874 = vmatmul.f32.gmra.mxu0 %v4311
      %v4875 = vpop.f32.mrf.mxu0
      %v4876 = vadd.f32 %v4763, %v4875
      %4877 = vmatmul.f32.gmra.mxu0 %v4314
      %v4878 = vpop.f32.mrf.mxu0
      %v4879 = vadd.f32 %v4766, %v4878
      %4880 = vmatmul.f32.gmra.mxu0 %v4317
      %v4881 = vpop.f32.mrf.mxu0
      %v4882 = vadd.f32 %v4769, %v4881
      %4883 = vmatmul.f32.gmra.mxu0 %v4320
      %v4884 = vpop.f32.mrf.mxu0
      %v4885 = vadd.f32 %v4772, %v4884
      %4886 = vmatmul.f32.gmra.mxu0 %v4323
      %v4887 = vpop.f32.mrf.mxu0
      %v4888 = vadd.f32 %v4775, %v4887
      %4889 = vmatmul.f32.gmra.mxu0 %v4326
      %v4890 = vpop.f32.mrf.mxu0
      %v4891 = vadd.f32 %v4778, %v4890
      %4892 = vmatmul.f32.gmra.mxu0 %v4329
      %v4893 = vpop.f32.mrf.mxu0
      %v4894 = vadd.f32 %v4781, %v4893
      %4895 = vmatmul.f32.gmra.mxu0 %v4332
      %v4896 = vpop.f32.mrf.mxu0
      %v4897 = vadd.f32 %v4784, %v4896
      %4898 = vmatmul.f32.gmra.mxu0 %v4335
      %v4899 = vpop.f32.mrf.mxu0
      %v4900 = vadd.f32 %v4787, %v4899
      %4901 = vmatmul.f32.gmra.mxu0 %v4338
      %v4902 = vpop.f32.mrf.mxu0
      %v4903 = vadd.f32 %v4790, %v4902
      %4904 = vmatmul.f32.gmra.mxu0 %v4341
      %v4905 = vpop.f32.mrf.mxu0
      %v4906 = vadd.f32 %v4793, %v4905
      %4907 = vmatmul.f32.gmra.mxu0 %v4344
      %v4908 = vpop.f32.mrf.mxu0
      %v4909 = vadd.f32 %v4796, %v4908
      %4910 = vmatmul.f32.gmra.mxu0 %v4347
      %v4911 = vpop.f32.mrf.mxu0
      %v4912 = vadd.f32 %v4799, %v4911
      %4913 = vmatmul.f32.gmra.mxu0 %v4350
      %v4914 = vpop.f32.mrf.mxu0
      %v4915 = vadd.f32 %v4802, %v4914
      %4916 = vmatmul.f32.gmra.mxu0 %v4353
      %v4917 = vpop.f32.mrf.mxu0
      %v4918 = vadd.f32 %v4805, %v4917
      %4919 = vmatmul.f32.gmra.mxu0 %v4356
      %v4920 = vpop.f32.mrf.mxu0
      %v4921 = vadd.f32 %v4808, %v4920
      %4922 = vmatmul.f32.gmra.mxu0 %v4359
      %v4923 = vpop.f32.mrf.mxu0
      %v4924 = vadd.f32 %v4811, %v4923
      %4925 = vmatmul.f32.gmra.mxu0 %v4362
      %v4926 = vpop.f32.mrf.mxu0
      %v4927 = vadd.f32 %v4814, %v4926
      %4928 = vmatmul.f32.gmra.mxu0 %v4365
      %v4929 = vpop.f32.mrf.mxu0
      %v4930 = vadd.f32 %v4817, %v4929
      %4931 = vmatmul.f32.gmra.mxu0 %v4368
      %v4932 = vpop.f32.mrf.mxu0
      %v4933 = vadd.f32 %v4820, %v4932
      %4934 = vmatmul.f32.gmra.mxu0 %v4371
      %v4935 = vpop.f32.mrf.mxu0
      %v4936 = vadd.f32 %v4823, %v4935
      %4937 = vmatmul.f32.gmra.mxu0 %v4374
      %v4938 = vpop.f32.mrf.mxu0
      %v4939 = vadd.f32 %v4826, %v4938
      %4940 = vmatmul.f32.gmra.mxu0 %v4377
      %v4941 = vpop.f32.mrf.mxu0
      %v4942 = vadd.f32 %v4829, %v4941
      %4943 = vdwg.mxu0
      %v4944 = vmax.f32 %v4849, 0.0
      %v4945 = vmax.f32 %v4852, 0.0
      %v4946 = vmax.f32 %v4855, 0.0
      %v4947 = vmax.f32 %v4858, 0.0
      %v4948 = vmax.f32 %v4861, 0.0
      %v4949 = vmax.f32 %v4864, 0.0
      %v4950 = vmax.f32 %v4867, 0.0
      %v4951 = vmax.f32 %v4870, 0.0
      %v4952 = vmax.f32 %v4873, 0.0
      %v4953 = vmax.f32 %v4876, 0.0
      %v4954 = vmax.f32 %v4879, 0.0
      %v4955 = vmax.f32 %v4882, 0.0
      %v4956 = vmax.f32 %v4885, 0.0
      %v4957 = vmax.f32 %v4888, 0.0
      %v4958 = vmax.f32 %v4891, 0.0
      %v4959 = vmax.f32 %v4894, 0.0
      %v4960 = vmax.f32 %v4897, 0.0
      %v4961 = vmax.f32 %v4900, 0.0
      %v4962 = vmax.f32 %v4903, 0.0
      %v4963 = vmax.f32 %v4906, 0.0
      %v4964 = vmax.f32 %v4909, 0.0
      %v4965 = vmax.f32 %v4912, 0.0
      %v4966 = vmax.f32 %v4915, 0.0
      %v4967 = vmax.f32 %v4918, 0.0
      %v4968 = vmax.f32 %v4921, 0.0
      %v4969 = vmax.f32 %v4924, 0.0
      %v4970 = vmax.f32 %v4927, 0.0
      %v4971 = vmax.f32 %v4930, 0.0
      %v4972 = vmax.f32 %v4933, 0.0
      %v4973 = vmax.f32 %v4936, 0.0
      %v4974 = vmax.f32 %v4939, 0.0
      %v4975 = vmax.f32 %v4942, 0.0
      %4976 = vst.msk [vmem:[%s298] sm:$0xff] %vm342, %v4944
      %4977 = vst.msk [vmem:[%s298 + $0x8] sm:$0xff] %vm342, %v4945
      %4978 = vst.msk [vmem:[%s298 + $0x10] sm:$0xff] %vm342, %v4946
      %4979 = vst.msk [vmem:[%s298 + $0x18] sm:$0xff] %vm342, %v4947
      %4980 = vst.msk [vmem:[%s298 + $0x20] sm:$0xff] %vm342, %v4948
      %4981 = vst.msk [vmem:[%s298 + $0x28] sm:$0xff] %vm342, %v4949
      %4982 = vst.msk [vmem:[%s298 + $0x30] sm:$0xff] %vm342, %v4950
      %4983 = vst.msk [vmem:[%s298 + $0x38] sm:$0xff] %vm342, %v4951
      %4984 = vst.msk [vmem:[%s298 + $0x40] sm:$0xff] %vm342, %v4952
      %4985 = vst.msk [vmem:[%s298 + $0x48] sm:$0xff] %vm342, %v4953
      %4986 = vst.msk [vmem:[%s298 + $0x50] sm:$0xff] %vm342, %v4954
      %4987 = vst.msk [vmem:[%s298 + $0x58] sm:$0xff] %vm342, %v4955
      %4988 = vst.msk [vmem:[%s298 + $0x60] sm:$0xff] %vm342, %v4956
      %4989 = vst.msk [vmem:[%s298 + $0x68] sm:$0xff] %vm342, %v4957
      %4990 = vst.msk [vmem:[%s298 + $0x70] sm:$0xff] %vm342, %v4958
      %4991 = vst.msk [vmem:[%s298 + $0x78] sm:$0xff] %vm342, %v4959
      %4992 = vst.msk [vmem:[%s298 + $0x80] sm:$0xff] %vm342, %v4960
      %4993 = vst.msk [vmem:[%s298 + $0x88] sm:$0xff] %vm342, %v4961
      %4994 = vst.msk [vmem:[%s298 + $0x90] sm:$0xff] %vm342, %v4962
      %4995 = vst.msk [vmem:[%s298 + $0x98] sm:$0xff] %vm342, %v4963
      %4996 = vst.msk [vmem:[%s298 + $0xa0] sm:$0xff] %vm342, %v4964
      %4997 = vst.msk [vmem:[%s298 + $0xa8] sm:$0xff] %vm342, %v4965
      %4998 = vst.msk [vmem:[%s298 + $0xb0] sm:$0xff] %vm342, %v4966
      %4999 = vst.msk [vmem:[%s298 + $0xb8] sm:$0xff] %vm342, %v4967
      %5000 = vst.msk [vmem:[%s298 + $0xc0] sm:$0xff] %vm342, %v4968
      %5001 = vst.msk [vmem:[%s298 + $0xc8] sm:$0xff] %vm342, %v4969
      %5002 = vst.msk [vmem:[%s298 + $0xd0] sm:$0xff] %vm342, %v4970
      %5003 = vst.msk [vmem:[%s298 + $0xd8] sm:$0xff] %vm342, %v4971
      %5004 = vst.msk [vmem:[%s298 + $0xe0] sm:$0xff] %vm342, %v4972
      %5005 = vst.msk [vmem:[%s298 + $0xe8] sm:$0xff] %vm342, %v4973
      %5006 = vst.msk [vmem:[%s298 + $0xf0] sm:$0xff] %vm342, %v4974
      %5007 = vst.msk [vmem:[%s298 + $0xf8] sm:$0xff] %vm342, %v4975
      %p5008 = scmp.lt.s32.totalorder %s18, 1
      %s5009 = scalar_select %p5008, %s18, 1
      %s5010 = smul.addr %s5009, 32
      %s5011 = smul.addr %s5010, 8
      %s5012 = scalar_lea.vmem %s7, %s5011
      // Predicated region
      $region49: #{tpu_custom_call.1} parent=47 // pred_check
        %p5013 = pneg %p193
      $region50: #{tpu_custom_call.1} parent=47 // pred_check_branch
        %5015 = sbr.rel (%p5013) target = $region52
      $region51: #{tpu_custom_call.1} parent=47 // pred_region
        _
      $region52: #{tpu_custom_call.1} parent=47 // pred_fallthru
        _
    $region48: #{tpu_custom_call.1} parent=5 // pred_fallthru
      _
    %p5016 = scmp.le.s32.totalorder 2, %s13
    // Predicated region
    $region53: #{tpu_custom_call.1} parent=5 // pred_check
      %p5017 = pneg %p5016
    $region54: #{tpu_custom_call.1} parent=5 // pred_check_branch
      %5019 = sbr.rel (%p5017) target = $region56
    $region55: #{tpu_custom_call.1} parent=5 // pred_region
      %s5020 = ssub.s32 %s13, 2
      // Predicated region
      $region57: #{tpu_custom_call.1} parent=55 // pred_check
        %p5021 = pneg %p199
      $region58: #{tpu_custom_call.1} parent=55 // pred_check_branch
        %5023 = sbr.rel (%p5021) target = $region60
      $region59: #{tpu_custom_call.1} parent=55 // pred_region
        %p5024 = scmp.lt.s32.totalorder %s19, 1
        %s5025 = scalar_select %p5024, %s19, 1
        %s5026 = smul.addr %s5025, 32
        %s5027 = smul.addr %s5026, 8
        %s5028 = scalar_lea.vmem %s7, %s5027
      $region60: #{tpu_custom_call.1} parent=55 // pred_fallthru
        _
    $region56: #{tpu_custom_call.1} parent=5 // pred_fallthru
      _
  $region6: #{tpu_custom_call.1} parent=0 // loop_footer
    %s17 = sadd.s32 1, %s13
  $region7: #{tpu_custom_call.1} parent=0 // loop_footer_branch
    %12 = sbr.rel target = $region3
  $region8: #{tpu_custom_call.1} parent=0 // loop_exit
    _

</llo_original>
